<compile_context>
chip_gen: v7x
topology: tpu7x:2x2x1
jax: 0.10.0
libtpu: 0.0.40
codegen_flags: <defaults>
</compile_context>

<pallas_src>
import functools
import math

import jax
import jax.numpy as jnp
from jax.experimental import pallas as pl
from jax.experimental.pallas import tpu as pltpu


# Inputs smaller than this (or with fewer than 128 lanes) use plain XLA.
_SMALL_BYTES = 256 * 1024


def _round_up(v: int, m: int) -> int:
    return (v + m - 1) // m * m


def _vmem_capacity_bytes() -> int:
    """Per-core VMEM capacity; conservative (v7x) fallback if unqueryable."""
    default = 64 * 1024 * 1024
    try:
        info = pltpu.get_tpu_info()
        cap = getattr(info, "vmem_capacity_bytes", None)
        return int(cap) if cap else default
    except Exception:
        return default


def _mean_kernel(x_ref, o_ref, acc_ref, *, total_b: int, mask_rows: bool, sub: int):
    """Sum over the grid's (last) reduction axis into a (sub, tm) accumulator."""
    i = pl.program_id(1)            # B (reduction) axis -- last grid axis
    nb = pl.num_programs(1)
    tb, tm = x_ref.shape

    @pl.when(i == 0)
    def _():
        acc_ref[...] = jnp.zeros_like(acc_ref)

    def _accumulate(x):
        # Per-sublane partial sums in vreg-aligned groups of `sub` rows:
        # (tb, tm) -> (tb//sub, sub, tm) -> sum over axis 0.  Stays on the
        # VPU; no cross-sublane (XLU) traffic in the hot loop, and no
        # sublane unpack/relayout for packed (bf16 / int8) inputs.
        acc_ref[...] += jnp.sum(
            x.reshape(tb // sub, sub, tm), axis=0, dtype=jnp.float32
        )

    if mask_rows:
        # Only the final B block contains rows beyond the true batch extent
        # (the clamped DMA read leaves them undefined), so only that block
        # pays for the mask.  Full blocks accumulate unmasked.
        @pl.when(i < nb - 1)
        def _():
            _accumulate(x_ref[...])

        @pl.when(i == nb - 1)
        def _():
            row = i * tb + jax.lax.broadcasted_iota(jnp.int32, (tb, 1), 0)
            x = jnp.where(row < total_b, x_ref[...], jnp.zeros((), dtype=x_ref.dtype))
            _accumulate(x)
    else:
        _accumulate(x_ref[...])

    @pl.when(i == nb - 1)
    def _():
        # Single cross-sublane reduce + scale, then cast to the output dtype.
        col_sum = jnp.sum(acc_ref[...], axis=0, keepdims=True)      # (1, tm)
        o_ref[...] = (col_sum * (1.0 / total_b)).astype(o_ref.dtype)


def _mean_axis0_2d(x2d: jax.Array) -> jax.Array:
    """Mean over axis 0 of a 2-D array via a Pallas kernel. Returns (1, M)."""
    B, M = x2d.shape
    dtype = x2d.dtype
    itemsize = jnp.dtype(dtype).itemsize
    # Packed sublane multiple: 8 for f32, 16 for bf16, 32 for 8-bit dtypes.
    sub = max(8, 32 // itemsize)

    # Lane tile: multiple of 128, capped at 2048.  If the whole of M would fit
    # in a single block, split it in two so the parallel grid axis has extent
    # >= 2 (keeps both TensorCores busy on v7x; neutral on single-TC chips).
    tm = min(2048, _round_up(M, 128))
    if tm >= M and M >= 256:
        tm = _round_up(pl.cdiv(M, 2), 128)

    # Per-generation VMEM budget: target ~35% of capacity (capped at 32 MiB)
    # for the double-buffered input slab; tb is the largest multiple of `sub`
    # that fits, capped at 4096 rows and at the (rounded-up) batch extent.
    cap = _vmem_capacity_bytes()
    budget = min(int(0.35 * cap), 32 * 1024 * 1024)
    tb = (budget // (2 * tm * itemsize)) // sub * sub
    tb = max(sub, min(tb, 4096, _round_up(B, sub)))

    gm = pl.cdiv(M, tm)
    gb = pl.cdiv(B, tb)
    mask_rows = (B % tb) != 0

    # Explicit VMEM limit consistent with the tile choice: double-buffered
    # input + accumulator + output, with headroom, bounded by 75% of the
    # physical per-core capacity (stays under 48 MiB on v7x's 64 MiB VMEM).
    in_bytes = 2 * tb * tm * itemsize
    acc_bytes = sub * tm * 4
    out_bytes = 2 * tm * itemsize
    needed = in_bytes + acc_bytes + out_bytes
    vmem_limit = max(int(1.5 * needed), 4 * 1024 * 1024)
    vmem_limit = min(vmem_limit, int(0.75 * cap))
    vmem_limit = max(vmem_limit, needed + 2 * 1024 * 1024)

    return pl.pallas_call(
        functools.partial(_mean_kernel, total_b=B, mask_rows=mask_rows, sub=sub),
        out_shape=jax.ShapeDtypeStruct((1, M), dtype),
        grid_spec=pltpu.PrefetchScalarGridSpec(
            num_scalar_prefetch=0,
            grid=(gm, gb),                                    # reduction last
            in_specs=[pl.BlockSpec((tb, tm), lambda j, i: (i, j))],
            out_specs=pl.BlockSpec((1, tm), lambda j, i: (0, j)),
            scratch_shapes=[pltpu.VMEM((sub, tm), jnp.float32)],
        ),
        compiler_params=pltpu.CompilerParams(
            dimension_semantics=("parallel", "arbitrary"),
            vmem_limit_bytes=vmem_limit,
        ),
    )(x2d)


def mean_module_forward(x: jax.Array) -> jax.Array:
    """JAX/Pallas equivalent of MeanModule.forward.

    x.mean(0); if the reduced result is 1-D, return it with shape (1, N).
    """
    if x.ndim < 1:
        raise ValueError("MeanModule expects at least a 1-D input")
    B = x.shape[0]
    rest = x.shape[1:]
    M = math.prod(rest) if rest else 1

    if B == 0 or M == 0:
        # TODO(synk): degenerate empty-axis inputs are not handled in-kernel.
        out = jnp.mean(x, axis=0)
        return out.reshape(1, -1) if out.ndim == 1 else out

    total_bytes = B * M * jnp.dtype(x.dtype).itemsize
    if total_bytes < _SMALL_BYTES or M < 128:
        # Small-input fast path: a Pallas launch is pure fixed overhead here.
        out = jnp.mean(x, axis=0)
        return out.reshape(1, M) if out.ndim == 1 else out

    x2d = x.reshape(B, M)
    out2d = _mean_axis0_2d(x2d)                               # (1, M)

    if len(rest) == 1:
        return out2d                                          # (1, N), as torch .view
    return out2d.reshape(rest)


if __name__ == "__main__":
    key = jax.random.PRNGKey(0)
    k1, k2, k3, k4, k5 = jax.random.split(key, 5)

    def _check(x, tol=1e-4):
        out = jax.block_until_ready(mean_module_forward(x))
        ref = jnp.mean(x.astype(jnp.float32), axis=0)
        if ref.ndim == 1:
            ref = ref.reshape(1, -1)
        assert out.shape == ref.shape, (out.shape, ref.shape)
        assert jnp.allclose(out.astype(jnp.float32), ref, atol=tol, rtol=tol), \
            "mismatch vs reference"

    # Canonical two-stream case: (num_frames, num_classes) logits -> fast path.
    _check(jax.random.normal(k1, (16, 32), dtype=jnp.float32))

    # Pallas path: narrow M split across two lane blocks; masked last B rows.
    _check(jax.random.normal(k2, (2500, 256), dtype=jnp.float32))

    # Pallas path: M not a multiple of 128 (garbage lanes in last M block).
    _check(jax.random.normal(k3, (520, 200), dtype=jnp.float32))

    # Pallas path: multiple M blocks, single (exact) B block.
    _check(jax.random.normal(k4, (600, 2304), dtype=jnp.float32))

    # Pallas path: bf16 packing (sub=16), multi-step B reduction + masked tail.
    _check(jax.random.normal(k5, (9000, 256), dtype=jnp.bfloat16), tol=5e-3)

    # Pallas path: higher-rank input; output keeps the trailing shape.
    _check(jax.random.normal(k1, (40, 8, 256), dtype=jnp.float32))

    print("KERNEL_OK")
</pallas_src>

<mosaic_0001>
module attributes {stable_mosaic.version = 11 : i64} {
  func.func @_mean_kernel(%arg0: i32, %arg1: i32, %arg2: memref<2504x128xf32, #tpu.memory_space<vmem>>, %arg3: memref<1x128xf32, #tpu.memory_space<vmem>>, %arg4: memref<8x128xf32, #tpu.memory_space<vmem>>) attributes {dimension_semantics = [#tpu.dimension_semantics<parallel>, #tpu.dimension_semantics<arbitrary>], iteration_bounds = array<i64: 2, 1>, scalar_prefetch = 0 : i64, scratch_operands = 1 : i64, tpu.core_type = #tpu.core_type<tc>, window_params = [{transform_indices = @transform_0, window_bounds = array<i64: 2504, 128>}, {transform_indices = @transform_1, window_bounds = array<i64: 1, 128>}]} {
    %c0_i32 = arith.constant 0 : i32
    %0 = arith.cmpi eq, %arg1, %c0_i32 : i32
    %1 = arith.extui %0 : i1 to i32
    %c0_i32_0 = arith.constant 0 : i32
    %2 = arith.cmpi ne, %1, %c0_i32_0 : i32
    scf.if %2 {
      %cst = arith.constant 0.000000e+00 : f32
      %12 = vector.broadcast %cst : f32 to vector<8x128xf32>
      %c0 = arith.constant 0 : index
      %c0_7 = arith.constant 0 : index
      %13 = vector.load %arg4[%c0, %c0_7] : memref<8x128xf32, #tpu.memory_space<vmem>>, vector<8x128xf32>
      tpu.vector_store %arg4[%c0, %c0_7], %12 {strides = array<i32>} : memref<8x128xf32, #tpu.memory_space<vmem>>, vector<8x128xf32>,
    } else {
    }
    %c0_i32_1 = arith.constant 0 : i32
    %3 = arith.cmpi slt, %arg1, %c0_i32_1 : i32
    %4 = arith.extui %3 : i1 to i32
    %c0_i32_2 = arith.constant 0 : i32
    %5 = arith.cmpi ne, %4, %c0_i32_2 : i32
    scf.if %5 {
      %c0 = arith.constant 0 : index
      %c0_7 = arith.constant 0 : index
      %12 = vector.load %arg2[%c0, %c0_7] : memref<2504x128xf32, #tpu.memory_space<vmem>>, vector<2504x128xf32>
      %c0_8 = arith.constant 0 : index
      %c0_9 = arith.constant 0 : index
      %13 = vector.load %arg4[%c0_8, %c0_9] : memref<8x128xf32, #tpu.memory_space<vmem>>, vector<8x128xf32>
      %14 = vector.shape_cast %12 : vector<2504x128xf32> to vector<313x8x128xf32>
      %cst = arith.constant dense<0.000000e+00> : vector<8x128xf32>
      %15 = vector.multi_reduction <add>, %14, %cst [0] : vector<313x8x128xf32> to vector<8x128xf32>
      %16 = arith.addf %13, %15 : vector<8x128xf32>
      %c0_10 = arith.constant 0 : index
      %c0_11 = arith.constant 0 : index
      %17 = vector.load %arg4[%c0_10, %c0_11] : memref<8x128xf32, #tpu.memory_space<vmem>>, vector<8x128xf32>
      tpu.vector_store %arg4[%c0_10, %c0_11], %16 {strides = array<i32>} : memref<8x128xf32, #tpu.memory_space<vmem>>, vector<8x128xf32>,
    } else {
    }
    %c0_i32_3 = arith.constant 0 : i32
    %6 = arith.cmpi eq, %arg1, %c0_i32_3 : i32
    %7 = arith.extui %6 : i1 to i32
    %c0_i32_4 = arith.constant 0 : i32
    %8 = arith.cmpi ne, %7, %c0_i32_4 : i32
    scf.if %8 {
      %c2504_i32 = arith.constant 2504 : i32
      %12 = arith.muli %arg1, %c2504_i32 : i32
      %13 = tpu.iota {dimensions = array<i32: 0>} : vector<2504x1xi32>
      %14 = vector.broadcast %12 : i32 to vector<2504x1xi32>
      %15 = arith.addi %14, %13 : vector<2504x1xi32>
      %c2500_i32 = arith.constant 2500 : i32
      %16 = vector.broadcast %c2500_i32 : i32 to vector<2504x1xi32>
      %17 = arith.cmpi slt, %15, %16 : vector<2504x1xi32>
      %c0 = arith.constant 0 : index
      %c0_7 = arith.constant 0 : index
      %18 = vector.load %arg2[%c0, %c0_7] : memref<2504x128xf32, #tpu.memory_space<vmem>>, vector<2504x128xf32>
      %cst = arith.constant 0.000000e+00 : f32
      %19 = vector.shape_cast %17 : vector<2504x1xi1> to vector<2504x1xi1>
      %20 = vector.broadcast %19 : vector<2504x1xi1> to vector<2504x128xi1>
      %21 = vector.broadcast %cst : f32 to vector<2504x128xf32>
      %22 = arith.select %20, %18, %21 : vector<2504x128xi1>, vector<2504x128xf32>
      %c0_8 = arith.constant 0 : index
      %c0_9 = arith.constant 0 : index
      %23 = vector.load %arg4[%c0_8, %c0_9] : memref<8x128xf32, #tpu.memory_space<vmem>>, vector<8x128xf32>
      %24 = vector.shape_cast %22 : vector<2504x128xf32> to vector<313x8x128xf32>
      %cst_10 = arith.constant dense<0.000000e+00> : vector<8x128xf32>
      %25 = vector.multi_reduction <add>, %24, %cst_10 [0] : vector<313x8x128xf32> to vector<8x128xf32>
      %26 = arith.addf %23, %25 : vector<8x128xf32>
      %c0_11 = arith.constant 0 : index
      %c0_12 = arith.constant 0 : index
      %27 = vector.load %arg4[%c0_11, %c0_12] : memref<8x128xf32, #tpu.memory_space<vmem>>, vector<8x128xf32>
      tpu.vector_store %arg4[%c0_11, %c0_12], %26 {strides = array<i32>} : memref<8x128xf32, #tpu.memory_space<vmem>>, vector<8x128xf32>,
    } else {
    }
    %c0_i32_5 = arith.constant 0 : i32
    %9 = arith.cmpi eq, %arg1, %c0_i32_5 : i32
    %10 = arith.extui %9 : i1 to i32
    %c0_i32_6 = arith.constant 0 : i32
    %11 = arith.cmpi ne, %10, %c0_i32_6 : i32
    scf.if %11 {
      %c0 = arith.constant 0 : index
      %c0_7 = arith.constant 0 : index
      %12 = vector.load %arg4[%c0, %c0_7] : memref<8x128xf32, #tpu.memory_space<vmem>>, vector<8x128xf32>
      %cst = arith.constant dense<0.000000e+00> : vector<128xf32>
      %13 = vector.multi_reduction <add>, %12, %cst [0] : vector<8x128xf32> to vector<128xf32>
      %14 = vector.shape_cast %13 : vector<128xf32> to vector<1x128xf32>
      %cst_8 = arith.constant 4.000000e-04 : f32
      %15 = vector.broadcast %cst_8 : f32 to vector<1x128xf32>
      %16 = arith.mulf %14, %15 : vector<1x128xf32>
      %c0_9 = arith.constant 0 : index
      %c0_10 = arith.constant 0 : index
      %17 = vector.load %arg3[%c0_9, %c0_10] : memref<1x128xf32, #tpu.memory_space<vmem>>, vector<1x128xf32>
      tpu.vector_store %arg3[%c0_9, %c0_10], %16 {strides = array<i32>} : memref<1x128xf32, #tpu.memory_space<vmem>>, vector<1x128xf32>,
    } else {
    }
    return
  }
  func.func @transform_0(%arg0: i32, %arg1: i32) -> (i32, i32) {
    %c0_i32 = arith.constant 0 : i32
    return %arg1, %arg0 : i32, i32
  }
  func.func @transform_1(%arg0: i32, %arg1: i32) -> (i32, i32) {
    %c0_i32 = arith.constant 0 : i32
    %c0_i32_0 = arith.constant 0 : i32
    return %c0_i32, %arg0 : i32, i32
  }
}

</mosaic_0001>

<llo_original>
// kernel: tpu_custom_call.1
$region0: #{tpu_custom_call.1}
  #allocation0 [shape = 'u32[]', space=smem, size = 0x4, offset = 0x4, fixed_abs, tag = 'smem constant byte address 0x4 - core index']
  #allocation1 [shape = 'u32[144,128]{1,0:T(1,128)}', space=vmem, size = 0x12000, scoped, tag = 'internal scratch']
  #allocation2 [shape = 'f32[8,128]{1,0:T(8,128)}', space=vmem, size = 0x1000, scoped, tag = 'scratch operand']
  %s0 = inlined_call_operand.hbm [shape: f32[2500,256], index: 0, kind: input, shape index: {}]
  %s1 = inlined_call_operand.hbm [shape: f32[1,256], index: 1, kind: output, shape index: {}]
  %s2 = sld [smem:[#allocation0]]
  $region53: #{tpu_custom_call.1} parent=0
    _
  %s4 = ssub.s32 1, %s2
  %s5 = scalar_select 0, %s4, %s2
  $region1: #{tpu_custom_call.1} parent=0
    #allocation3 [shape = 'u8[2564096]{0}', space=vmem, size = 0x272000, scoped, tag = 'input window, operand 0']
    #allocation4 [shape = 's32[2]{0}', space=sflag, size = 0x8, scoped, tag = 'scoped memory for tpu_custom_call.1']
    #allocation5 [shape = 's32[2]{0}', space=sflag, size = 0x8, scoped, tag = 'scoped memory for tpu_custom_call.1']
    #allocation6 [shape = 'u8[1024]{0}', space=vmem, size = 0x400, scoped, tag = 'output window, operand 0']
    %6 = vsyncpa [#allocation4], 0
    %s7 = scalar_lea.sflag [#allocation4], 1
    %8 = vsyncpa %s7, 0
    %9 = vsyncpa [#allocation5], 0
    %s10 = scalar_lea.sflag [#allocation5], 1
    %11 = vsyncpa %s10, 0
    loop: start=0, step=1, limit=4
    $region2: #{tpu_custom_call.1} parent=1 // loop_pre_header
      _
    $region3: #{tpu_custom_call.1} parent=1 // loop_header
      %s13 = sphi 0, %s17
      %p14 = scmp.ge.s32.totalorder %s13, 4
      %s20 = sphi 0, %s32
      %s21 = sphi 0, %s28
      %s22 = sphi 0, %s20
      %s23 = sphi 0, %s21
      %s24 = sphi 0, %s22
      %s25 = sphi 0, %s23
      %s37 = sphi 0, %s39
      %s40 = sphi 0, %s37
      %s41 = sphi 0, %s40
      %s57 = sphi 0, %s41
      %s63 = sphi 0, %s65
      %s66 = sphi 0, %s63
      %s67 = sphi 0, %s66
      %s83 = sphi 0, %s67
    $region4: #{tpu_custom_call.1} parent=1 // loop_header_branch
      %16 = sbr.rel (%p14) target = $region8
    $region5: #{tpu_custom_call.1} parent=1 // loop_body
      %s18 = ssub.s32 %s13, 1
      %s19 = ssub.s32 %s13, 2
      %s26 = sadd.s32 1, %s21
      %p27 = scmp.ge.s32.totalorder %s26, 1
      %s28 = scalar_select %p27, 0, %s26
      %s29 = sadd.s32 1, %s20
      %s30 = scalar_select %p27, %s29, %s20
      %p31 = scmp.ge.s32.totalorder %s30, 2
      %s32 = scalar_select %p31, 0, %s30
      %s33 = ssub.s32 %s21, %s28
      %s34 = ssub.s32 %s20, %s32
      %s35 = sor.u32 %s33, %s34
      %p36 = scmp.eq.s32.totalorder %s35, 0
      %s38 = sadd.s32 %s37, 1
      %s39 = scalar_select %p36, %s37, %s38
      %p42 = pneg %p36
      %p43 = scmp.eq.s32.totalorder %s13, 1
      %p44 = por %p42, %p43
      %p45 = scmp.ne.s32.totalorder %s37, %s40
      %p46 = scmp.eq.s32.totalorder %s13, 0
      %p47 = por %p45, %p46
      %p48 = scmp.ne.s32.totalorder %s37, %s40
      %p49 = scmp.eq.s32.totalorder %s18, 1
      %p50 = por %p48, %p49
      %p51 = scmp.ne.s32.totalorder %s40, %s41
      %p52 = scmp.eq.s32.totalorder %s18, 0
      %p53 = por %p51, %p52
      %p54 = scmp.ne.s32.totalorder %s40, %s41
      %p55 = scmp.eq.s32.totalorder %s19, 1
      %p56 = por %p54, %p55
      %p58 = scmp.ne.s32.totalorder %s41, %s57
      %p59 = scmp.eq.s32.totalorder %s19, 0
      %p60 = por %p58, %p59
      %s61 = ssub.s32 %s20, %s32
      %p62 = scmp.eq.s32.totalorder %s61, 0
      %s64 = sadd.s32 %s63, 1
      %s65 = scalar_select %p62, %s63, %s64
      %p68 = pneg %p62
      %p69 = scmp.eq.s32.totalorder %s13, 1
      %p70 = por %p68, %p69
      %p71 = scmp.ne.s32.totalorder %s63, %s66
      %p72 = scmp.eq.s32.totalorder %s13, 0
      %p73 = por %p71, %p72
      %p74 = scmp.ne.s32.totalorder %s63, %s66
      %p75 = scmp.eq.s32.totalorder %s18, 1
      %p76 = por %p74, %p75
      %p77 = scmp.ne.s32.totalorder %s66, %s67
      %p78 = scmp.eq.s32.totalorder %s18, 0
      %p79 = por %p77, %p78
      %p80 = scmp.ne.s32.totalorder %s66, %s67
      %p81 = scmp.eq.s32.totalorder %s19, 1
      %p82 = por %p80, %p81
      %p84 = scmp.ne.s32.totalorder %s67, %s83
      %p85 = scmp.eq.s32.totalorder %s19, 0
      %p86 = por %p84, %p85
      %p87 = scmp.le.s32.totalorder 1, %s13
      %p88 = scmp.lt.s32.totalorder %s13, 3
      %p89 = pnand %p87, %p88
      %p90 = pneg %p89
      // Predicated region
      $region9: #{tpu_custom_call.1} parent=5 // pred_check
        _
      $region10: #{tpu_custom_call.1} parent=5 // pred_check_branch
        %92 = sbr.rel (%p89) target = $region12
      $region11: #{tpu_custom_call.1} parent=5 // pred_region
        %s93 = ssub.s32 %s13, 1
      $region12: #{tpu_custom_call.1} parent=5 // pred_fallthru
        _
      %p94 = scmp.lt.s32.totalorder %s13, 2
      // Predicated region
      $region13: #{tpu_custom_call.1} parent=5 // pred_check
        %p95 = pneg %p94
      $region14: #{tpu_custom_call.1} parent=5 // pred_check_branch
        %97 = sbr.rel (%p95) target = $region16
      $region15: #{tpu_custom_call.1} parent=5 // pred_region
        // Predicated region
        $region17: #{tpu_custom_call.1} parent=15 // pred_check
          %p98 = pneg %p47
        $region18: #{tpu_custom_call.1} parent=15 // pred_check_branch
          %100 = sbr.rel (%p98) target = $region20
        $region19: #{tpu_custom_call.1} parent=15 // pred_region
          %s101 = sand.u32 %s37, 1
          %s102 = scalar_lea.sflag [#allocation4], %s101
          %s103 = sand.u32 %s37, 1
          %s104 = smul.addr %s103, 2504
          %s105 = scalar_lea.vmem [#allocation3], %s104
          %s106 = smul.u32 313, %s21
          %s108 = ssub.s32 40064, 40064
          %109 = vsyncadd %s102, %s108
          %s110 = smul.addr %s106, 2
          %s111 = sadd.s32 %s20, %s110
          %s112 = smul.addr %s111, 128
          %s113 = scalar_lea.hbm %s0, %s112
          %s114 = sshll.u32 %s105, 4
          %s115 = int_to_ptr.vmem [resolvable:$true] %s114
          %120 = dma.hbm_to_vmem [thread:$0]  %s113, 40064, %s115, %s102, 256, 128, 8
        $region20: #{tpu_custom_call.1} parent=15 // pred_fallthru
          _
      $region16: #{tpu_custom_call.1} parent=5 // pred_fallthru
        _
      %p121 = scmp.le.s32.totalorder 1, %s13
      %p122 = scmp.lt.s32.totalorder %s13, 3
      %p123 = pnand %p121, %p122
      %p124 = pneg %p123
      // Predicated region
      $region21: #{tpu_custom_call.1} parent=5 // pred_check
        _
      $region22: #{tpu_custom_call.1} parent=5 // pred_check_branch
        %126 = sbr.rel (%p123) target = $region24
      $region23: #{tpu_custom_call.1} parent=5 // pred_region
        %s127 = ssub.s32 %s13, 1
        %s128 = sand.u32 %s40, 1
        %s129 = scalar_lea.sflag [#allocation4], %s128
        %s130 = sand.u32 %s40, 1
        %s131 = smul.addr %s130, 2504
        %s132 = scalar_lea.vmem [#allocation3], %s131
        // Predicated region
        $region25: #{tpu_custom_call.1} parent=23 // pred_check
          %p133 = pneg %p53
        $region26: #{tpu_custom_call.1} parent=23 // pred_check_branch
          %135 = sbr.rel (%p133) target = $region28
        $region27: #{tpu_custom_call.1} parent=23 // pred_region
          %136 = dma.done %s129, 40064
        $region28: #{tpu_custom_call.1} parent=23 // pred_fallthru
          _
        %s137 = sand.u32 %s40, 1
        %s138 = scalar_lea.sflag [#allocation4], %s137
        %s139 = sand.u32 %s40, 1
        %s140 = smul.addr %s139, 2504
        %s141 = scalar_lea.vmem [#allocation3], %s140
        %p142 = pneg %p53
        %p143 = pneg %p50
        %p144 = pneg %p79
        %p145 = pneg %p76
        %s146 = sand.u32 %s66, 1
        %s147 = scalar_lea.sflag [#allocation5], %s146
        %s148 = sand.u32 %s66, 1
        %s149 = scalar_lea.vmem [#allocation6], %s148
        %s150 = smul.u32 313, %s23
        %p151 = scmp.eq.s32.totalorder %s23, 0
        // Predicated region
        $region29: #{tpu_custom_call.1} parent=23 // pred_check
          %p152 = pneg %p151
        $region30: #{tpu_custom_call.1} parent=23 // pred_check_branch
          %154 = sbr.rel (%p152) target = $region32
        $region31: #{tpu_custom_call.1} parent=23 // pred_region
          %155 = vst [vmem:[#allocation2] sm:$0xff] 0.0
        $region32: #{tpu_custom_call.1} parent=23 // pred_fallthru
          _
        %p156 = scmp.lt.s32.totalorder %s23, 0
        // Predicated region
        $region33: #{tpu_custom_call.1} parent=23 // pred_check
          %p157 = pneg %p156
        $region34: #{tpu_custom_call.1} parent=23 // pred_check_branch
          %159 = sbr.rel (%p157) target = $region36
        $region35: #{tpu_custom_call.1} parent=23 // pred_region
          %v160 = vld [vmem:[%s132] sm:$0xff]
          %v161 = vld [vmem:[%s132 + $0x8] sm:$0xff]
          %v162 = vld [vmem:[%s132 + $0x10] sm:$0xff]
          %v163 = vld [vmem:[%s132 + $0x18] sm:$0xff]
          %v164 = vld [vmem:[%s132 + $0x20] sm:$0xff]
          %v165 = vld [vmem:[%s132 + $0x28] sm:$0xff]
          %v166 = vld [vmem:[%s132 + $0x30] sm:$0xff]
          %v167 = vld [vmem:[%s132 + $0x38] sm:$0xff]
          %v168 = vld [vmem:[%s132 + $0x40] sm:$0xff]
          %v169 = vld [vmem:[%s132 + $0x48] sm:$0xff]
          %v170 = vld [vmem:[%s132 + $0x50] sm:$0xff]
          %v171 = vld [vmem:[%s132 + $0x58] sm:$0xff]
          %v172 = vld [vmem:[%s132 + $0x60] sm:$0xff]
          %v173 = vld [vmem:[%s132 + $0x68] sm:$0xff]
          %v174 = vld [vmem:[%s132 + $0x70] sm:$0xff]
          %v175 = vld [vmem:[%s132 + $0x78] sm:$0xff]
          %v176 = vld [vmem:[%s132 + $0x80] sm:$0xff]
          %v177 = vld [vmem:[%s132 + $0x88] sm:$0xff]
          %v178 = vld [vmem:[%s132 + $0x90] sm:$0xff]
          %v179 = vld [vmem:[%s132 + $0x98] sm:$0xff]
          %v180 = vld [vmem:[%s132 + $0xa0] sm:$0xff]
          %v181 = vld [vmem:[%s132 + $0xa8] sm:$0xff]
          %v182 = vld [vmem:[%s132 + $0xb0] sm:$0xff]
          %v183 = vld [vmem:[%s132 + $0xb8] sm:$0xff]
          %v184 = vld [vmem:[%s132 + $0xc0] sm:$0xff]
          %v185 = vld [vmem:[%s132 + $0xc8] sm:$0xff]
          %v186 = vld [vmem:[%s132 + $0xd0] sm:$0xff]
          %v187 = vld [vmem:[%s132 + $0xd8] sm:$0xff]
          %v188 = vld [vmem:[%s132 + $0xe0] sm:$0xff]
          %v189 = vld [vmem:[%s132 + $0xe8] sm:$0xff]
          %v190 = vld [vmem:[%s132 + $0xf0] sm:$0xff]
          %v191 = vld [vmem:[%s132 + $0xf8] sm:$0xff]
          %v192 = vld [vmem:[%s132 + $0x100] sm:$0xff]
          %v193 = vld [vmem:[%s132 + $0x108] sm:$0xff]
          %v194 = vld [vmem:[%s132 + $0x110] sm:$0xff]
          %v195 = vld [vmem:[%s132 + $0x118] sm:$0xff]
          %v196 = vld [vmem:[%s132 + $0x120] sm:$0xff]
          %v197 = vld [vmem:[%s132 + $0x128] sm:$0xff]
          %v198 = vld [vmem:[%s132 + $0x130] sm:$0xff]
          %v199 = vld [vmem:[%s132 + $0x138] sm:$0xff]
          %v200 = vld [vmem:[%s132 + $0x140] sm:$0xff]
          %v201 = vld [vmem:[%s132 + $0x148] sm:$0xff]
          %v202 = vld [vmem:[%s132 + $0x150] sm:$0xff]
          %v203 = vld [vmem:[%s132 + $0x158] sm:$0xff]
          %v204 = vld [vmem:[%s132 + $0x160] sm:$0xff]
          %v205 = vld [vmem:[%s132 + $0x168] sm:$0xff]
          %v206 = vld [vmem:[%s132 + $0x170] sm:$0xff]
          %v207 = vld [vmem:[%s132 + $0x178] sm:$0xff]
          %v208 = vld [vmem:[%s132 + $0x180] sm:$0xff]
          %v209 = vld [vmem:[%s132 + $0x188] sm:$0xff]
          %v210 = vld [vmem:[%s132 + $0x190] sm:$0xff]
          %v211 = vld [vmem:[%s132 + $0x198] sm:$0xff]
          %v212 = vld [vmem:[%s132 + $0x1a0] sm:$0xff]
          %v213 = vld [vmem:[%s132 + $0x1a8] sm:$0xff]
          %v214 = vld [vmem:[%s132 + $0x1b0] sm:$0xff]
          %v215 = vld [vmem:[%s132 + $0x1b8] sm:$0xff]
          %v216 = vld [vmem:[%s132 + $0x1c0] sm:$0xff]
          %v217 = vld [vmem:[%s132 + $0x1c8] sm:$0xff]
          %v218 = vld [vmem:[%s132 + $0x1d0] sm:$0xff]
          %v219 = vld [vmem:[%s132 + $0x1d8] sm:$0xff]
          %v220 = vld [vmem:[%s132 + $0x1e0] sm:$0xff]
          %v221 = vld [vmem:[%s132 + $0x1e8] sm:$0xff]
          %v222 = vld [vmem:[%s132 + $0x1f0] sm:$0xff]
          %v223 = vld [vmem:[%s132 + $0x1f8] sm:$0xff]
          %v224 = vld [vmem:[%s132 + $0x200] sm:$0xff]
          %v225 = vld [vmem:[%s132 + $0x208] sm:$0xff]
          %v226 = vld [vmem:[%s132 + $0x210] sm:$0xff]
          %v227 = vld [vmem:[%s132 + $0x218] sm:$0xff]
          %v228 = vld [vmem:[%s132 + $0x220] sm:$0xff]
          %v229 = vld [vmem:[%s132 + $0x228] sm:$0xff]
          %v230 = vld [vmem:[%s132 + $0x230] sm:$0xff]
          %v231 = vld [vmem:[%s132 + $0x238] sm:$0xff]
          %v232 = vld [vmem:[%s132 + $0x240] sm:$0xff]
          %v233 = vld [vmem:[%s132 + $0x248] sm:$0xff]
          %v234 = vld [vmem:[%s132 + $0x250] sm:$0xff]
          %v235 = vld [vmem:[%s132 + $0x258] sm:$0xff]
          %v236 = vld [vmem:[%s132 + $0x260] sm:$0xff]
          %v237 = vld [vmem:[%s132 + $0x268] sm:$0xff]
          %v238 = vld [vmem:[%s132 + $0x270] sm:$0xff]
          %v239 = vld [vmem:[%s132 + $0x278] sm:$0xff]
          %v240 = vld [vmem:[%s132 + $0x280] sm:$0xff]
          %v241 = vld [vmem:[%s132 + $0x288] sm:$0xff]
          %v242 = vld [vmem:[%s132 + $0x290] sm:$0xff]
          %v243 = vld [vmem:[%s132 + $0x298] sm:$0xff]
          %v244 = vld [vmem:[%s132 + $0x2a0] sm:$0xff]
          %v245 = vld [vmem:[%s132 + $0x2a8] sm:$0xff]
          %v246 = vld [vmem:[%s132 + $0x2b0] sm:$0xff]
          %v247 = vld [vmem:[%s132 + $0x2b8] sm:$0xff]
          %v248 = vld [vmem:[%s132 + $0x2c0] sm:$0xff]
          %v249 = vld [vmem:[%s132 + $0x2c8] sm:$0xff]
          %v250 = vld [vmem:[%s132 + $0x2d0] sm:$0xff]
          %v251 = vld [vmem:[%s132 + $0x2d8] sm:$0xff]
          %v252 = vld [vmem:[%s132 + $0x2e0] sm:$0xff]
          %v253 = vld [vmem:[%s132 + $0x2e8] sm:$0xff]
          %v254 = vld [vmem:[%s132 + $0x2f0] sm:$0xff]
          %v255 = vld [vmem:[%s132 + $0x2f8] sm:$0xff]
          %v256 = vld [vmem:[%s132 + $0x300] sm:$0xff]
          %v257 = vld [vmem:[%s132 + $0x308] sm:$0xff]
          %v258 = vld [vmem:[%s132 + $0x310] sm:$0xff]
          %v259 = vld [vmem:[%s132 + $0x318] sm:$0xff]
          %v260 = vld [vmem:[%s132 + $0x320] sm:$0xff]
          %v261 = vld [vmem:[%s132 + $0x328] sm:$0xff]
          %v262 = vld [vmem:[%s132 + $0x330] sm:$0xff]
          %v263 = vld [vmem:[%s132 + $0x338] sm:$0xff]
          %v264 = vld [vmem:[%s132 + $0x340] sm:$0xff]
          %v265 = vld [vmem:[%s132 + $0x348] sm:$0xff]
          %v266 = vld [vmem:[%s132 + $0x350] sm:$0xff]
          %v267 = vld [vmem:[%s132 + $0x358] sm:$0xff]
          %v268 = vld [vmem:[%s132 + $0x360] sm:$0xff]
          %v269 = vld [vmem:[%s132 + $0x368] sm:$0xff]
          %v270 = vld [vmem:[%s132 + $0x370] sm:$0xff]
          %v271 = vld [vmem:[%s132 + $0x378] sm:$0xff]
          %v272 = vld [vmem:[%s132 + $0x380] sm:$0xff]
          %v273 = vld [vmem:[%s132 + $0x388] sm:$0xff]
          %v274 = vld [vmem:[%s132 + $0x390] sm:$0xff]
          %v275 = vld [vmem:[%s132 + $0x398] sm:$0xff]
          %v276 = vld [vmem:[%s132 + $0x3a0] sm:$0xff]
          %v277 = vld [vmem:[%s132 + $0x3a8] sm:$0xff]
          %v278 = vld [vmem:[%s132 + $0x3b0] sm:$0xff]
          %v279 = vld [vmem:[%s132 + $0x3b8] sm:$0xff]
          %v280 = vld [vmem:[%s132 + $0x3c0] sm:$0xff]
          %v281 = vld [vmem:[%s132 + $0x3c8] sm:$0xff]
          %v282 = vld [vmem:[%s132 + $0x3d0] sm:$0xff]
          %v283 = vld [vmem:[%s132 + $0x3d8] sm:$0xff]
          %v284 = vld [vmem:[%s132 + $0x3e0] sm:$0xff]
          %v285 = vld [vmem:[%s132 + $0x3e8] sm:$0xff]
          %v286 = vld [vmem:[%s132 + $0x3f0] sm:$0xff]
          %v287 = vld [vmem:[%s132 + $0x3f8] sm:$0xff]
          %v288 = vld [vmem:[%s132 + $0x400] sm:$0xff]
          %v289 = vld [vmem:[%s132 + $0x408] sm:$0xff]
          %v290 = vld [vmem:[%s132 + $0x410] sm:$0xff]
          %v291 = vld [vmem:[%s132 + $0x418] sm:$0xff]
          %v292 = vld [vmem:[%s132 + $0x420] sm:$0xff]
          %v293 = vld [vmem:[%s132 + $0x428] sm:$0xff]
          %v294 = vld [vmem:[%s132 + $0x430] sm:$0xff]
          %v295 = vld [vmem:[%s132 + $0x438] sm:$0xff]
          %v296 = vld [vmem:[%s132 + $0x440] sm:$0xff]
          %v297 = vld [vmem:[%s132 + $0x448] sm:$0xff]
          %v298 = vld [vmem:[%s132 + $0x450] sm:$0xff]
          %v299 = vld [vmem:[%s132 + $0x458] sm:$0xff]
          %v300 = vld [vmem:[%s132 + $0x460] sm:$0xff]
          %v301 = vld [vmem:[%s132 + $0x468] sm:$0xff]
          %v302 = vld [vmem:[%s132 + $0x470] sm:$0xff]
          %v303 = vld [vmem:[%s132 + $0x478] sm:$0xff]
          %v304 = vld [vmem:[%s132 + $0x480] sm:$0xff]
          %v305 = vld [vmem:[%s132 + $0x488] sm:$0xff]
          %v306 = vld [vmem:[%s132 + $0x490] sm:$0xff]
          %v307 = vld [vmem:[%s132 + $0x498] sm:$0xff]
          %v308 = vld [vmem:[%s132 + $0x4a0] sm:$0xff]
          %v309 = vld [vmem:[%s132 + $0x4a8] sm:$0xff]
          %v310 = vld [vmem:[%s132 + $0x4b0] sm:$0xff]
          %v311 = vld [vmem:[%s132 + $0x4b8] sm:$0xff]
          %v312 = vld [vmem:[%s132 + $0x4c0] sm:$0xff]
          %v313 = vld [vmem:[%s132 + $0x4c8] sm:$0xff]
          %v314 = vld [vmem:[%s132 + $0x4d0] sm:$0xff]
          %v315 = vld [vmem:[%s132 + $0x4d8] sm:$0xff]
          %v316 = vld [vmem:[%s132 + $0x4e0] sm:$0xff]
          %v317 = vld [vmem:[%s132 + $0x4e8] sm:$0xff]
          %v318 = vld [vmem:[%s132 + $0x4f0] sm:$0xff]
          %v319 = vld [vmem:[%s132 + $0x4f8] sm:$0xff]
          %v320 = vld [vmem:[%s132 + $0x500] sm:$0xff]
          %v321 = vld [vmem:[%s132 + $0x508] sm:$0xff]
          %v322 = vld [vmem:[%s132 + $0x510] sm:$0xff]
          %v323 = vld [vmem:[%s132 + $0x518] sm:$0xff]
          %v324 = vld [vmem:[%s132 + $0x520] sm:$0xff]
          %v325 = vld [vmem:[%s132 + $0x528] sm:$0xff]
          %v326 = vld [vmem:[%s132 + $0x530] sm:$0xff]
          %v327 = vld [vmem:[%s132 + $0x538] sm:$0xff]
          %v328 = vld [vmem:[%s132 + $0x540] sm:$0xff]
          %v329 = vld [vmem:[%s132 + $0x548] sm:$0xff]
          %v330 = vld [vmem:[%s132 + $0x550] sm:$0xff]
          %v331 = vld [vmem:[%s132 + $0x558] sm:$0xff]
          %v332 = vld [vmem:[%s132 + $0x560] sm:$0xff]
          %v333 = vld [vmem:[%s132 + $0x568] sm:$0xff]
          %v334 = vld [vmem:[%s132 + $0x570] sm:$0xff]
          %v335 = vld [vmem:[%s132 + $0x578] sm:$0xff]
          %v336 = vld [vmem:[%s132 + $0x580] sm:$0xff]
          %v337 = vld [vmem:[%s132 + $0x588] sm:$0xff]
          %v338 = vld [vmem:[%s132 + $0x590] sm:$0xff]
          %v339 = vld [vmem:[%s132 + $0x598] sm:$0xff]
          %v340 = vld [vmem:[%s132 + $0x5a0] sm:$0xff]
          %v341 = vld [vmem:[%s132 + $0x5a8] sm:$0xff]
          %v342 = vld [vmem:[%s132 + $0x5b0] sm:$0xff]
          %v343 = vld [vmem:[%s132 + $0x5b8] sm:$0xff]
          %v344 = vld [vmem:[%s132 + $0x5c0] sm:$0xff]
          %v345 = vld [vmem:[%s132 + $0x5c8] sm:$0xff]
          %v346 = vld [vmem:[%s132 + $0x5d0] sm:$0xff]
          %v347 = vld [vmem:[%s132 + $0x5d8] sm:$0xff]
          %v348 = vld [vmem:[%s132 + $0x5e0] sm:$0xff]
          %v349 = vld [vmem:[%s132 + $0x5e8] sm:$0xff]
          %v350 = vld [vmem:[%s132 + $0x5f0] sm:$0xff]
          %v351 = vld [vmem:[%s132 + $0x5f8] sm:$0xff]
          %v352 = vld [vmem:[%s132 + $0x600] sm:$0xff]
          %v353 = vld [vmem:[%s132 + $0x608] sm:$0xff]
          %v354 = vld [vmem:[%s132 + $0x610] sm:$0xff]
          %v355 = vld [vmem:[%s132 + $0x618] sm:$0xff]
          %v356 = vld [vmem:[%s132 + $0x620] sm:$0xff]
          %v357 = vld [vmem:[%s132 + $0x628] sm:$0xff]
          %v358 = vld [vmem:[%s132 + $0x630] sm:$0xff]
          %v359 = vld [vmem:[%s132 + $0x638] sm:$0xff]
          %v360 = vld [vmem:[%s132 + $0x640] sm:$0xff]
          %v361 = vld [vmem:[%s132 + $0x648] sm:$0xff]
          %v362 = vld [vmem:[%s132 + $0x650] sm:$0xff]
          %v363 = vld [vmem:[%s132 + $0x658] sm:$0xff]
          %v364 = vld [vmem:[%s132 + $0x660] sm:$0xff]
          %v365 = vld [vmem:[%s132 + $0x668] sm:$0xff]
          %v366 = vld [vmem:[%s132 + $0x670] sm:$0xff]
          %v367 = vld [vmem:[%s132 + $0x678] sm:$0xff]
          %v368 = vld [vmem:[%s132 + $0x680] sm:$0xff]
          %v369 = vld [vmem:[%s132 + $0x688] sm:$0xff]
          %v370 = vld [vmem:[%s132 + $0x690] sm:$0xff]
          %v371 = vld [vmem:[%s132 + $0x698] sm:$0xff]
          %v372 = vld [vmem:[%s132 + $0x6a0] sm:$0xff]
          %v373 = vld [vmem:[%s132 + $0x6a8] sm:$0xff]
          %v374 = vld [vmem:[%s132 + $0x6b0] sm:$0xff]
          %v375 = vld [vmem:[%s132 + $0x6b8] sm:$0xff]
          %v376 = vld [vmem:[%s132 + $0x6c0] sm:$0xff]
          %v377 = vld [vmem:[%s132 + $0x6c8] sm:$0xff]
          %v378 = vld [vmem:[%s132 + $0x6d0] sm:$0xff]
          %v379 = vld [vmem:[%s132 + $0x6d8] sm:$0xff]
          %v380 = vld [vmem:[%s132 + $0x6e0] sm:$0xff]
          %v381 = vld [vmem:[%s132 + $0x6e8] sm:$0xff]
          %v382 = vld [vmem:[%s132 + $0x6f0] sm:$0xff]
          %v383 = vld [vmem:[%s132 + $0x6f8] sm:$0xff]
          %v384 = vld [vmem:[%s132 + $0x700] sm:$0xff]
          %v385 = vld [vmem:[%s132 + $0x708] sm:$0xff]
          %v386 = vld [vmem:[%s132 + $0x710] sm:$0xff]
          %v387 = vld [vmem:[%s132 + $0x718] sm:$0xff]
          %v388 = vld [vmem:[%s132 + $0x720] sm:$0xff]
          %v389 = vld [vmem:[%s132 + $0x728] sm:$0xff]
          %v390 = vld [vmem:[%s132 + $0x730] sm:$0xff]
          %v391 = vld [vmem:[%s132 + $0x738] sm:$0xff]
          %v392 = vld [vmem:[%s132 + $0x740] sm:$0xff]
          %v393 = vld [vmem:[%s132 + $0x748] sm:$0xff]
          %v394 = vld [vmem:[%s132 + $0x750] sm:$0xff]
          %v395 = vld [vmem:[%s132 + $0x758] sm:$0xff]
          %v396 = vld [vmem:[%s132 + $0x760] sm:$0xff]
          %v397 = vld [vmem:[%s132 + $0x768] sm:$0xff]
          %v398 = vld [vmem:[%s132 + $0x770] sm:$0xff]
          %v399 = vld [vmem:[%s132 + $0x778] sm:$0xff]
          %v400 = vld [vmem:[%s132 + $0x780] sm:$0xff]
          %v401 = vld [vmem:[%s132 + $0x788] sm:$0xff]
          %v402 = vld [vmem:[%s132 + $0x790] sm:$0xff]
          %v403 = vld [vmem:[%s132 + $0x798] sm:$0xff]
          %v404 = vld [vmem:[%s132 + $0x7a0] sm:$0xff]
          %v405 = vld [vmem:[%s132 + $0x7a8] sm:$0xff]
          %v406 = vld [vmem:[%s132 + $0x7b0] sm:$0xff]
          %v407 = vld [vmem:[%s132 + $0x7b8] sm:$0xff]
          %v408 = vld [vmem:[%s132 + $0x7c0] sm:$0xff]
          %v409 = vld [vmem:[%s132 + $0x7c8] sm:$0xff]
          %v410 = vld [vmem:[%s132 + $0x7d0] sm:$0xff]
          %v411 = vld [vmem:[%s132 + $0x7d8] sm:$0xff]
          %v412 = vld [vmem:[%s132 + $0x7e0] sm:$0xff]
          %v413 = vld [vmem:[%s132 + $0x7e8] sm:$0xff]
          %v414 = vld [vmem:[%s132 + $0x7f0] sm:$0xff]
          %v415 = vld [vmem:[%s132 + $0x7f8] sm:$0xff]
          %v416 = vld [vmem:[%s132 + $0x800] sm:$0xff]
          %v417 = vld [vmem:[%s132 + $0x808] sm:$0xff]
          %v418 = vld [vmem:[%s132 + $0x810] sm:$0xff]
          %v419 = vld [vmem:[%s132 + $0x818] sm:$0xff]
          %v420 = vld [vmem:[%s132 + $0x820] sm:$0xff]
          %v421 = vld [vmem:[%s132 + $0x828] sm:$0xff]
          %v422 = vld [vmem:[%s132 + $0x830] sm:$0xff]
          %v423 = vld [vmem:[%s132 + $0x838] sm:$0xff]
          %v424 = vld [vmem:[%s132 + $0x840] sm:$0xff]
          %v425 = vld [vmem:[%s132 + $0x848] sm:$0xff]
          %v426 = vld [vmem:[%s132 + $0x850] sm:$0xff]
          %v427 = vld [vmem:[%s132 + $0x858] sm:$0xff]
          %v428 = vld [vmem:[%s132 + $0x860] sm:$0xff]
          %v429 = vld [vmem:[%s132 + $0x868] sm:$0xff]
          %v430 = vld [vmem:[%s132 + $0x870] sm:$0xff]
          %v431 = vld [vmem:[%s132 + $0x878] sm:$0xff]
          %v432 = vld [vmem:[%s132 + $0x880] sm:$0xff]
          %v433 = vld [vmem:[%s132 + $0x888] sm:$0xff]
          %v434 = vld [vmem:[%s132 + $0x890] sm:$0xff]
          %v435 = vld [vmem:[%s132 + $0x898] sm:$0xff]
          %v436 = vld [vmem:[%s132 + $0x8a0] sm:$0xff]
          %v437 = vld [vmem:[%s132 + $0x8a8] sm:$0xff]
          %v438 = vld [vmem:[%s132 + $0x8b0] sm:$0xff]
          %v439 = vld [vmem:[%s132 + $0x8b8] sm:$0xff]
          %v440 = vld [vmem:[%s132 + $0x8c0] sm:$0xff]
          %v441 = vld [vmem:[%s132 + $0x8c8] sm:$0xff]
          %v442 = vld [vmem:[%s132 + $0x8d0] sm:$0xff]
          %v443 = vld [vmem:[%s132 + $0x8d8] sm:$0xff]
          %v444 = vld [vmem:[%s132 + $0x8e0] sm:$0xff]
          %v445 = vld [vmem:[%s132 + $0x8e8] sm:$0xff]
          %v446 = vld [vmem:[%s132 + $0x8f0] sm:$0xff]
          %v447 = vld [vmem:[%s132 + $0x8f8] sm:$0xff]
          %v448 = vld [vmem:[%s132 + $0x900] sm:$0xff]
          %v449 = vld [vmem:[%s132 + $0x908] sm:$0xff]
          %v450 = vld [vmem:[%s132 + $0x910] sm:$0xff]
          %v451 = vld [vmem:[%s132 + $0x918] sm:$0xff]
          %v452 = vld [vmem:[%s132 + $0x920] sm:$0xff]
          %v453 = vld [vmem:[%s132 + $0x928] sm:$0xff]
          %v454 = vld [vmem:[%s132 + $0x930] sm:$0xff]
          %v455 = vld [vmem:[%s132 + $0x938] sm:$0xff]
          %v456 = vld [vmem:[%s132 + $0x940] sm:$0xff]
          %v457 = vld [vmem:[%s132 + $0x948] sm:$0xff]
          %v458 = vld [vmem:[%s132 + $0x950] sm:$0xff]
          %v459 = vld [vmem:[%s132 + $0x958] sm:$0xff]
          %v460 = vld [vmem:[%s132 + $0x960] sm:$0xff]
          %v461 = vld [vmem:[%s132 + $0x968] sm:$0xff]
          %v462 = vld [vmem:[%s132 + $0x970] sm:$0xff]
          %v463 = vld [vmem:[%s132 + $0x978] sm:$0xff]
          %v464 = vld [vmem:[%s132 + $0x980] sm:$0xff]
          %v465 = vld [vmem:[%s132 + $0x988] sm:$0xff]
          %v466 = vld [vmem:[%s132 + $0x990] sm:$0xff]
          %v467 = vld [vmem:[%s132 + $0x998] sm:$0xff]
          %v468 = vld [vmem:[%s132 + $0x9a0] sm:$0xff]
          %v469 = vld [vmem:[%s132 + $0x9a8] sm:$0xff]
          %v470 = vld [vmem:[%s132 + $0x9b0] sm:$0xff]
          %v471 = vld [vmem:[%s132 + $0x9b8] sm:$0xff]
          %v472 = vld [vmem:[%s132 + $0x9c0] sm:$0xff]
          %v473 = vld [vmem:[#allocation2] sm:$0xff]
          %v474 = vadd.f32 %v160, %v161
          %v475 = vadd.f32 %v474, %v162
          %v476 = vadd.f32 %v475, %v163
          %v477 = vadd.f32 %v476, %v164
          %v478 = vadd.f32 %v477, %v165
          %v479 = vadd.f32 %v478, %v166
          %v480 = vadd.f32 %v479, %v167
          %v481 = vadd.f32 %v480, %v168
          %v482 = vadd.f32 %v481, %v169
          %v483 = vadd.f32 %v482, %v170
          %v484 = vadd.f32 %v483, %v171
          %v485 = vadd.f32 %v484, %v172
          %v486 = vadd.f32 %v485, %v173
          %v487 = vadd.f32 %v486, %v174
          %v488 = vadd.f32 %v487, %v175
          %v489 = vadd.f32 %v488, %v176
          %v490 = vadd.f32 %v489, %v177
          %v491 = vadd.f32 %v490, %v178
          %v492 = vadd.f32 %v491, %v179
          %v493 = vadd.f32 %v492, %v180
          %v494 = vadd.f32 %v493, %v181
          %v495 = vadd.f32 %v494, %v182
          %v496 = vadd.f32 %v495, %v183
          %v497 = vadd.f32 %v496, %v184
          %v498 = vadd.f32 %v497, %v185
          %v499 = vadd.f32 %v498, %v186
          %v500 = vadd.f32 %v499, %v187
          %v501 = vadd.f32 %v500, %v188
          %v502 = vadd.f32 %v501, %v189
          %v503 = vadd.f32 %v502, %v190
          %v504 = vadd.f32 %v503, %v191
          %v505 = vadd.f32 %v504, %v192
          %v506 = vadd.f32 %v505, %v193
          %v507 = vadd.f32 %v506, %v194
          %v508 = vadd.f32 %v507, %v195
          %v509 = vadd.f32 %v508, %v196
          %v510 = vadd.f32 %v509, %v197
          %v511 = vadd.f32 %v510, %v198
          %v512 = vadd.f32 %v511, %v199
          %v513 = vadd.f32 %v512, %v200
          %v514 = vadd.f32 %v513, %v201
          %v515 = vadd.f32 %v514, %v202
          %v516 = vadd.f32 %v515, %v203
          %v517 = vadd.f32 %v516, %v204
          %v518 = vadd.f32 %v517, %v205
          %v519 = vadd.f32 %v518, %v206
          %v520 = vadd.f32 %v519, %v207
          %v521 = vadd.f32 %v520, %v208
          %v522 = vadd.f32 %v521, %v209
          %v523 = vadd.f32 %v522, %v210
          %v524 = vadd.f32 %v523, %v211
          %v525 = vadd.f32 %v524, %v212
          %v526 = vadd.f32 %v525, %v213
          %v527 = vadd.f32 %v526, %v214
          %v528 = vadd.f32 %v527, %v215
          %v529 = vadd.f32 %v528, %v216
          %v530 = vadd.f32 %v529, %v217
          %v531 = vadd.f32 %v530, %v218
          %v532 = vadd.f32 %v531, %v219
          %v533 = vadd.f32 %v532, %v220
          %v534 = vadd.f32 %v533, %v221
          %v535 = vadd.f32 %v534, %v222
          %v536 = vadd.f32 %v535, %v223
          %v537 = vadd.f32 %v536, %v224
          %v538 = vadd.f32 %v537, %v225
          %v539 = vadd.f32 %v538, %v226
          %v540 = vadd.f32 %v539, %v227
          %v541 = vadd.f32 %v540, %v228
          %v542 = vadd.f32 %v541, %v229
          %v543 = vadd.f32 %v542, %v230
          %v544 = vadd.f32 %v543, %v231
          %v545 = vadd.f32 %v544, %v232
          %v546 = vadd.f32 %v545, %v233
          %v547 = vadd.f32 %v546, %v234
          %v548 = vadd.f32 %v547, %v235
          %v549 = vadd.f32 %v548, %v236
          %v550 = vadd.f32 %v549, %v237
          %v551 = vadd.f32 %v550, %v238
          %v552 = vadd.f32 %v551, %v239
          %v553 = vadd.f32 %v552, %v240
          %v554 = vadd.f32 %v553, %v241
          %v555 = vadd.f32 %v554, %v242
          %v556 = vadd.f32 %v555, %v243
          %v557 = vadd.f32 %v556, %v244
          %v558 = vadd.f32 %v557, %v245
          %v559 = vadd.f32 %v558, %v246
          %v560 = vadd.f32 %v559, %v247
          %v561 = vadd.f32 %v560, %v248
          %v562 = vadd.f32 %v561, %v249
          %v563 = vadd.f32 %v562, %v250
          %v564 = vadd.f32 %v563, %v251
          %v565 = vadd.f32 %v564, %v252
          %v566 = vadd.f32 %v565, %v253
          %v567 = vadd.f32 %v566, %v254
          %v568 = vadd.f32 %v567, %v255
          %v569 = vadd.f32 %v568, %v256
          %v570 = vadd.f32 %v569, %v257
          %v571 = vadd.f32 %v570, %v258
          %v572 = vadd.f32 %v571, %v259
          %v573 = vadd.f32 %v572, %v260
          %v574 = vadd.f32 %v573, %v261
          %v575 = vadd.f32 %v574, %v262
          %v576 = vadd.f32 %v575, %v263
          %v577 = vadd.f32 %v576, %v264
          %v578 = vadd.f32 %v577, %v265
          %v579 = vadd.f32 %v578, %v266
          %v580 = vadd.f32 %v579, %v267
          %v581 = vadd.f32 %v580, %v268
          %v582 = vadd.f32 %v581, %v269
          %v583 = vadd.f32 %v582, %v270
          %v584 = vadd.f32 %v583, %v271
          %v585 = vadd.f32 %v584, %v272
          %v586 = vadd.f32 %v585, %v273
          %v587 = vadd.f32 %v586, %v274
          %v588 = vadd.f32 %v587, %v275
          %v589 = vadd.f32 %v588, %v276
          %v590 = vadd.f32 %v589, %v277
          %v591 = vadd.f32 %v590, %v278
          %v592 = vadd.f32 %v591, %v279
          %v593 = vadd.f32 %v592, %v280
          %v594 = vadd.f32 %v593, %v281
          %v595 = vadd.f32 %v594, %v282
          %v596 = vadd.f32 %v595, %v283
          %v597 = vadd.f32 %v596, %v284
          %v598 = vadd.f32 %v597, %v285
          %v599 = vadd.f32 %v598, %v286
          %v600 = vadd.f32 %v599, %v287
          %v601 = vadd.f32 %v600, %v288
          %v602 = vadd.f32 %v601, %v289
          %v603 = vadd.f32 %v602, %v290
          %v604 = vadd.f32 %v603, %v291
          %v605 = vadd.f32 %v604, %v292
          %v606 = vadd.f32 %v605, %v293
          %v607 = vadd.f32 %v606, %v294
          %v608 = vadd.f32 %v607, %v295
          %v609 = vadd.f32 %v608, %v296
          %v610 = vadd.f32 %v609, %v297
          %v611 = vadd.f32 %v610, %v298
          %v612 = vadd.f32 %v611, %v299
          %v613 = vadd.f32 %v612, %v300
          %v614 = vadd.f32 %v613, %v301
          %v615 = vadd.f32 %v614, %v302
          %v616 = vadd.f32 %v615, %v303
          %v617 = vadd.f32 %v616, %v304
          %v618 = vadd.f32 %v617, %v305
          %v619 = vadd.f32 %v618, %v306
          %v620 = vadd.f32 %v619, %v307
          %v621 = vadd.f32 %v620, %v308
          %v622 = vadd.f32 %v621, %v309
          %v623 = vadd.f32 %v622, %v310
          %v624 = vadd.f32 %v623, %v311
          %v625 = vadd.f32 %v624, %v312
          %v626 = vadd.f32 %v625, %v313
          %v627 = vadd.f32 %v626, %v314
          %v628 = vadd.f32 %v627, %v315
          %v629 = vadd.f32 %v628, %v316
          %v630 = vadd.f32 %v629, %v317
          %v631 = vadd.f32 %v630, %v318
          %v632 = vadd.f32 %v631, %v319
          %v633 = vadd.f32 %v632, %v320
          %v634 = vadd.f32 %v633, %v321
          %v635 = vadd.f32 %v634, %v322
          %v636 = vadd.f32 %v635, %v323
          %v637 = vadd.f32 %v636, %v324
          %v638 = vadd.f32 %v637, %v325
          %v639 = vadd.f32 %v638, %v326
          %v640 = vadd.f32 %v639, %v327
          %v641 = vadd.f32 %v640, %v328
          %v642 = vadd.f32 %v641, %v329
          %v643 = vadd.f32 %v642, %v330
          %v644 = vadd.f32 %v643, %v331
          %v645 = vadd.f32 %v644, %v332
          %v646 = vadd.f32 %v645, %v333
          %v647 = vadd.f32 %v646, %v334
          %v648 = vadd.f32 %v647, %v335
          %v649 = vadd.f32 %v648, %v336
          %v650 = vadd.f32 %v649, %v337
          %v651 = vadd.f32 %v650, %v338
          %v652 = vadd.f32 %v651, %v339
          %v653 = vadd.f32 %v652, %v340
          %v654 = vadd.f32 %v653, %v341
          %v655 = vadd.f32 %v654, %v342
          %v656 = vadd.f32 %v655, %v343
          %v657 = vadd.f32 %v656, %v344
          %v658 = vadd.f32 %v657, %v345
          %v659 = vadd.f32 %v658, %v346
          %v660 = vadd.f32 %v659, %v347
          %v661 = vadd.f32 %v660, %v348
          %v662 = vadd.f32 %v661, %v349
          %v663 = vadd.f32 %v662, %v350
          %v664 = vadd.f32 %v663, %v351
          %v665 = vadd.f32 %v664, %v352
          %v666 = vadd.f32 %v665, %v353
          %v667 = vadd.f32 %v666, %v354
          %v668 = vadd.f32 %v667, %v355
          %v669 = vadd.f32 %v668, %v356
          %v670 = vadd.f32 %v669, %v357
          %v671 = vadd.f32 %v670, %v358
          %v672 = vadd.f32 %v671, %v359
          %v673 = vadd.f32 %v672, %v360
          %v674 = vadd.f32 %v673, %v361
          %v675 = vadd.f32 %v674, %v362
          %v676 = vadd.f32 %v675, %v363
          %v677 = vadd.f32 %v676, %v364
          %v678 = vadd.f32 %v677, %v365
          %v679 = vadd.f32 %v678, %v366
          %v680 = vadd.f32 %v679, %v367
          %v681 = vadd.f32 %v680, %v368
          %v682 = vadd.f32 %v681, %v369
          %v683 = vadd.f32 %v682, %v370
          %v684 = vadd.f32 %v683, %v371
          %v685 = vadd.f32 %v684, %v372
          %v686 = vadd.f32 %v685, %v373
          %v687 = vadd.f32 %v686, %v374
          %v688 = vadd.f32 %v687, %v375
          %v689 = vadd.f32 %v688, %v376
          %v690 = vadd.f32 %v689, %v377
          %v691 = vadd.f32 %v690, %v378
          %v692 = vadd.f32 %v691, %v379
          %v693 = vadd.f32 %v692, %v380
          %v694 = vadd.f32 %v693, %v381
          %v695 = vadd.f32 %v694, %v382
          %v696 = vadd.f32 %v695, %v383
          %v697 = vadd.f32 %v696, %v384
          %v698 = vadd.f32 %v697, %v385
          %v699 = vadd.f32 %v698, %v386
          %v700 = vadd.f32 %v699, %v387
          %v701 = vadd.f32 %v700, %v388
          %v702 = vadd.f32 %v701, %v389
          %v703 = vadd.f32 %v702, %v390
          %v704 = vadd.f32 %v703, %v391
          %v705 = vadd.f32 %v704, %v392
          %v706 = vadd.f32 %v705, %v393
          %v707 = vadd.f32 %v706, %v394
          %v708 = vadd.f32 %v707, %v395
          %v709 = vadd.f32 %v708, %v396
          %v710 = vadd.f32 %v709, %v397
          %v711 = vadd.f32 %v710, %v398
          %v712 = vadd.f32 %v711, %v399
          %v713 = vadd.f32 %v712, %v400
          %v714 = vadd.f32 %v713, %v401
          %v715 = vadd.f32 %v714, %v402
          %v716 = vadd.f32 %v715, %v403
          %v717 = vadd.f32 %v716, %v404
          %v718 = vadd.f32 %v717, %v405
          %v719 = vadd.f32 %v718, %v406
          %v720 = vadd.f32 %v719, %v407
          %v721 = vadd.f32 %v720, %v408
          %v722 = vadd.f32 %v721, %v409
          %v723 = vadd.f32 %v722, %v410
          %v724 = vadd.f32 %v723, %v411
          %v725 = vadd.f32 %v724, %v412
          %v726 = vadd.f32 %v725, %v413
          %v727 = vadd.f32 %v726, %v414
          %v728 = vadd.f32 %v727, %v415
          %v729 = vadd.f32 %v728, %v416
          %v730 = vadd.f32 %v729, %v417
          %v731 = vadd.f32 %v730, %v418
          %v732 = vadd.f32 %v731, %v419
          %v733 = vadd.f32 %v732, %v420
          %v734 = vadd.f32 %v733, %v421
          %v735 = vadd.f32 %v734, %v422
          %v736 = vadd.f32 %v735, %v423
          %v737 = vadd.f32 %v736, %v424
          %v738 = vadd.f32 %v737, %v425
          %v739 = vadd.f32 %v738, %v426
          %v740 = vadd.f32 %v739, %v427
          %v741 = vadd.f32 %v740, %v428
          %v742 = vadd.f32 %v741, %v429
          %v743 = vadd.f32 %v742, %v430
          %v744 = vadd.f32 %v743, %v431
          %v745 = vadd.f32 %v744, %v432
          %v746 = vadd.f32 %v745, %v433
          %v747 = vadd.f32 %v746, %v434
          %v748 = vadd.f32 %v747, %v435
          %v749 = vadd.f32 %v748, %v436
          %v750 = vadd.f32 %v749, %v437
          %v751 = vadd.f32 %v750, %v438
          %v752 = vadd.f32 %v751, %v439
          %v753 = vadd.f32 %v752, %v440
          %v754 = vadd.f32 %v753, %v441
          %v755 = vadd.f32 %v754, %v442
          %v756 = vadd.f32 %v755, %v443
          %v757 = vadd.f32 %v756, %v444
          %v758 = vadd.f32 %v757, %v445
          %v759 = vadd.f32 %v758, %v446
          %v760 = vadd.f32 %v759, %v447
          %v761 = vadd.f32 %v760, %v448
          %v762 = vadd.f32 %v761, %v449
          %v763 = vadd.f32 %v762, %v450
          %v764 = vadd.f32 %v763, %v451
          %v765 = vadd.f32 %v764, %v452
          %v766 = vadd.f32 %v765, %v453
          %v767 = vadd.f32 %v766, %v454
          %v768 = vadd.f32 %v767, %v455
          %v769 = vadd.f32 %v768, %v456
          %v770 = vadd.f32 %v769, %v457
          %v771 = vadd.f32 %v770, %v458
          %v772 = vadd.f32 %v771, %v459
          %v773 = vadd.f32 %v772, %v460
          %v774 = vadd.f32 %v773, %v461
          %v775 = vadd.f32 %v774, %v462
          %v776 = vadd.f32 %v775, %v463
          %v777 = vadd.f32 %v776, %v464
          %v778 = vadd.f32 %v777, %v465
          %v779 = vadd.f32 %v778, %v466
          %v780 = vadd.f32 %v779, %v467
          %v781 = vadd.f32 %v780, %v468
          %v782 = vadd.f32 %v781, %v469
          %v783 = vadd.f32 %v782, %v470
          %v784 = vadd.f32 %v783, %v471
          %v785 = vadd.f32 %v784, %v472
          %v786 = vadd.f32 %v473, %v785
          %787 = vst [vmem:[#allocation2] sm:$0xff] %v786
        $region36: #{tpu_custom_call.1} parent=23 // pred_fallthru
          _
        // Predicated region
        $region37: #{tpu_custom_call.1} parent=23 // pred_check
          %p788 = pneg %p151
        $region38: #{tpu_custom_call.1} parent=23 // pred_check_branch
          %790 = sbr.rel (%p788) target = $region40
        $region39: #{tpu_custom_call.1} parent=23 // pred_region
          %s791 = smul.u32 %s23, 2504
          %v792 = vlaneseq
          %v793 = vshrl.u32 %v792, 7
          %v794 = vadd.s32 %v793, 8
          %v795 = vadd.s32 %v793, 16
          %v796 = vadd.s32 %v793, 24
          %v797 = vadd.s32 %v793, 32
          %v798 = vadd.s32 %v793, 40
          %v799 = vadd.s32 %v793, 48
          %v800 = vadd.s32 %v793, 56
          %v801 = vadd.s32 %v793, 64
          %v802 = vadd.s32 %v793, 72
          %v803 = vadd.s32 %v793, 80
          %v804 = vadd.s32 %v793, 88
          %v805 = vadd.s32 %v793, 96
          %v806 = vadd.s32 %v793, 104
          %v807 = vadd.s32 %v793, 112
          %v808 = vadd.s32 %v793, 120
          %v809 = vadd.s32 %v793, 128
          %v810 = vadd.s32 %v793, 136
          %v811 = vadd.s32 %v793, 144
          %v812 = vadd.s32 %v793, 152
          %v813 = vadd.s32 %v793, 160
          %v814 = vadd.s32 %v793, 168
          %v815 = vadd.s32 %v793, 176
          %v816 = vadd.s32 %v793, 184
          %v817 = vadd.s32 %v793, 192
          %v818 = vadd.s32 %v793, 200
          %v819 = vadd.s32 %v793, 208
          %v820 = vadd.s32 %v793, 216
          %v821 = vadd.s32 %v793, 224
          %v822 = vadd.s32 %v793, 232
          %v823 = vadd.s32 %v793, 240
          %v824 = vadd.s32 %v793, 248
          %v825 = vadd.s32 %v793, 256
          %v826 = vadd.s32 %v793, 264
          %v827 = vadd.s32 %v793, 272
          %v828 = vadd.s32 %v793, 280
          %v829 = vadd.s32 %v793, 288
          %v830 = vadd.s32 %v793, 296
          %v831 = vadd.s32 %v793, 304
          %v832 = vadd.s32 %v793, 312
          %v833 = vadd.s32 %v793, 320
          %v834 = vadd.s32 %v793, 328
          %v835 = vadd.s32 %v793, 336
          %v836 = vadd.s32 %v793, 344
          %v837 = vadd.s32 %v793, 352
          %v838 = vadd.s32 %v793, 360
          %v839 = vadd.s32 %v793, 368
          %v840 = vadd.s32 %v793, 376
          %v841 = vadd.s32 %v793, 384
          %v842 = vadd.s32 %v793, 392
          %v843 = vadd.s32 %v793, 400
          %v844 = vadd.s32 %v793, 408
          %v845 = vadd.s32 %v793, 416
          %v846 = vadd.s32 %v793, 424
          %v847 = vadd.s32 %v793, 432
          %v848 = vadd.s32 %v793, 440
          %v849 = vadd.s32 %v793, 448
          %v850 = vadd.s32 %v793, 456
          %v851 = vadd.s32 %v793, 464
          %v852 = vadd.s32 %v793, 472
          %v853 = vadd.s32 %v793, 480
          %v854 = vadd.s32 %v793, 488
          %v855 = vadd.s32 %v793, 496
          %v856 = vadd.s32 %v793, 504
          %v857 = vadd.s32 %v793, 512
          %v858 = vadd.s32 %v793, 520
          %v859 = vadd.s32 %v793, 528
          %v860 = vadd.s32 %v793, 536
          %v861 = vadd.s32 %v793, 544
          %v862 = vadd.s32 %v793, 552
          %v863 = vadd.s32 %v793, 560
          %v864 = vadd.s32 %v793, 568
          %v865 = vadd.s32 %v793, 576
          %v866 = vadd.s32 %v793, 584
          %v867 = vadd.s32 %v793, 592
          %v868 = vadd.s32 %v793, 600
          %v869 = vadd.s32 %v793, 608
          %v870 = vadd.s32 %v793, 616
          %v871 = vadd.s32 %v793, 624
          %v872 = vadd.s32 %v793, 632
          %v873 = vadd.s32 %v793, 640
          %v874 = vadd.s32 %v793, 648
          %v875 = vadd.s32 %v793, 656
          %v876 = vadd.s32 %v793, 664
          %v877 = vadd.s32 %v793, 672
          %v878 = vadd.s32 %v793, 680
          %v879 = vadd.s32 %v793, 688
          %v880 = vadd.s32 %v793, 696
          %v881 = vadd.s32 %v793, 704
          %v882 = vadd.s32 %v793, 712
          %v883 = vadd.s32 %v793, 720
          %v884 = vadd.s32 %v793, 728
          %v885 = vadd.s32 %v793, 736
          %v886 = vadd.s32 %v793, 744
          %v887 = vadd.s32 %v793, 752
          %v888 = vadd.s32 %v793, 760
          %v889 = vadd.s32 %v793, 768
          %v890 = vadd.s32 %v793, 776
          %v891 = vadd.s32 %v793, 784
          %v892 = vadd.s32 %v793, 792
          %v893 = vadd.s32 %v793, 800
          %v894 = vadd.s32 %v793, 808
          %v895 = vadd.s32 %v793, 816
          %v896 = vadd.s32 %v793, 824
          %v897 = vadd.s32 %v793, 832
          %v898 = vadd.s32 %v793, 840
          %v899 = vadd.s32 %v793, 848
          %v900 = vadd.s32 %v793, 856
          %v901 = vadd.s32 %v793, 864
          %v902 = vadd.s32 %v793, 872
          %v903 = vadd.s32 %v793, 880
          %v904 = vadd.s32 %v793, 888
          %v905 = vadd.s32 %v793, 896
          %v906 = vadd.s32 %v793, 904
          %v907 = vadd.s32 %v793, 912
          %v908 = vadd.s32 %v793, 920
          %v909 = vadd.s32 %v793, 928
          %v910 = vadd.s32 %v793, 936
          %v911 = vadd.s32 %v793, 944
          %v912 = vadd.s32 %v793, 952
          %v913 = vadd.s32 %v793, 960
          %v914 = vadd.s32 %v793, 968
          %v915 = vadd.s32 %v793, 976
          %v916 = vadd.s32 %v793, 984
          %v917 = vadd.s32 %v793, 992
          %v918 = vadd.s32 %v793, 1000
          %v919 = vadd.s32 %v793, 1008
          %v920 = vadd.s32 %v793, 1016
          %v921 = vadd.s32 %v793, 1024
          %v922 = vadd.s32 %v793, 1032
          %v923 = vadd.s32 %v793, 1040
          %v924 = vadd.s32 %v793, 1048
          %v925 = vadd.s32 %v793, 1056
          %v926 = vadd.s32 %v793, 1064
          %v927 = vadd.s32 %v793, 1072
          %v928 = vadd.s32 %v793, 1080
          %v929 = vadd.s32 %v793, 1088
          %v930 = vadd.s32 %v793, 1096
          %v931 = vadd.s32 %v793, 1104
          %v932 = vadd.s32 %v793, 1112
          %v933 = vadd.s32 %v793, 1120
          %v934 = vadd.s32 %v793, 1128
          %v935 = vadd.s32 %v793, 1136
          %v936 = vadd.s32 %v793, 1144
          %v937 = vadd.s32 %v793, 1152
          %v938 = vadd.s32 %v793, 1160
          %v939 = vadd.s32 %v793, 1168
          %v940 = vadd.s32 %v793, 1176
          %v941 = vadd.s32 %v793, 1184
          %v942 = vadd.s32 %v793, 1192
          %v943 = vadd.s32 %v793, 1200
          %v944 = vadd.s32 %v793, 1208
          %v945 = vadd.s32 %v793, 1216
          %v946 = vadd.s32 %v793, 1224
          %v947 = vadd.s32 %v793, 1232
          %v948 = vadd.s32 %v793, 1240
          %v949 = vadd.s32 %v793, 1248
          %v950 = vadd.s32 %v793, 1256
          %v951 = vadd.s32 %v793, 1264
          %v952 = vadd.s32 %v793, 1272
          %v953 = vadd.s32 %v793, 1280
          %v954 = vadd.s32 %v793, 1288
          %v955 = vadd.s32 %v793, 1296
          %v956 = vadd.s32 %v793, 1304
          %v957 = vadd.s32 %v793, 1312
          %v958 = vadd.s32 %v793, 1320
          %v959 = vadd.s32 %v793, 1328
          %v960 = vadd.s32 %v793, 1336
          %v961 = vadd.s32 %v793, 1344
          %v962 = vadd.s32 %v793, 1352
          %v963 = vadd.s32 %v793, 1360
          %v964 = vadd.s32 %v793, 1368
          %v965 = vadd.s32 %v793, 1376
          %v966 = vadd.s32 %v793, 1384
          %v967 = vadd.s32 %v793, 1392
          %v968 = vadd.s32 %v793, 1400
          %v969 = vadd.s32 %v793, 1408
          %v970 = vadd.s32 %v793, 1416
          %v971 = vadd.s32 %v793, 1424
          %v972 = vadd.s32 %v793, 1432
          %v973 = vadd.s32 %v793, 1440
          %v974 = vadd.s32 %v793, 1448
          %v975 = vadd.s32 %v793, 1456
          %v976 = vadd.s32 %v793, 1464
          %v977 = vadd.s32 %v793, 1472
          %v978 = vadd.s32 %v793, 1480
          %v979 = vadd.s32 %v793, 1488
          %v980 = vadd.s32 %v793, 1496
          %v981 = vadd.s32 %v793, 1504
          %v982 = vadd.s32 %v793, 1512
          %v983 = vadd.s32 %v793, 1520
          %v984 = vadd.s32 %v793, 1528
          %v985 = vadd.s32 %v793, 1536
          %v986 = vadd.s32 %v793, 1544
          %v987 = vadd.s32 %v793, 1552
          %v988 = vadd.s32 %v793, 1560
          %v989 = vadd.s32 %v793, 1568
          %v990 = vadd.s32 %v793, 1576
          %v991 = vadd.s32 %v793, 1584
          %v992 = vadd.s32 %v793, 1592
          %v993 = vadd.s32 %v793, 1600
          %v994 = vadd.s32 %v793, 1608
          %v995 = vadd.s32 %v793, 1616
          %v996 = vadd.s32 %v793, 1624
          %v997 = vadd.s32 %v793, 1632
          %v998 = vadd.s32 %v793, 1640
          %v999 = vadd.s32 %v793, 1648
          %v1000 = vadd.s32 %v793, 1656
          %v1001 = vadd.s32 %v793, 1664
          %v1002 = vadd.s32 %v793, 1672
          %v1003 = vadd.s32 %v793, 1680
          %v1004 = vadd.s32 %v793, 1688
          %v1005 = vadd.s32 %v793, 1696
          %v1006 = vadd.s32 %v793, 1704
          %v1007 = vadd.s32 %v793, 1712
          %v1008 = vadd.s32 %v793, 1720
          %v1009 = vadd.s32 %v793, 1728
          %v1010 = vadd.s32 %v793, 1736
          %v1011 = vadd.s32 %v793, 1744
          %v1012 = vadd.s32 %v793, 1752
          %v1013 = vadd.s32 %v793, 1760
          %v1014 = vadd.s32 %v793, 1768
          %v1015 = vadd.s32 %v793, 1776
          %v1016 = vadd.s32 %v793, 1784
          %v1017 = vadd.s32 %v793, 1792
          %v1018 = vadd.s32 %v793, 1800
          %v1019 = vadd.s32 %v793, 1808
          %v1020 = vadd.s32 %v793, 1816
          %v1021 = vadd.s32 %v793, 1824
          %v1022 = vadd.s32 %v793, 1832
          %v1023 = vadd.s32 %v793, 1840
          %v1024 = vadd.s32 %v793, 1848
          %v1025 = vadd.s32 %v793, 1856
          %v1026 = vadd.s32 %v793, 1864
          %v1027 = vadd.s32 %v793, 1872
          %v1028 = vadd.s32 %v793, 1880
          %v1029 = vadd.s32 %v793, 1888
          %v1030 = vadd.s32 %v793, 1896
          %v1031 = vadd.s32 %v793, 1904
          %v1032 = vadd.s32 %v793, 1912
          %v1033 = vadd.s32 %v793, 1920
          %v1034 = vadd.s32 %v793, 1928
          %v1035 = vadd.s32 %v793, 1936
          %v1036 = vadd.s32 %v793, 1944
          %v1037 = vadd.s32 %v793, 1952
          %v1038 = vadd.s32 %v793, 1960
          %v1039 = vadd.s32 %v793, 1968
          %v1040 = vadd.s32 %v793, 1976
          %v1041 = vadd.s32 %v793, 1984
          %v1042 = vadd.s32 %v793, 1992
          %v1043 = vadd.s32 %v793, 2000
          %v1044 = vadd.s32 %v793, 2008
          %v1045 = vadd.s32 %v793, 2016
          %v1046 = vadd.s32 %v793, 2024
          %v1047 = vadd.s32 %v793, 2032
          %v1048 = vadd.s32 %v793, 2040
          %v1049 = vadd.s32 %v793, 2048
          %v1050 = vadd.s32 %v793, 2056
          %v1051 = vadd.s32 %v793, 2064
          %v1052 = vadd.s32 %v793, 2072
          %v1053 = vadd.s32 %v793, 2080
          %v1054 = vadd.s32 %v793, 2088
          %v1055 = vadd.s32 %v793, 2096
          %v1056 = vadd.s32 %v793, 2104
          %v1057 = vadd.s32 %v793, 2112
          %v1058 = vadd.s32 %v793, 2120
          %v1059 = vadd.s32 %v793, 2128
          %v1060 = vadd.s32 %v793, 2136
          %v1061 = vadd.s32 %v793, 2144
          %v1062 = vadd.s32 %v793, 2152
          %v1063 = vadd.s32 %v793, 2160
          %v1064 = vadd.s32 %v793, 2168
          %v1065 = vadd.s32 %v793, 2176
          %v1066 = vadd.s32 %v793, 2184
          %v1067 = vadd.s32 %v793, 2192
          %v1068 = vadd.s32 %v793, 2200
          %v1069 = vadd.s32 %v793, 2208
          %v1070 = vadd.s32 %v793, 2216
          %v1071 = vadd.s32 %v793, 2224
          %v1072 = vadd.s32 %v793, 2232
          %v1073 = vadd.s32 %v793, 2240
          %v1074 = vadd.s32 %v793, 2248
          %v1075 = vadd.s32 %v793, 2256
          %v1076 = vadd.s32 %v793, 2264
          %v1077 = vadd.s32 %v793, 2272
          %v1078 = vadd.s32 %v793, 2280
          %v1079 = vadd.s32 %v793, 2288
          %v1080 = vadd.s32 %v793, 2296
          %v1081 = vadd.s32 %v793, 2304
          %v1082 = vadd.s32 %v793, 2312
          %v1083 = vadd.s32 %v793, 2320
          %v1084 = vadd.s32 %v793, 2328
          %v1085 = vadd.s32 %v793, 2336
          %v1086 = vadd.s32 %v793, 2344
          %v1087 = vadd.s32 %v793, 2352
          %v1088 = vadd.s32 %v793, 2360
          %v1089 = vadd.s32 %v793, 2368
          %v1090 = vadd.s32 %v793, 2376
          %v1091 = vadd.s32 %v793, 2384
          %v1092 = vadd.s32 %v793, 2392
          %v1093 = vadd.s32 %v793, 2400
          %v1094 = vadd.s32 %v793, 2408
          %v1095 = vadd.s32 %v793, 2416
          %v1096 = vadd.s32 %v793, 2424
          %v1097 = vadd.s32 %v793, 2432
          %v1098 = vadd.s32 %v793, 2440
          %v1099 = vadd.s32 %v793, 2448
          %v1100 = vadd.s32 %v793, 2456
          %v1101 = vadd.s32 %v793, 2464
          %v1102 = vadd.s32 %v793, 2472
          %v1103 = vadd.s32 %v793, 2480
          %v1104 = vadd.s32 %v793, 2488
          %v1105 = vadd.s32 %v793, 2496
          %v1106 = vstv %s791
          %v1107 = vadd.s32 %v1106, %v793
          %v1108 = vadd.s32 %v1106, %v794
          %v1109 = vadd.s32 %v1106, %v795
          %v1110 = vadd.s32 %v1106, %v796
          %v1111 = vadd.s32 %v1106, %v797
          %v1112 = vadd.s32 %v1106, %v798
          %v1113 = vadd.s32 %v1106, %v799
          %v1114 = vadd.s32 %v1106, %v800
          %v1115 = vadd.s32 %v1106, %v801
          %v1116 = vadd.s32 %v1106, %v802
          %v1117 = vadd.s32 %v1106, %v803
          %v1118 = vadd.s32 %v1106, %v804
          %v1119 = vadd.s32 %v1106, %v805
          %v1120 = vadd.s32 %v1106, %v806
          %v1121 = vadd.s32 %v1106, %v807
          %v1122 = vadd.s32 %v1106, %v808
          %v1123 = vadd.s32 %v1106, %v809
          %v1124 = vadd.s32 %v1106, %v810
          %v1125 = vadd.s32 %v1106, %v811
          %v1126 = vadd.s32 %v1106, %v812
          %v1127 = vadd.s32 %v1106, %v813
          %v1128 = vadd.s32 %v1106, %v814
          %v1129 = vadd.s32 %v1106, %v815
          %v1130 = vadd.s32 %v1106, %v816
          %v1131 = vadd.s32 %v1106, %v817
          %v1132 = vadd.s32 %v1106, %v818
          %v1133 = vadd.s32 %v1106, %v819
          %v1134 = vadd.s32 %v1106, %v820
          %v1135 = vadd.s32 %v1106, %v821
          %v1136 = vadd.s32 %v1106, %v822
          %v1137 = vadd.s32 %v1106, %v823
          %v1138 = vadd.s32 %v1106, %v824
          %v1139 = vadd.s32 %v1106, %v825
          %v1140 = vadd.s32 %v1106, %v826
          %v1141 = vadd.s32 %v1106, %v827
          %v1142 = vadd.s32 %v1106, %v828
          %v1143 = vadd.s32 %v1106, %v829
          %v1144 = vadd.s32 %v1106, %v830
          %v1145 = vadd.s32 %v1106, %v831
          %v1146 = vadd.s32 %v1106, %v832
          %v1147 = vadd.s32 %v1106, %v833
          %v1148 = vadd.s32 %v1106, %v834
          %v1149 = vadd.s32 %v1106, %v835
          %v1150 = vadd.s32 %v1106, %v836
          %v1151 = vadd.s32 %v1106, %v837
          %v1152 = vadd.s32 %v1106, %v838
          %v1153 = vadd.s32 %v1106, %v839
          %v1154 = vadd.s32 %v1106, %v840
          %v1155 = vadd.s32 %v1106, %v841
          %v1156 = vadd.s32 %v1106, %v842
          %v1157 = vadd.s32 %v1106, %v843
          %v1158 = vadd.s32 %v1106, %v844
          %v1159 = vadd.s32 %v1106, %v845
          %v1160 = vadd.s32 %v1106, %v846
          %v1161 = vadd.s32 %v1106, %v847
          %v1162 = vadd.s32 %v1106, %v848
          %v1163 = vadd.s32 %v1106, %v849
          %v1164 = vadd.s32 %v1106, %v850
          %v1165 = vadd.s32 %v1106, %v851
          %v1166 = vadd.s32 %v1106, %v852
          %v1167 = vadd.s32 %v1106, %v853
          %v1168 = vadd.s32 %v1106, %v854
          %v1169 = vadd.s32 %v1106, %v855
          %v1170 = vadd.s32 %v1106, %v856
          %v1171 = vadd.s32 %v1106, %v857
          %v1172 = vadd.s32 %v1106, %v858
          %v1173 = vadd.s32 %v1106, %v859
          %v1174 = vadd.s32 %v1106, %v860
          %v1175 = vadd.s32 %v1106, %v861
          %v1176 = vadd.s32 %v1106, %v862
          %v1177 = vadd.s32 %v1106, %v863
          %v1178 = vadd.s32 %v1106, %v864
          %v1179 = vadd.s32 %v1106, %v865
          %v1180 = vadd.s32 %v1106, %v866
          %v1181 = vadd.s32 %v1106, %v867
          %v1182 = vadd.s32 %v1106, %v868
          %v1183 = vadd.s32 %v1106, %v869
          %v1184 = vadd.s32 %v1106, %v870
          %v1185 = vadd.s32 %v1106, %v871
          %v1186 = vadd.s32 %v1106, %v872
          %v1187 = vadd.s32 %v1106, %v873
          %v1188 = vadd.s32 %v1106, %v874
          %v1189 = vadd.s32 %v1106, %v875
          %v1190 = vadd.s32 %v1106, %v876
          %v1191 = vadd.s32 %v1106, %v877
          %v1192 = vadd.s32 %v1106, %v878
          %v1193 = vadd.s32 %v1106, %v879
          %v1194 = vadd.s32 %v1106, %v880
          %v1195 = vadd.s32 %v1106, %v881
          %v1196 = vadd.s32 %v1106, %v882
          %v1197 = vadd.s32 %v1106, %v883
          %v1198 = vadd.s32 %v1106, %v884
          %v1199 = vadd.s32 %v1106, %v885
          %v1200 = vadd.s32 %v1106, %v886
          %v1201 = vadd.s32 %v1106, %v887
          %v1202 = vadd.s32 %v1106, %v888
          %v1203 = vadd.s32 %v1106, %v889
          %v1204 = vadd.s32 %v1106, %v890
          %v1205 = vadd.s32 %v1106, %v891
          %v1206 = vadd.s32 %v1106, %v892
          %v1207 = vadd.s32 %v1106, %v893
          %v1208 = vadd.s32 %v1106, %v894
          %v1209 = vadd.s32 %v1106, %v895
          %v1210 = vadd.s32 %v1106, %v896
          %v1211 = vadd.s32 %v1106, %v897
          %v1212 = vadd.s32 %v1106, %v898
          %v1213 = vadd.s32 %v1106, %v899
          %v1214 = vadd.s32 %v1106, %v900
          %v1215 = vadd.s32 %v1106, %v901
          %v1216 = vadd.s32 %v1106, %v902
          %v1217 = vadd.s32 %v1106, %v903
          %v1218 = vadd.s32 %v1106, %v904
          %v1219 = vadd.s32 %v1106, %v905
          %v1220 = vadd.s32 %v1106, %v906
          %v1221 = vadd.s32 %v1106, %v907
          %v1222 = vadd.s32 %v1106, %v908
          %v1223 = vadd.s32 %v1106, %v909
          %v1224 = vadd.s32 %v1106, %v910
          %v1225 = vadd.s32 %v1106, %v911
          %v1226 = vadd.s32 %v1106, %v912
          %v1227 = vadd.s32 %v1106, %v913
          %v1228 = vadd.s32 %v1106, %v914
          %v1229 = vadd.s32 %v1106, %v915
          %v1230 = vadd.s32 %v1106, %v916
          %v1231 = vadd.s32 %v1106, %v917
          %v1232 = vadd.s32 %v1106, %v918
          %v1233 = vadd.s32 %v1106, %v919
          %v1234 = vadd.s32 %v1106, %v920
          %v1235 = vadd.s32 %v1106, %v921
          %v1236 = vadd.s32 %v1106, %v922
          %v1237 = vadd.s32 %v1106, %v923
          %v1238 = vadd.s32 %v1106, %v924
          %v1239 = vadd.s32 %v1106, %v925
          %v1240 = vadd.s32 %v1106, %v926
          %v1241 = vadd.s32 %v1106, %v927
          %v1242 = vadd.s32 %v1106, %v928
          %v1243 = vadd.s32 %v1106, %v929
          %v1244 = vadd.s32 %v1106, %v930
          %v1245 = vadd.s32 %v1106, %v931
          %v1246 = vadd.s32 %v1106, %v932
          %v1247 = vadd.s32 %v1106, %v933
          %v1248 = vadd.s32 %v1106, %v934
          %v1249 = vadd.s32 %v1106, %v935
          %v1250 = vadd.s32 %v1106, %v936
          %v1251 = vadd.s32 %v1106, %v937
          %v1252 = vadd.s32 %v1106, %v938
          %v1253 = vadd.s32 %v1106, %v939
          %v1254 = vadd.s32 %v1106, %v940
          %v1255 = vadd.s32 %v1106, %v941
          %v1256 = vadd.s32 %v1106, %v942
          %v1257 = vadd.s32 %v1106, %v943
          %v1258 = vadd.s32 %v1106, %v944
          %v1259 = vadd.s32 %v1106, %v945
          %v1260 = vadd.s32 %v1106, %v946
          %v1261 = vadd.s32 %v1106, %v947
          %v1262 = vadd.s32 %v1106, %v948
          %v1263 = vadd.s32 %v1106, %v949
          %v1264 = vadd.s32 %v1106, %v950
          %v1265 = vadd.s32 %v1106, %v951
          %v1266 = vadd.s32 %v1106, %v952
          %v1267 = vadd.s32 %v1106, %v953
          %v1268 = vadd.s32 %v1106, %v954
          %v1269 = vadd.s32 %v1106, %v955
          %v1270 = vadd.s32 %v1106, %v956
          %v1271 = vadd.s32 %v1106, %v957
          %v1272 = vadd.s32 %v1106, %v958
          %v1273 = vadd.s32 %v1106, %v959
          %v1274 = vadd.s32 %v1106, %v960
          %v1275 = vadd.s32 %v1106, %v961
          %v1276 = vadd.s32 %v1106, %v962
          %v1277 = vadd.s32 %v1106, %v963
          %v1278 = vadd.s32 %v1106, %v964
          %v1279 = vadd.s32 %v1106, %v965
          %v1280 = vadd.s32 %v1106, %v966
          %v1281 = vadd.s32 %v1106, %v967
          %v1282 = vadd.s32 %v1106, %v968
          %v1283 = vadd.s32 %v1106, %v969
          %v1284 = vadd.s32 %v1106, %v970
          %v1285 = vadd.s32 %v1106, %v971
          %v1286 = vadd.s32 %v1106, %v972
          %v1287 = vadd.s32 %v1106, %v973
          %v1288 = vadd.s32 %v1106, %v974
          %v1289 = vadd.s32 %v1106, %v975
          %v1290 = vadd.s32 %v1106, %v976
          %v1291 = vadd.s32 %v1106, %v977
          %v1292 = vadd.s32 %v1106, %v978
          %v1293 = vadd.s32 %v1106, %v979
          %v1294 = vadd.s32 %v1106, %v980
          %v1295 = vadd.s32 %v1106, %v981
          %v1296 = vadd.s32 %v1106, %v982
          %v1297 = vadd.s32 %v1106, %v983
          %v1298 = vadd.s32 %v1106, %v984
          %v1299 = vadd.s32 %v1106, %v985
          %v1300 = vadd.s32 %v1106, %v986
          %v1301 = vadd.s32 %v1106, %v987
          %v1302 = vadd.s32 %v1106, %v988
          %v1303 = vadd.s32 %v1106, %v989
          %v1304 = vadd.s32 %v1106, %v990
          %v1305 = vadd.s32 %v1106, %v991
          %v1306 = vadd.s32 %v1106, %v992
          %v1307 = vadd.s32 %v1106, %v993
          %v1308 = vadd.s32 %v1106, %v994
          %v1309 = vadd.s32 %v1106, %v995
          %v1310 = vadd.s32 %v1106, %v996
          %v1311 = vadd.s32 %v1106, %v997
          %v1312 = vadd.s32 %v1106, %v998
          %v1313 = vadd.s32 %v1106, %v999
          %v1314 = vadd.s32 %v1106, %v1000
          %v1315 = vadd.s32 %v1106, %v1001
          %v1316 = vadd.s32 %v1106, %v1002
          %v1317 = vadd.s32 %v1106, %v1003
          %v1318 = vadd.s32 %v1106, %v1004
          %v1319 = vadd.s32 %v1106, %v1005
          %v1320 = vadd.s32 %v1106, %v1006
          %v1321 = vadd.s32 %v1106, %v1007
          %v1322 = vadd.s32 %v1106, %v1008
          %v1323 = vadd.s32 %v1106, %v1009
          %v1324 = vadd.s32 %v1106, %v1010
          %v1325 = vadd.s32 %v1106, %v1011
          %v1326 = vadd.s32 %v1106, %v1012
          %v1327 = vadd.s32 %v1106, %v1013
          %v1328 = vadd.s32 %v1106, %v1014
          %v1329 = vadd.s32 %v1106, %v1015
          %v1330 = vadd.s32 %v1106, %v1016
          %v1331 = vadd.s32 %v1106, %v1017
          %v1332 = vadd.s32 %v1106, %v1018
          %v1333 = vadd.s32 %v1106, %v1019
          %v1334 = vadd.s32 %v1106, %v1020
          %v1335 = vadd.s32 %v1106, %v1021
          %v1336 = vadd.s32 %v1106, %v1022
          %v1337 = vadd.s32 %v1106, %v1023
          %v1338 = vadd.s32 %v1106, %v1024
          %v1339 = vadd.s32 %v1106, %v1025
          %v1340 = vadd.s32 %v1106, %v1026
          %v1341 = vadd.s32 %v1106, %v1027
          %v1342 = vadd.s32 %v1106, %v1028
          %v1343 = vadd.s32 %v1106, %v1029
          %v1344 = vadd.s32 %v1106, %v1030
          %v1345 = vadd.s32 %v1106, %v1031
          %v1346 = vadd.s32 %v1106, %v1032
          %v1347 = vadd.s32 %v1106, %v1033
          %v1348 = vadd.s32 %v1106, %v1034
          %v1349 = vadd.s32 %v1106, %v1035
          %v1350 = vadd.s32 %v1106, %v1036
          %v1351 = vadd.s32 %v1106, %v1037
          %v1352 = vadd.s32 %v1106, %v1038
          %v1353 = vadd.s32 %v1106, %v1039
          %v1354 = vadd.s32 %v1106, %v1040
          %v1355 = vadd.s32 %v1106, %v1041
          %v1356 = vadd.s32 %v1106, %v1042
          %v1357 = vadd.s32 %v1106, %v1043
          %v1358 = vadd.s32 %v1106, %v1044
          %v1359 = vadd.s32 %v1106, %v1045
          %v1360 = vadd.s32 %v1106, %v1046
          %v1361 = vadd.s32 %v1106, %v1047
          %v1362 = vadd.s32 %v1106, %v1048
          %v1363 = vadd.s32 %v1106, %v1049
          %v1364 = vadd.s32 %v1106, %v1050
          %v1365 = vadd.s32 %v1106, %v1051
          %v1366 = vadd.s32 %v1106, %v1052
          %v1367 = vadd.s32 %v1106, %v1053
          %v1368 = vadd.s32 %v1106, %v1054
          %v1369 = vadd.s32 %v1106, %v1055
          %v1370 = vadd.s32 %v1106, %v1056
          %v1371 = vadd.s32 %v1106, %v1057
          %v1372 = vadd.s32 %v1106, %v1058
          %v1373 = vadd.s32 %v1106, %v1059
          %v1374 = vadd.s32 %v1106, %v1060
          %v1375 = vadd.s32 %v1106, %v1061
          %v1376 = vadd.s32 %v1106, %v1062
          %v1377 = vadd.s32 %v1106, %v1063
          %v1378 = vadd.s32 %v1106, %v1064
          %v1379 = vadd.s32 %v1106, %v1065
          %v1380 = vadd.s32 %v1106, %v1066
          %v1381 = vadd.s32 %v1106, %v1067
          %v1382 = vadd.s32 %v1106, %v1068
          %v1383 = vadd.s32 %v1106, %v1069
          %v1384 = vadd.s32 %v1106, %v1070
          %v1385 = vadd.s32 %v1106, %v1071
          %v1386 = vadd.s32 %v1106, %v1072
          %v1387 = vadd.s32 %v1106, %v1073
          %v1388 = vadd.s32 %v1106, %v1074
          %v1389 = vadd.s32 %v1106, %v1075
          %v1390 = vadd.s32 %v1106, %v1076
          %v1391 = vadd.s32 %v1106, %v1077
          %v1392 = vadd.s32 %v1106, %v1078
          %v1393 = vadd.s32 %v1106, %v1079
          %v1394 = vadd.s32 %v1106, %v1080
          %v1395 = vadd.s32 %v1106, %v1081
          %v1396 = vadd.s32 %v1106, %v1082
          %v1397 = vadd.s32 %v1106, %v1083
          %v1398 = vadd.s32 %v1106, %v1084
          %v1399 = vadd.s32 %v1106, %v1085
          %v1400 = vadd.s32 %v1106, %v1086
          %v1401 = vadd.s32 %v1106, %v1087
          %v1402 = vadd.s32 %v1106, %v1088
          %v1403 = vadd.s32 %v1106, %v1089
          %v1404 = vadd.s32 %v1106, %v1090
          %v1405 = vadd.s32 %v1106, %v1091
          %v1406 = vadd.s32 %v1106, %v1092
          %v1407 = vadd.s32 %v1106, %v1093
          %v1408 = vadd.s32 %v1106, %v1094
          %v1409 = vadd.s32 %v1106, %v1095
          %v1410 = vadd.s32 %v1106, %v1096
          %v1411 = vadd.s32 %v1106, %v1097
          %v1412 = vadd.s32 %v1106, %v1098
          %v1413 = vadd.s32 %v1106, %v1099
          %v1414 = vadd.s32 %v1106, %v1100
          %v1415 = vadd.s32 %v1106, %v1101
          %v1416 = vadd.s32 %v1106, %v1102
          %v1417 = vadd.s32 %v1106, %v1103
          %v1418 = vadd.s32 %v1106, %v1104
          %v1419 = vadd.s32 %v1106, %v1105
          %vm1420 = vcmp.lt.s32.totalorder %v1107, 2500
          %vm1421 = vcmp.lt.s32.totalorder %v1108, 2500
          %vm1422 = vcmp.lt.s32.totalorder %v1109, 2500
          %vm1423 = vcmp.lt.s32.totalorder %v1110, 2500
          %vm1424 = vcmp.lt.s32.totalorder %v1111, 2500
          %vm1425 = vcmp.lt.s32.totalorder %v1112, 2500
          %vm1426 = vcmp.lt.s32.totalorder %v1113, 2500
          %vm1427 = vcmp.lt.s32.totalorder %v1114, 2500
          %vm1428 = vcmp.lt.s32.totalorder %v1115, 2500
          %vm1429 = vcmp.lt.s32.totalorder %v1116, 2500
          %vm1430 = vcmp.lt.s32.totalorder %v1117, 2500
          %vm1431 = vcmp.lt.s32.totalorder %v1118, 2500
          %vm1432 = vcmp.lt.s32.totalorder %v1119, 2500
          %vm1433 = vcmp.lt.s32.totalorder %v1120, 2500
          %vm1434 = vcmp.lt.s32.totalorder %v1121, 2500
          %vm1435 = vcmp.lt.s32.totalorder %v1122, 2500
          %vm1436 = vcmp.lt.s32.totalorder %v1123, 2500
          %vm1437 = vcmp.lt.s32.totalorder %v1124, 2500
          %vm1438 = vcmp.lt.s32.totalorder %v1125, 2500
          %vm1439 = vcmp.lt.s32.totalorder %v1126, 2500
          %vm1440 = vcmp.lt.s32.totalorder %v1127, 2500
          %vm1441 = vcmp.lt.s32.totalorder %v1128, 2500
          %vm1442 = vcmp.lt.s32.totalorder %v1129, 2500
          %vm1443 = vcmp.lt.s32.totalorder %v1130, 2500
          %vm1444 = vcmp.lt.s32.totalorder %v1131, 2500
          %vm1445 = vcmp.lt.s32.totalorder %v1132, 2500
          %vm1446 = vcmp.lt.s32.totalorder %v1133, 2500
          %vm1447 = vcmp.lt.s32.totalorder %v1134, 2500
          %vm1448 = vcmp.lt.s32.totalorder %v1135, 2500
          %vm1449 = vcmp.lt.s32.totalorder %v1136, 2500
          %vm1450 = vcmp.lt.s32.totalorder %v1137, 2500
          %vm1451 = vcmp.lt.s32.totalorder %v1138, 2500
          %vm1452 = vcmp.lt.s32.totalorder %v1139, 2500
          %vm1453 = vcmp.lt.s32.totalorder %v1140, 2500
          %vm1454 = vcmp.lt.s32.totalorder %v1141, 2500
          %vm1455 = vcmp.lt.s32.totalorder %v1142, 2500
          %vm1456 = vcmp.lt.s32.totalorder %v1143, 2500
          %vm1457 = vcmp.lt.s32.totalorder %v1144, 2500
          %vm1458 = vcmp.lt.s32.totalorder %v1145, 2500
          %vm1459 = vcmp.lt.s32.totalorder %v1146, 2500
          %vm1460 = vcmp.lt.s32.totalorder %v1147, 2500
          %vm1461 = vcmp.lt.s32.totalorder %v1148, 2500
          %vm1462 = vcmp.lt.s32.totalorder %v1149, 2500
          %vm1463 = vcmp.lt.s32.totalorder %v1150, 2500
          %vm1464 = vcmp.lt.s32.totalorder %v1151, 2500
          %vm1465 = vcmp.lt.s32.totalorder %v1152, 2500
          %vm1466 = vcmp.lt.s32.totalorder %v1153, 2500
          %vm1467 = vcmp.lt.s32.totalorder %v1154, 2500
          %vm1468 = vcmp.lt.s32.totalorder %v1155, 2500
          %vm1469 = vcmp.lt.s32.totalorder %v1156, 2500
          %vm1470 = vcmp.lt.s32.totalorder %v1157, 2500
          %vm1471 = vcmp.lt.s32.totalorder %v1158, 2500
          %vm1472 = vcmp.lt.s32.totalorder %v1159, 2500
          %vm1473 = vcmp.lt.s32.totalorder %v1160, 2500
          %vm1474 = vcmp.lt.s32.totalorder %v1161, 2500
          %vm1475 = vcmp.lt.s32.totalorder %v1162, 2500
          %vm1476 = vcmp.lt.s32.totalorder %v1163, 2500
          %vm1477 = vcmp.lt.s32.totalorder %v1164, 2500
          %vm1478 = vcmp.lt.s32.totalorder %v1165, 2500
          %vm1479 = vcmp.lt.s32.totalorder %v1166, 2500
          %vm1480 = vcmp.lt.s32.totalorder %v1167, 2500
          %vm1481 = vcmp.lt.s32.totalorder %v1168, 2500
          %vm1482 = vcmp.lt.s32.totalorder %v1169, 2500
          %vm1483 = vcmp.lt.s32.totalorder %v1170, 2500
          %vm1484 = vcmp.lt.s32.totalorder %v1171, 2500
          %vm1485 = vcmp.lt.s32.totalorder %v1172, 2500
          %vm1486 = vcmp.lt.s32.totalorder %v1173, 2500
          %vm1487 = vcmp.lt.s32.totalorder %v1174, 2500
          %vm1488 = vcmp.lt.s32.totalorder %v1175, 2500
          %vm1489 = vcmp.lt.s32.totalorder %v1176, 2500
          %vm1490 = vcmp.lt.s32.totalorder %v1177, 2500
          %vm1491 = vcmp.lt.s32.totalorder %v1178, 2500
          %vm1492 = vcmp.lt.s32.totalorder %v1179, 2500
          %vm1493 = vcmp.lt.s32.totalorder %v1180, 2500
          %vm1494 = vcmp.lt.s32.totalorder %v1181, 2500
          %vm1495 = vcmp.lt.s32.totalorder %v1182, 2500
          %vm1496 = vcmp.lt.s32.totalorder %v1183, 2500
          %vm1497 = vcmp.lt.s32.totalorder %v1184, 2500
          %vm1498 = vcmp.lt.s32.totalorder %v1185, 2500
          %vm1499 = vcmp.lt.s32.totalorder %v1186, 2500
          %vm1500 = vcmp.lt.s32.totalorder %v1187, 2500
          %vm1501 = vcmp.lt.s32.totalorder %v1188, 2500
          %vm1502 = vcmp.lt.s32.totalorder %v1189, 2500
          %vm1503 = vcmp.lt.s32.totalorder %v1190, 2500
          %vm1504 = vcmp.lt.s32.totalorder %v1191, 2500
          %vm1505 = vcmp.lt.s32.totalorder %v1192, 2500
          %vm1506 = vcmp.lt.s32.totalorder %v1193, 2500
          %vm1507 = vcmp.lt.s32.totalorder %v1194, 2500
          %vm1508 = vcmp.lt.s32.totalorder %v1195, 2500
          %vm1509 = vcmp.lt.s32.totalorder %v1196, 2500
          %vm1510 = vcmp.lt.s32.totalorder %v1197, 2500
          %vm1511 = vcmp.lt.s32.totalorder %v1198, 2500
          %vm1512 = vcmp.lt.s32.totalorder %v1199, 2500
          %vm1513 = vcmp.lt.s32.totalorder %v1200, 2500
          %vm1514 = vcmp.lt.s32.totalorder %v1201, 2500
          %vm1515 = vcmp.lt.s32.totalorder %v1202, 2500
          %vm1516 = vcmp.lt.s32.totalorder %v1203, 2500
          %vm1517 = vcmp.lt.s32.totalorder %v1204, 2500
          %vm1518 = vcmp.lt.s32.totalorder %v1205, 2500
          %vm1519 = vcmp.lt.s32.totalorder %v1206, 2500
          %vm1520 = vcmp.lt.s32.totalorder %v1207, 2500
          %vm1521 = vcmp.lt.s32.totalorder %v1208, 2500
          %vm1522 = vcmp.lt.s32.totalorder %v1209, 2500
          %vm1523 = vcmp.lt.s32.totalorder %v1210, 2500
          %vm1524 = vcmp.lt.s32.totalorder %v1211, 2500
          %vm1525 = vcmp.lt.s32.totalorder %v1212, 2500
          %vm1526 = vcmp.lt.s32.totalorder %v1213, 2500
          %vm1527 = vcmp.lt.s32.totalorder %v1214, 2500
          %vm1528 = vcmp.lt.s32.totalorder %v1215, 2500
          %vm1529 = vcmp.lt.s32.totalorder %v1216, 2500
          %vm1530 = vcmp.lt.s32.totalorder %v1217, 2500
          %vm1531 = vcmp.lt.s32.totalorder %v1218, 2500
          %vm1532 = vcmp.lt.s32.totalorder %v1219, 2500
          %vm1533 = vcmp.lt.s32.totalorder %v1220, 2500
          %vm1534 = vcmp.lt.s32.totalorder %v1221, 2500
          %vm1535 = vcmp.lt.s32.totalorder %v1222, 2500
          %vm1536 = vcmp.lt.s32.totalorder %v1223, 2500
          %vm1537 = vcmp.lt.s32.totalorder %v1224, 2500
          %vm1538 = vcmp.lt.s32.totalorder %v1225, 2500
          %vm1539 = vcmp.lt.s32.totalorder %v1226, 2500
          %vm1540 = vcmp.lt.s32.totalorder %v1227, 2500
          %vm1541 = vcmp.lt.s32.totalorder %v1228, 2500
          %vm1542 = vcmp.lt.s32.totalorder %v1229, 2500
          %vm1543 = vcmp.lt.s32.totalorder %v1230, 2500
          %vm1544 = vcmp.lt.s32.totalorder %v1231, 2500
          %vm1545 = vcmp.lt.s32.totalorder %v1232, 2500
          %vm1546 = vcmp.lt.s32.totalorder %v1233, 2500
          %vm1547 = vcmp.lt.s32.totalorder %v1234, 2500
          %vm1548 = vcmp.lt.s32.totalorder %v1235, 2500
          %vm1549 = vcmp.lt.s32.totalorder %v1236, 2500
          %vm1550 = vcmp.lt.s32.totalorder %v1237, 2500
          %vm1551 = vcmp.lt.s32.totalorder %v1238, 2500
          %vm1552 = vcmp.lt.s32.totalorder %v1239, 2500
          %vm1553 = vcmp.lt.s32.totalorder %v1240, 2500
          %vm1554 = vcmp.lt.s32.totalorder %v1241, 2500
          %vm1555 = vcmp.lt.s32.totalorder %v1242, 2500
          %vm1556 = vcmp.lt.s32.totalorder %v1243, 2500
          %vm1557 = vcmp.lt.s32.totalorder %v1244, 2500
          %vm1558 = vcmp.lt.s32.totalorder %v1245, 2500
          %vm1559 = vcmp.lt.s32.totalorder %v1246, 2500
          %vm1560 = vcmp.lt.s32.totalorder %v1247, 2500
          %vm1561 = vcmp.lt.s32.totalorder %v1248, 2500
          %vm1562 = vcmp.lt.s32.totalorder %v1249, 2500
          %vm1563 = vcmp.lt.s32.totalorder %v1250, 2500
          %vm1564 = vcmp.lt.s32.totalorder %v1251, 2500
          %vm1565 = vcmp.lt.s32.totalorder %v1252, 2500
          %vm1566 = vcmp.lt.s32.totalorder %v1253, 2500
          %vm1567 = vcmp.lt.s32.totalorder %v1254, 2500
          %vm1568 = vcmp.lt.s32.totalorder %v1255, 2500
          %vm1569 = vcmp.lt.s32.totalorder %v1256, 2500
          %vm1570 = vcmp.lt.s32.totalorder %v1257, 2500
          %vm1571 = vcmp.lt.s32.totalorder %v1258, 2500
          %vm1572 = vcmp.lt.s32.totalorder %v1259, 2500
          %vm1573 = vcmp.lt.s32.totalorder %v1260, 2500
          %vm1574 = vcmp.lt.s32.totalorder %v1261, 2500
          %vm1575 = vcmp.lt.s32.totalorder %v1262, 2500
          %vm1576 = vcmp.lt.s32.totalorder %v1263, 2500
          %vm1577 = vcmp.lt.s32.totalorder %v1264, 2500
          %vm1578 = vcmp.lt.s32.totalorder %v1265, 2500
          %vm1579 = vcmp.lt.s32.totalorder %v1266, 2500
          %vm1580 = vcmp.lt.s32.totalorder %v1267, 2500
          %vm1581 = vcmp.lt.s32.totalorder %v1268, 2500
          %vm1582 = vcmp.lt.s32.totalorder %v1269, 2500
          %vm1583 = vcmp.lt.s32.totalorder %v1270, 2500
          %vm1584 = vcmp.lt.s32.totalorder %v1271, 2500
          %vm1585 = vcmp.lt.s32.totalorder %v1272, 2500
          %vm1586 = vcmp.lt.s32.totalorder %v1273, 2500
          %vm1587 = vcmp.lt.s32.totalorder %v1274, 2500
          %vm1588 = vcmp.lt.s32.totalorder %v1275, 2500
          %vm1589 = vcmp.lt.s32.totalorder %v1276, 2500
          %vm1590 = vcmp.lt.s32.totalorder %v1277, 2500
          %vm1591 = vcmp.lt.s32.totalorder %v1278, 2500
          %vm1592 = vcmp.lt.s32.totalorder %v1279, 2500
          %vm1593 = vcmp.lt.s32.totalorder %v1280, 2500
          %vm1594 = vcmp.lt.s32.totalorder %v1281, 2500
          %vm1595 = vcmp.lt.s32.totalorder %v1282, 2500
          %vm1596 = vcmp.lt.s32.totalorder %v1283, 2500
          %vm1597 = vcmp.lt.s32.totalorder %v1284, 2500
          %vm1598 = vcmp.lt.s32.totalorder %v1285, 2500
          %vm1599 = vcmp.lt.s32.totalorder %v1286, 2500
          %vm1600 = vcmp.lt.s32.totalorder %v1287, 2500
          %vm1601 = vcmp.lt.s32.totalorder %v1288, 2500
          %vm1602 = vcmp.lt.s32.totalorder %v1289, 2500
          %vm1603 = vcmp.lt.s32.totalorder %v1290, 2500
          %vm1604 = vcmp.lt.s32.totalorder %v1291, 2500
          %vm1605 = vcmp.lt.s32.totalorder %v1292, 2500
          %vm1606 = vcmp.lt.s32.totalorder %v1293, 2500
          %vm1607 = vcmp.lt.s32.totalorder %v1294, 2500
          %vm1608 = vcmp.lt.s32.totalorder %v1295, 2500
          %vm1609 = vcmp.lt.s32.totalorder %v1296, 2500
          %vm1610 = vcmp.lt.s32.totalorder %v1297, 2500
          %vm1611 = vcmp.lt.s32.totalorder %v1298, 2500
          %vm1612 = vcmp.lt.s32.totalorder %v1299, 2500
          %vm1613 = vcmp.lt.s32.totalorder %v1300, 2500
          %vm1614 = vcmp.lt.s32.totalorder %v1301, 2500
          %vm1615 = vcmp.lt.s32.totalorder %v1302, 2500
          %vm1616 = vcmp.lt.s32.totalorder %v1303, 2500
          %vm1617 = vcmp.lt.s32.totalorder %v1304, 2500
          %vm1618 = vcmp.lt.s32.totalorder %v1305, 2500
          %vm1619 = vcmp.lt.s32.totalorder %v1306, 2500
          %vm1620 = vcmp.lt.s32.totalorder %v1307, 2500
          %vm1621 = vcmp.lt.s32.totalorder %v1308, 2500
          %vm1622 = vcmp.lt.s32.totalorder %v1309, 2500
          %vm1623 = vcmp.lt.s32.totalorder %v1310, 2500
          %vm1624 = vcmp.lt.s32.totalorder %v1311, 2500
          %vm1625 = vcmp.lt.s32.totalorder %v1312, 2500
          %vm1626 = vcmp.lt.s32.totalorder %v1313, 2500
          %vm1627 = vcmp.lt.s32.totalorder %v1314, 2500
          %vm1628 = vcmp.lt.s32.totalorder %v1315, 2500
          %vm1629 = vcmp.lt.s32.totalorder %v1316, 2500
          %vm1630 = vcmp.lt.s32.totalorder %v1317, 2500
          %vm1631 = vcmp.lt.s32.totalorder %v1318, 2500
          %vm1632 = vcmp.lt.s32.totalorder %v1319, 2500
          %vm1633 = vcmp.lt.s32.totalorder %v1320, 2500
          %vm1634 = vcmp.lt.s32.totalorder %v1321, 2500
          %vm1635 = vcmp.lt.s32.totalorder %v1322, 2500
          %vm1636 = vcmp.lt.s32.totalorder %v1323, 2500
          %vm1637 = vcmp.lt.s32.totalorder %v1324, 2500
          %vm1638 = vcmp.lt.s32.totalorder %v1325, 2500
          %vm1639 = vcmp.lt.s32.totalorder %v1326, 2500
          %vm1640 = vcmp.lt.s32.totalorder %v1327, 2500
          %vm1641 = vcmp.lt.s32.totalorder %v1328, 2500
          %vm1642 = vcmp.lt.s32.totalorder %v1329, 2500
          %vm1643 = vcmp.lt.s32.totalorder %v1330, 2500
          %vm1644 = vcmp.lt.s32.totalorder %v1331, 2500
          %vm1645 = vcmp.lt.s32.totalorder %v1332, 2500
          %vm1646 = vcmp.lt.s32.totalorder %v1333, 2500
          %vm1647 = vcmp.lt.s32.totalorder %v1334, 2500
          %vm1648 = vcmp.lt.s32.totalorder %v1335, 2500
          %vm1649 = vcmp.lt.s32.totalorder %v1336, 2500
          %vm1650 = vcmp.lt.s32.totalorder %v1337, 2500
          %vm1651 = vcmp.lt.s32.totalorder %v1338, 2500
          %vm1652 = vcmp.lt.s32.totalorder %v1339, 2500
          %vm1653 = vcmp.lt.s32.totalorder %v1340, 2500
          %vm1654 = vcmp.lt.s32.totalorder %v1341, 2500
          %vm1655 = vcmp.lt.s32.totalorder %v1342, 2500
          %vm1656 = vcmp.lt.s32.totalorder %v1343, 2500
          %vm1657 = vcmp.lt.s32.totalorder %v1344, 2500
          %vm1658 = vcmp.lt.s32.totalorder %v1345, 2500
          %vm1659 = vcmp.lt.s32.totalorder %v1346, 2500
          %vm1660 = vcmp.lt.s32.totalorder %v1347, 2500
          %vm1661 = vcmp.lt.s32.totalorder %v1348, 2500
          %vm1662 = vcmp.lt.s32.totalorder %v1349, 2500
          %vm1663 = vcmp.lt.s32.totalorder %v1350, 2500
          %vm1664 = vcmp.lt.s32.totalorder %v1351, 2500
          %vm1665 = vcmp.lt.s32.totalorder %v1352, 2500
          %vm1666 = vcmp.lt.s32.totalorder %v1353, 2500
          %vm1667 = vcmp.lt.s32.totalorder %v1354, 2500
          %vm1668 = vcmp.lt.s32.totalorder %v1355, 2500
          %vm1669 = vcmp.lt.s32.totalorder %v1356, 2500
          %vm1670 = vcmp.lt.s32.totalorder %v1357, 2500
          %vm1671 = vcmp.lt.s32.totalorder %v1358, 2500
          %vm1672 = vcmp.lt.s32.totalorder %v1359, 2500
          %vm1673 = vcmp.lt.s32.totalorder %v1360, 2500
          %vm1674 = vcmp.lt.s32.totalorder %v1361, 2500
          %vm1675 = vcmp.lt.s32.totalorder %v1362, 2500
          %vm1676 = vcmp.lt.s32.totalorder %v1363, 2500
          %vm1677 = vcmp.lt.s32.totalorder %v1364, 2500
          %vm1678 = vcmp.lt.s32.totalorder %v1365, 2500
          %vm1679 = vcmp.lt.s32.totalorder %v1366, 2500
          %vm1680 = vcmp.lt.s32.totalorder %v1367, 2500
          %vm1681 = vcmp.lt.s32.totalorder %v1368, 2500
          %vm1682 = vcmp.lt.s32.totalorder %v1369, 2500
          %vm1683 = vcmp.lt.s32.totalorder %v1370, 2500
          %vm1684 = vcmp.lt.s32.totalorder %v1371, 2500
          %vm1685 = vcmp.lt.s32.totalorder %v1372, 2500
          %vm1686 = vcmp.lt.s32.totalorder %v1373, 2500
          %vm1687 = vcmp.lt.s32.totalorder %v1374, 2500
          %vm1688 = vcmp.lt.s32.totalorder %v1375, 2500
          %vm1689 = vcmp.lt.s32.totalorder %v1376, 2500
          %vm1690 = vcmp.lt.s32.totalorder %v1377, 2500
          %vm1691 = vcmp.lt.s32.totalorder %v1378, 2500
          %vm1692 = vcmp.lt.s32.totalorder %v1379, 2500
          %vm1693 = vcmp.lt.s32.totalorder %v1380, 2500
          %vm1694 = vcmp.lt.s32.totalorder %v1381, 2500
          %vm1695 = vcmp.lt.s32.totalorder %v1382, 2500
          %vm1696 = vcmp.lt.s32.totalorder %v1383, 2500
          %vm1697 = vcmp.lt.s32.totalorder %v1384, 2500
          %vm1698 = vcmp.lt.s32.totalorder %v1385, 2500
          %vm1699 = vcmp.lt.s32.totalorder %v1386, 2500
          %vm1700 = vcmp.lt.s32.totalorder %v1387, 2500
          %vm1701 = vcmp.lt.s32.totalorder %v1388, 2500
          %vm1702 = vcmp.lt.s32.totalorder %v1389, 2500
          %vm1703 = vcmp.lt.s32.totalorder %v1390, 2500
          %vm1704 = vcmp.lt.s32.totalorder %v1391, 2500
          %vm1705 = vcmp.lt.s32.totalorder %v1392, 2500
          %vm1706 = vcmp.lt.s32.totalorder %v1393, 2500
          %vm1707 = vcmp.lt.s32.totalorder %v1394, 2500
          %vm1708 = vcmp.lt.s32.totalorder %v1395, 2500
          %vm1709 = vcmp.lt.s32.totalorder %v1396, 2500
          %vm1710 = vcmp.lt.s32.totalorder %v1397, 2500
          %vm1711 = vcmp.lt.s32.totalorder %v1398, 2500
          %vm1712 = vcmp.lt.s32.totalorder %v1399, 2500
          %vm1713 = vcmp.lt.s32.totalorder %v1400, 2500
          %vm1714 = vcmp.lt.s32.totalorder %v1401, 2500
          %vm1715 = vcmp.lt.s32.totalorder %v1402, 2500
          %vm1716 = vcmp.lt.s32.totalorder %v1403, 2500
          %vm1717 = vcmp.lt.s32.totalorder %v1404, 2500
          %vm1718 = vcmp.lt.s32.totalorder %v1405, 2500
          %vm1719 = vcmp.lt.s32.totalorder %v1406, 2500
          %vm1720 = vcmp.lt.s32.totalorder %v1407, 2500
          %vm1721 = vcmp.lt.s32.totalorder %v1408, 2500
          %vm1722 = vcmp.lt.s32.totalorder %v1409, 2500
          %vm1723 = vcmp.lt.s32.totalorder %v1410, 2500
          %vm1724 = vcmp.lt.s32.totalorder %v1411, 2500
          %vm1725 = vcmp.lt.s32.totalorder %v1412, 2500
          %vm1726 = vcmp.lt.s32.totalorder %v1413, 2500
          %vm1727 = vcmp.lt.s32.totalorder %v1414, 2500
          %vm1728 = vcmp.lt.s32.totalorder %v1415, 2500
          %vm1729 = vcmp.lt.s32.totalorder %v1416, 2500
          %vm1730 = vcmp.lt.s32.totalorder %v1417, 2500
          %vm1731 = vcmp.lt.s32.totalorder %v1418, 2500
          %vm1732 = vcmp.lt.s32.totalorder %v1419, 2500
          %v1733 = vld [vmem:[%s132] sm:$0xff]
          %v1734 = vld [vmem:[%s132 + $0x8] sm:$0xff]
          %v1735 = vld [vmem:[%s132 + $0x10] sm:$0xff]
          %v1736 = vld [vmem:[%s132 + $0x18] sm:$0xff]
          %v1737 = vld [vmem:[%s132 + $0x20] sm:$0xff]
          %v1738 = vld [vmem:[%s132 + $0x28] sm:$0xff]
          %v1739 = vld [vmem:[%s132 + $0x30] sm:$0xff]
          %v1740 = vld [vmem:[%s132 + $0x38] sm:$0xff]
          %v1741 = vld [vmem:[%s132 + $0x40] sm:$0xff]
          %v1742 = vld [vmem:[%s132 + $0x48] sm:$0xff]
          %v1743 = vld [vmem:[%s132 + $0x50] sm:$0xff]
          %v1744 = vld [vmem:[%s132 + $0x58] sm:$0xff]
          %v1745 = vld [vmem:[%s132 + $0x60] sm:$0xff]
          %v1746 = vld [vmem:[%s132 + $0x68] sm:$0xff]
          %v1747 = vld [vmem:[%s132 + $0x70] sm:$0xff]
          %v1748 = vld [vmem:[%s132 + $0x78] sm:$0xff]
          %v1749 = vld [vmem:[%s132 + $0x80] sm:$0xff]
          %v1750 = vld [vmem:[%s132 + $0x88] sm:$0xff]
          %v1751 = vld [vmem:[%s132 + $0x90] sm:$0xff]
          %v1752 = vld [vmem:[%s132 + $0x98] sm:$0xff]
          %v1753 = vld [vmem:[%s132 + $0xa0] sm:$0xff]
          %v1754 = vld [vmem:[%s132 + $0xa8] sm:$0xff]
          %v1755 = vld [vmem:[%s132 + $0xb0] sm:$0xff]
          %v1756 = vld [vmem:[%s132 + $0xb8] sm:$0xff]
          %v1757 = vld [vmem:[%s132 + $0xc0] sm:$0xff]
          %v1758 = vld [vmem:[%s132 + $0xc8] sm:$0xff]
          %v1759 = vld [vmem:[%s132 + $0xd0] sm:$0xff]
          %v1760 = vld [vmem:[%s132 + $0xd8] sm:$0xff]
          %v1761 = vld [vmem:[%s132 + $0xe0] sm:$0xff]
          %v1762 = vld [vmem:[%s132 + $0xe8] sm:$0xff]
          %v1763 = vld [vmem:[%s132 + $0xf0] sm:$0xff]
          %v1764 = vld [vmem:[%s132 + $0xf8] sm:$0xff]
          %v1765 = vld [vmem:[%s132 + $0x100] sm:$0xff]
          %v1766 = vld [vmem:[%s132 + $0x108] sm:$0xff]
          %v1767 = vld [vmem:[%s132 + $0x110] sm:$0xff]
          %v1768 = vld [vmem:[%s132 + $0x118] sm:$0xff]
          %v1769 = vld [vmem:[%s132 + $0x120] sm:$0xff]
          %v1770 = vld [vmem:[%s132 + $0x128] sm:$0xff]
          %v1771 = vld [vmem:[%s132 + $0x130] sm:$0xff]
          %v1772 = vld [vmem:[%s132 + $0x138] sm:$0xff]
          %v1773 = vld [vmem:[%s132 + $0x140] sm:$0xff]
          %v1774 = vld [vmem:[%s132 + $0x148] sm:$0xff]
          %v1775 = vld [vmem:[%s132 + $0x150] sm:$0xff]
          %v1776 = vld [vmem:[%s132 + $0x158] sm:$0xff]
          %v1777 = vld [vmem:[%s132 + $0x160] sm:$0xff]
          %v1778 = vld [vmem:[%s132 + $0x168] sm:$0xff]
          %v1779 = vld [vmem:[%s132 + $0x170] sm:$0xff]
          %v1780 = vld [vmem:[%s132 + $0x178] sm:$0xff]
          %v1781 = vld [vmem:[%s132 + $0x180] sm:$0xff]
          %v1782 = vld [vmem:[%s132 + $0x188] sm:$0xff]
          %v1783 = vld [vmem:[%s132 + $0x190] sm:$0xff]
          %v1784 = vld [vmem:[%s132 + $0x198] sm:$0xff]
          %v1785 = vld [vmem:[%s132 + $0x1a0] sm:$0xff]
          %v1786 = vld [vmem:[%s132 + $0x1a8] sm:$0xff]
          %v1787 = vld [vmem:[%s132 + $0x1b0] sm:$0xff]
          %v1788 = vld [vmem:[%s132 + $0x1b8] sm:$0xff]
          %v1789 = vld [vmem:[%s132 + $0x1c0] sm:$0xff]
          %v1790 = vld [vmem:[%s132 + $0x1c8] sm:$0xff]
          %v1791 = vld [vmem:[%s132 + $0x1d0] sm:$0xff]
          %v1792 = vld [vmem:[%s132 + $0x1d8] sm:$0xff]
          %v1793 = vld [vmem:[%s132 + $0x1e0] sm:$0xff]
          %v1794 = vld [vmem:[%s132 + $0x1e8] sm:$0xff]
          %v1795 = vld [vmem:[%s132 + $0x1f0] sm:$0xff]
          %v1796 = vld [vmem:[%s132 + $0x1f8] sm:$0xff]
          %v1797 = vld [vmem:[%s132 + $0x200] sm:$0xff]
          %v1798 = vld [vmem:[%s132 + $0x208] sm:$0xff]
          %v1799 = vld [vmem:[%s132 + $0x210] sm:$0xff]
          %v1800 = vld [vmem:[%s132 + $0x218] sm:$0xff]
          %v1801 = vld [vmem:[%s132 + $0x220] sm:$0xff]
          %v1802 = vld [vmem:[%s132 + $0x228] sm:$0xff]
          %v1803 = vld [vmem:[%s132 + $0x230] sm:$0xff]
          %v1804 = vld [vmem:[%s132 + $0x238] sm:$0xff]
          %v1805 = vld [vmem:[%s132 + $0x240] sm:$0xff]
          %v1806 = vld [vmem:[%s132 + $0x248] sm:$0xff]
          %v1807 = vld [vmem:[%s132 + $0x250] sm:$0xff]
          %v1808 = vld [vmem:[%s132 + $0x258] sm:$0xff]
          %v1809 = vld [vmem:[%s132 + $0x260] sm:$0xff]
          %v1810 = vld [vmem:[%s132 + $0x268] sm:$0xff]
          %v1811 = vld [vmem:[%s132 + $0x270] sm:$0xff]
          %v1812 = vld [vmem:[%s132 + $0x278] sm:$0xff]
          %v1813 = vld [vmem:[%s132 + $0x280] sm:$0xff]
          %v1814 = vld [vmem:[%s132 + $0x288] sm:$0xff]
          %v1815 = vld [vmem:[%s132 + $0x290] sm:$0xff]
          %v1816 = vld [vmem:[%s132 + $0x298] sm:$0xff]
          %v1817 = vld [vmem:[%s132 + $0x2a0] sm:$0xff]
          %v1818 = vld [vmem:[%s132 + $0x2a8] sm:$0xff]
          %v1819 = vld [vmem:[%s132 + $0x2b0] sm:$0xff]
          %v1820 = vld [vmem:[%s132 + $0x2b8] sm:$0xff]
          %v1821 = vld [vmem:[%s132 + $0x2c0] sm:$0xff]
          %v1822 = vld [vmem:[%s132 + $0x2c8] sm:$0xff]
          %v1823 = vld [vmem:[%s132 + $0x2d0] sm:$0xff]
          %v1824 = vld [vmem:[%s132 + $0x2d8] sm:$0xff]
          %v1825 = vld [vmem:[%s132 + $0x2e0] sm:$0xff]
          %v1826 = vld [vmem:[%s132 + $0x2e8] sm:$0xff]
          %v1827 = vld [vmem:[%s132 + $0x2f0] sm:$0xff]
          %v1828 = vld [vmem:[%s132 + $0x2f8] sm:$0xff]
          %v1829 = vld [vmem:[%s132 + $0x300] sm:$0xff]
          %v1830 = vld [vmem:[%s132 + $0x308] sm:$0xff]
          %v1831 = vld [vmem:[%s132 + $0x310] sm:$0xff]
          %v1832 = vld [vmem:[%s132 + $0x318] sm:$0xff]
          %v1833 = vld [vmem:[%s132 + $0x320] sm:$0xff]
          %v1834 = vld [vmem:[%s132 + $0x328] sm:$0xff]
          %v1835 = vld [vmem:[%s132 + $0x330] sm:$0xff]
          %v1836 = vld [vmem:[%s132 + $0x338] sm:$0xff]
          %v1837 = vld [vmem:[%s132 + $0x340] sm:$0xff]
          %v1838 = vld [vmem:[%s132 + $0x348] sm:$0xff]
          %v1839 = vld [vmem:[%s132 + $0x350] sm:$0xff]
          %v1840 = vld [vmem:[%s132 + $0x358] sm:$0xff]
          %v1841 = vld [vmem:[%s132 + $0x360] sm:$0xff]
          %v1842 = vld [vmem:[%s132 + $0x368] sm:$0xff]
          %v1843 = vld [vmem:[%s132 + $0x370] sm:$0xff]
          %v1844 = vld [vmem:[%s132 + $0x378] sm:$0xff]
          %v1845 = vld [vmem:[%s132 + $0x380] sm:$0xff]
          %v1846 = vld [vmem:[%s132 + $0x388] sm:$0xff]
          %v1847 = vld [vmem:[%s132 + $0x390] sm:$0xff]
          %v1848 = vld [vmem:[%s132 + $0x398] sm:$0xff]
          %v1849 = vld [vmem:[%s132 + $0x3a0] sm:$0xff]
          %v1850 = vld [vmem:[%s132 + $0x3a8] sm:$0xff]
          %v1851 = vld [vmem:[%s132 + $0x3b0] sm:$0xff]
          %v1852 = vld [vmem:[%s132 + $0x3b8] sm:$0xff]
          %v1853 = vld [vmem:[%s132 + $0x3c0] sm:$0xff]
          %v1854 = vld [vmem:[%s132 + $0x3c8] sm:$0xff]
          %v1855 = vld [vmem:[%s132 + $0x3d0] sm:$0xff]
          %v1856 = vld [vmem:[%s132 + $0x3d8] sm:$0xff]
          %v1857 = vld [vmem:[%s132 + $0x3e0] sm:$0xff]
          %v1858 = vld [vmem:[%s132 + $0x3e8] sm:$0xff]
          %v1859 = vld [vmem:[%s132 + $0x3f0] sm:$0xff]
          %v1860 = vld [vmem:[%s132 + $0x3f8] sm:$0xff]
          %v1861 = vld [vmem:[%s132 + $0x400] sm:$0xff]
          %v1862 = vld [vmem:[%s132 + $0x408] sm:$0xff]
          %v1863 = vld [vmem:[%s132 + $0x410] sm:$0xff]
          %v1864 = vld [vmem:[%s132 + $0x418] sm:$0xff]
          %v1865 = vld [vmem:[%s132 + $0x420] sm:$0xff]
          %v1866 = vld [vmem:[%s132 + $0x428] sm:$0xff]
          %v1867 = vld [vmem:[%s132 + $0x430] sm:$0xff]
          %v1868 = vld [vmem:[%s132 + $0x438] sm:$0xff]
          %v1869 = vld [vmem:[%s132 + $0x440] sm:$0xff]
          %v1870 = vld [vmem:[%s132 + $0x448] sm:$0xff]
          %v1871 = vld [vmem:[%s132 + $0x450] sm:$0xff]
          %v1872 = vld [vmem:[%s132 + $0x458] sm:$0xff]
          %v1873 = vld [vmem:[%s132 + $0x460] sm:$0xff]
          %v1874 = vld [vmem:[%s132 + $0x468] sm:$0xff]
          %v1875 = vld [vmem:[%s132 + $0x470] sm:$0xff]
          %v1876 = vld [vmem:[%s132 + $0x478] sm:$0xff]
          %v1877 = vld [vmem:[%s132 + $0x480] sm:$0xff]
          %v1878 = vld [vmem:[%s132 + $0x488] sm:$0xff]
          %v1879 = vld [vmem:[%s132 + $0x490] sm:$0xff]
          %v1880 = vld [vmem:[%s132 + $0x498] sm:$0xff]
          %v1881 = vld [vmem:[%s132 + $0x4a0] sm:$0xff]
          %v1882 = vld [vmem:[%s132 + $0x4a8] sm:$0xff]
          %v1883 = vld [vmem:[%s132 + $0x4b0] sm:$0xff]
          %v1884 = vld [vmem:[%s132 + $0x4b8] sm:$0xff]
          %v1885 = vld [vmem:[%s132 + $0x4c0] sm:$0xff]
          %v1886 = vld [vmem:[%s132 + $0x4c8] sm:$0xff]
          %v1887 = vld [vmem:[%s132 + $0x4d0] sm:$0xff]
          %v1888 = vld [vmem:[%s132 + $0x4d8] sm:$0xff]
          %v1889 = vld [vmem:[%s132 + $0x4e0] sm:$0xff]
          %v1890 = vld [vmem:[%s132 + $0x4e8] sm:$0xff]
          %v1891 = vld [vmem:[%s132 + $0x4f0] sm:$0xff]
          %v1892 = vld [vmem:[%s132 + $0x4f8] sm:$0xff]
          %v1893 = vld [vmem:[%s132 + $0x500] sm:$0xff]
          %v1894 = vld [vmem:[%s132 + $0x508] sm:$0xff]
          %v1895 = vld [vmem:[%s132 + $0x510] sm:$0xff]
          %v1896 = vld [vmem:[%s132 + $0x518] sm:$0xff]
          %v1897 = vld [vmem:[%s132 + $0x520] sm:$0xff]
          %v1898 = vld [vmem:[%s132 + $0x528] sm:$0xff]
          %v1899 = vld [vmem:[%s132 + $0x530] sm:$0xff]
          %v1900 = vld [vmem:[%s132 + $0x538] sm:$0xff]
          %v1901 = vld [vmem:[%s132 + $0x540] sm:$0xff]
          %v1902 = vld [vmem:[%s132 + $0x548] sm:$0xff]
          %v1903 = vld [vmem:[%s132 + $0x550] sm:$0xff]
          %v1904 = vld [vmem:[%s132 + $0x558] sm:$0xff]
          %v1905 = vld [vmem:[%s132 + $0x560] sm:$0xff]
          %v1906 = vld [vmem:[%s132 + $0x568] sm:$0xff]
          %v1907 = vld [vmem:[%s132 + $0x570] sm:$0xff]
          %v1908 = vld [vmem:[%s132 + $0x578] sm:$0xff]
          %v1909 = vld [vmem:[%s132 + $0x580] sm:$0xff]
          %v1910 = vld [vmem:[%s132 + $0x588] sm:$0xff]
          %v1911 = vld [vmem:[%s132 + $0x590] sm:$0xff]
          %v1912 = vld [vmem:[%s132 + $0x598] sm:$0xff]
          %v1913 = vld [vmem:[%s132 + $0x5a0] sm:$0xff]
          %v1914 = vld [vmem:[%s132 + $0x5a8] sm:$0xff]
          %v1915 = vld [vmem:[%s132 + $0x5b0] sm:$0xff]
          %v1916 = vld [vmem:[%s132 + $0x5b8] sm:$0xff]
          %v1917 = vld [vmem:[%s132 + $0x5c0] sm:$0xff]
          %v1918 = vld [vmem:[%s132 + $0x5c8] sm:$0xff]
          %v1919 = vld [vmem:[%s132 + $0x5d0] sm:$0xff]
          %v1920 = vld [vmem:[%s132 + $0x5d8] sm:$0xff]
          %v1921 = vld [vmem:[%s132 + $0x5e0] sm:$0xff]
          %v1922 = vld [vmem:[%s132 + $0x5e8] sm:$0xff]
          %v1923 = vld [vmem:[%s132 + $0x5f0] sm:$0xff]
          %v1924 = vld [vmem:[%s132 + $0x5f8] sm:$0xff]
          %v1925 = vld [vmem:[%s132 + $0x600] sm:$0xff]
          %v1926 = vld [vmem:[%s132 + $0x608] sm:$0xff]
          %v1927 = vld [vmem:[%s132 + $0x610] sm:$0xff]
          %v1928 = vld [vmem:[%s132 + $0x618] sm:$0xff]
          %v1929 = vld [vmem:[%s132 + $0x620] sm:$0xff]
          %v1930 = vld [vmem:[%s132 + $0x628] sm:$0xff]
          %v1931 = vld [vmem:[%s132 + $0x630] sm:$0xff]
          %v1932 = vld [vmem:[%s132 + $0x638] sm:$0xff]
          %v1933 = vld [vmem:[%s132 + $0x640] sm:$0xff]
          %v1934 = vld [vmem:[%s132 + $0x648] sm:$0xff]
          %v1935 = vld [vmem:[%s132 + $0x650] sm:$0xff]
          %v1936 = vld [vmem:[%s132 + $0x658] sm:$0xff]
          %v1937 = vld [vmem:[%s132 + $0x660] sm:$0xff]
          %v1938 = vld [vmem:[%s132 + $0x668] sm:$0xff]
          %v1939 = vld [vmem:[%s132 + $0x670] sm:$0xff]
          %v1940 = vld [vmem:[%s132 + $0x678] sm:$0xff]
          %v1941 = vld [vmem:[%s132 + $0x680] sm:$0xff]
          %v1942 = vld [vmem:[%s132 + $0x688] sm:$0xff]
          %v1943 = vld [vmem:[%s132 + $0x690] sm:$0xff]
          %v1944 = vld [vmem:[%s132 + $0x698] sm:$0xff]
          %v1945 = vld [vmem:[%s132 + $0x6a0] sm:$0xff]
          %v1946 = vld [vmem:[%s132 + $0x6a8] sm:$0xff]
          %v1947 = vld [vmem:[%s132 + $0x6b0] sm:$0xff]
          %v1948 = vld [vmem:[%s132 + $0x6b8] sm:$0xff]
          %v1949 = vld [vmem:[%s132 + $0x6c0] sm:$0xff]
          %v1950 = vld [vmem:[%s132 + $0x6c8] sm:$0xff]
          %v1951 = vld [vmem:[%s132 + $0x6d0] sm:$0xff]
          %v1952 = vld [vmem:[%s132 + $0x6d8] sm:$0xff]
          %v1953 = vld [vmem:[%s132 + $0x6e0] sm:$0xff]
          %v1954 = vld [vmem:[%s132 + $0x6e8] sm:$0xff]
          %v1955 = vld [vmem:[%s132 + $0x6f0] sm:$0xff]
          %v1956 = vld [vmem:[%s132 + $0x6f8] sm:$0xff]
          %v1957 = vld [vmem:[%s132 + $0x700] sm:$0xff]
          %v1958 = vld [vmem:[%s132 + $0x708] sm:$0xff]
          %v1959 = vld [vmem:[%s132 + $0x710] sm:$0xff]
          %v1960 = vld [vmem:[%s132 + $0x718] sm:$0xff]
          %v1961 = vld [vmem:[%s132 + $0x720] sm:$0xff]
          %v1962 = vld [vmem:[%s132 + $0x728] sm:$0xff]
          %v1963 = vld [vmem:[%s132 + $0x730] sm:$0xff]
          %v1964 = vld [vmem:[%s132 + $0x738] sm:$0xff]
          %v1965 = vld [vmem:[%s132 + $0x740] sm:$0xff]
          %v1966 = vld [vmem:[%s132 + $0x748] sm:$0xff]
          %v1967 = vld [vmem:[%s132 + $0x750] sm:$0xff]
          %v1968 = vld [vmem:[%s132 + $0x758] sm:$0xff]
          %v1969 = vld [vmem:[%s132 + $0x760] sm:$0xff]
          %v1970 = vld [vmem:[%s132 + $0x768] sm:$0xff]
          %v1971 = vld [vmem:[%s132 + $0x770] sm:$0xff]
          %v1972 = vld [vmem:[%s132 + $0x778] sm:$0xff]
          %v1973 = vld [vmem:[%s132 + $0x780] sm:$0xff]
          %v1974 = vld [vmem:[%s132 + $0x788] sm:$0xff]
          %v1975 = vld [vmem:[%s132 + $0x790] sm:$0xff]
          %v1976 = vld [vmem:[%s132 + $0x798] sm:$0xff]
          %v1977 = vld [vmem:[%s132 + $0x7a0] sm:$0xff]
          %v1978 = vld [vmem:[%s132 + $0x7a8] sm:$0xff]
          %v1979 = vld [vmem:[%s132 + $0x7b0] sm:$0xff]
          %v1980 = vld [vmem:[%s132 + $0x7b8] sm:$0xff]
          %v1981 = vld [vmem:[%s132 + $0x7c0] sm:$0xff]
          %v1982 = vld [vmem:[%s132 + $0x7c8] sm:$0xff]
          %v1983 = vld [vmem:[%s132 + $0x7d0] sm:$0xff]
          %v1984 = vld [vmem:[%s132 + $0x7d8] sm:$0xff]
          %v1985 = vld [vmem:[%s132 + $0x7e0] sm:$0xff]
          %v1986 = vld [vmem:[%s132 + $0x7e8] sm:$0xff]
          %v1987 = vld [vmem:[%s132 + $0x7f0] sm:$0xff]
          %v1988 = vld [vmem:[%s132 + $0x7f8] sm:$0xff]
          %v1989 = vld [vmem:[%s132 + $0x800] sm:$0xff]
          %v1990 = vld [vmem:[%s132 + $0x808] sm:$0xff]
          %v1991 = vld [vmem:[%s132 + $0x810] sm:$0xff]
          %v1992 = vld [vmem:[%s132 + $0x818] sm:$0xff]
          %v1993 = vld [vmem:[%s132 + $0x820] sm:$0xff]
          %v1994 = vld [vmem:[%s132 + $0x828] sm:$0xff]
          %v1995 = vld [vmem:[%s132 + $0x830] sm:$0xff]
          %v1996 = vld [vmem:[%s132 + $0x838] sm:$0xff]
          %v1997 = vld [vmem:[%s132 + $0x840] sm:$0xff]
          %v1998 = vld [vmem:[%s132 + $0x848] sm:$0xff]
          %v1999 = vld [vmem:[%s132 + $0x850] sm:$0xff]
          %v2000 = vld [vmem:[%s132 + $0x858] sm:$0xff]
          %v2001 = vld [vmem:[%s132 + $0x860] sm:$0xff]
          %v2002 = vld [vmem:[%s132 + $0x868] sm:$0xff]
          %v2003 = vld [vmem:[%s132 + $0x870] sm:$0xff]
          %v2004 = vld [vmem:[%s132 + $0x878] sm:$0xff]
          %v2005 = vld [vmem:[%s132 + $0x880] sm:$0xff]
          %v2006 = vld [vmem:[%s132 + $0x888] sm:$0xff]
          %v2007 = vld [vmem:[%s132 + $0x890] sm:$0xff]
          %v2008 = vld [vmem:[%s132 + $0x898] sm:$0xff]
          %v2009 = vld [vmem:[%s132 + $0x8a0] sm:$0xff]
          %v2010 = vld [vmem:[%s132 + $0x8a8] sm:$0xff]
          %v2011 = vld [vmem:[%s132 + $0x8b0] sm:$0xff]
          %v2012 = vld [vmem:[%s132 + $0x8b8] sm:$0xff]
          %v2013 = vld [vmem:[%s132 + $0x8c0] sm:$0xff]
          %v2014 = vld [vmem:[%s132 + $0x8c8] sm:$0xff]
          %v2015 = vld [vmem:[%s132 + $0x8d0] sm:$0xff]
          %v2016 = vld [vmem:[%s132 + $0x8d8] sm:$0xff]
          %v2017 = vld [vmem:[%s132 + $0x8e0] sm:$0xff]
          %v2018 = vld [vmem:[%s132 + $0x8e8] sm:$0xff]
          %v2019 = vld [vmem:[%s132 + $0x8f0] sm:$0xff]
          %v2020 = vld [vmem:[%s132 + $0x8f8] sm:$0xff]
          %v2021 = vld [vmem:[%s132 + $0x900] sm:$0xff]
          %v2022 = vld [vmem:[%s132 + $0x908] sm:$0xff]
          %v2023 = vld [vmem:[%s132 + $0x910] sm:$0xff]
          %v2024 = vld [vmem:[%s132 + $0x918] sm:$0xff]
          %v2025 = vld [vmem:[%s132 + $0x920] sm:$0xff]
          %v2026 = vld [vmem:[%s132 + $0x928] sm:$0xff]
          %v2027 = vld [vmem:[%s132 + $0x930] sm:$0xff]
          %v2028 = vld [vmem:[%s132 + $0x938] sm:$0xff]
          %v2029 = vld [vmem:[%s132 + $0x940] sm:$0xff]
          %v2030 = vld [vmem:[%s132 + $0x948] sm:$0xff]
          %v2031 = vld [vmem:[%s132 + $0x950] sm:$0xff]
          %v2032 = vld [vmem:[%s132 + $0x958] sm:$0xff]
          %v2033 = vld [vmem:[%s132 + $0x960] sm:$0xff]
          %v2034 = vld [vmem:[%s132 + $0x968] sm:$0xff]
          %v2035 = vld [vmem:[%s132 + $0x970] sm:$0xff]
          %v2036 = vld [vmem:[%s132 + $0x978] sm:$0xff]
          %v2037 = vld [vmem:[%s132 + $0x980] sm:$0xff]
          %v2038 = vld [vmem:[%s132 + $0x988] sm:$0xff]
          %v2039 = vld [vmem:[%s132 + $0x990] sm:$0xff]
          %v2040 = vld [vmem:[%s132 + $0x998] sm:$0xff]
          %v2041 = vld [vmem:[%s132 + $0x9a0] sm:$0xff]
          %v2042 = vld [vmem:[%s132 + $0x9a8] sm:$0xff]
          %v2043 = vld [vmem:[%s132 + $0x9b0] sm:$0xff]
          %v2044 = vld [vmem:[%s132 + $0x9b8] sm:$0xff]
          %v2045 = vld [vmem:[%s132 + $0x9c0] sm:$0xff]
          %v2046 = vsel %vm1420, 1, 0
          %v2047 = vsel %vm1421, 1, 0
          %v2048 = vsel %vm1422, 1, 0
          %v2049 = vsel %vm1423, 1, 0
          %v2050 = vsel %vm1424, 1, 0
          %v2051 = vsel %vm1425, 1, 0
          %v2052 = vsel %vm1426, 1, 0
          %v2053 = vsel %vm1427, 1, 0
          %v2054 = vsel %vm1428, 1, 0
          %v2055 = vsel %vm1429, 1, 0
          %v2056 = vsel %vm1430, 1, 0
          %v2057 = vsel %vm1431, 1, 0
          %v2058 = vsel %vm1432, 1, 0
          %v2059 = vsel %vm1433, 1, 0
          %v2060 = vsel %vm1434, 1, 0
          %v2061 = vsel %vm1435, 1, 0
          %v2062 = vsel %vm1436, 1, 0
          %v2063 = vsel %vm1437, 1, 0
          %v2064 = vsel %vm1438, 1, 0
          %v2065 = vsel %vm1439, 1, 0
          %v2066 = vsel %vm1440, 1, 0
          %v2067 = vsel %vm1441, 1, 0
          %v2068 = vsel %vm1442, 1, 0
          %v2069 = vsel %vm1443, 1, 0
          %v2070 = vsel %vm1444, 1, 0
          %v2071 = vsel %vm1445, 1, 0
          %v2072 = vsel %vm1446, 1, 0
          %v2073 = vsel %vm1447, 1, 0
          %v2074 = vsel %vm1448, 1, 0
          %v2075 = vsel %vm1449, 1, 0
          %v2076 = vsel %vm1450, 1, 0
          %v2077 = vsel %vm1451, 1, 0
          %v2078 = vsel %vm1452, 1, 0
          %v2079 = vsel %vm1453, 1, 0
          %v2080 = vsel %vm1454, 1, 0
          %v2081 = vsel %vm1455, 1, 0
          %v2082 = vsel %vm1456, 1, 0
          %v2083 = vsel %vm1457, 1, 0
          %v2084 = vsel %vm1458, 1, 0
          %v2085 = vsel %vm1459, 1, 0
          %v2086 = vsel %vm1460, 1, 0
          %v2087 = vsel %vm1461, 1, 0
          %v2088 = vsel %vm1462, 1, 0
          %v2089 = vsel %vm1463, 1, 0
          %v2090 = vsel %vm1464, 1, 0
          %v2091 = vsel %vm1465, 1, 0
          %v2092 = vsel %vm1466, 1, 0
          %v2093 = vsel %vm1467, 1, 0
          %v2094 = vsel %vm1468, 1, 0
          %v2095 = vsel %vm1469, 1, 0
          %v2096 = vsel %vm1470, 1, 0
          %v2097 = vsel %vm1471, 1, 0
          %v2098 = vsel %vm1472, 1, 0
          %v2099 = vsel %vm1473, 1, 0
          %v2100 = vsel %vm1474, 1, 0
          %v2101 = vsel %vm1475, 1, 0
          %v2102 = vsel %vm1476, 1, 0
          %v2103 = vsel %vm1477, 1, 0
          %v2104 = vsel %vm1478, 1, 0
          %v2105 = vsel %vm1479, 1, 0
          %v2106 = vsel %vm1480, 1, 0
          %v2107 = vsel %vm1481, 1, 0
          %v2108 = vsel %vm1482, 1, 0
          %v2109 = vsel %vm1483, 1, 0
          %v2110 = vsel %vm1484, 1, 0
          %v2111 = vsel %vm1485, 1, 0
          %v2112 = vsel %vm1486, 1, 0
          %v2113 = vsel %vm1487, 1, 0
          %v2114 = vsel %vm1488, 1, 0
          %v2115 = vsel %vm1489, 1, 0
          %v2116 = vsel %vm1490, 1, 0
          %v2117 = vsel %vm1491, 1, 0
          %v2118 = vsel %vm1492, 1, 0
          %v2119 = vsel %vm1493, 1, 0
          %v2120 = vsel %vm1494, 1, 0
          %v2121 = vsel %vm1495, 1, 0
          %v2122 = vsel %vm1496, 1, 0
          %v2123 = vsel %vm1497, 1, 0
          %v2124 = vsel %vm1498, 1, 0
          %v2125 = vsel %vm1499, 1, 0
          %v2126 = vsel %vm1500, 1, 0
          %v2127 = vsel %vm1501, 1, 0
          %v2128 = vsel %vm1502, 1, 0
          %v2129 = vsel %vm1503, 1, 0
          %v2130 = vsel %vm1504, 1, 0
          %v2131 = vsel %vm1505, 1, 0
          %v2132 = vsel %vm1506, 1, 0
          %v2133 = vsel %vm1507, 1, 0
          %v2134 = vsel %vm1508, 1, 0
          %v2135 = vsel %vm1509, 1, 0
          %v2136 = vsel %vm1510, 1, 0
          %v2137 = vsel %vm1511, 1, 0
          %v2138 = vsel %vm1512, 1, 0
          %v2139 = vsel %vm1513, 1, 0
          %v2140 = vsel %vm1514, 1, 0
          %v2141 = vsel %vm1515, 1, 0
          %v2142 = vsel %vm1516, 1, 0
          %v2143 = vsel %vm1517, 1, 0
          %v2144 = vsel %vm1518, 1, 0
          %v2145 = vsel %vm1519, 1, 0
          %v2146 = vsel %vm1520, 1, 0
          %v2147 = vsel %vm1521, 1, 0
          %v2148 = vsel %vm1522, 1, 0
          %v2149 = vsel %vm1523, 1, 0
          %v2150 = vsel %vm1524, 1, 0
          %v2151 = vsel %vm1525, 1, 0
          %v2152 = vsel %vm1526, 1, 0
          %v2153 = vsel %vm1527, 1, 0
          %v2154 = vsel %vm1528, 1, 0
          %v2155 = vsel %vm1529, 1, 0
          %v2156 = vsel %vm1530, 1, 0
          %v2157 = vsel %vm1531, 1, 0
          %v2158 = vsel %vm1532, 1, 0
          %v2159 = vsel %vm1533, 1, 0
          %v2160 = vsel %vm1534, 1, 0
          %v2161 = vsel %vm1535, 1, 0
          %v2162 = vsel %vm1536, 1, 0
          %v2163 = vsel %vm1537, 1, 0
          %v2164 = vsel %vm1538, 1, 0
          %v2165 = vsel %vm1539, 1, 0
          %v2166 = vsel %vm1540, 1, 0
          %v2167 = vsel %vm1541, 1, 0
          %v2168 = vsel %vm1542, 1, 0
          %v2169 = vsel %vm1543, 1, 0
          %v2170 = vsel %vm1544, 1, 0
          %v2171 = vsel %vm1545, 1, 0
          %v2172 = vsel %vm1546, 1, 0
          %v2173 = vsel %vm1547, 1, 0
          %v2174 = vsel %vm1548, 1, 0
          %v2175 = vsel %vm1549, 1, 0
          %v2176 = vsel %vm1550, 1, 0
          %v2177 = vsel %vm1551, 1, 0
          %v2178 = vsel %vm1552, 1, 0
          %v2179 = vsel %vm1553, 1, 0
          %v2180 = vsel %vm1554, 1, 0
          %v2181 = vsel %vm1555, 1, 0
          %v2182 = vsel %vm1556, 1, 0
          %v2183 = vsel %vm1557, 1, 0
          %v2184 = vsel %vm1558, 1, 0
          %v2185 = vsel %vm1559, 1, 0
          %v2186 = vsel %vm1560, 1, 0
          %v2187 = vsel %vm1561, 1, 0
          %v2188 = vsel %vm1562, 1, 0
          %v2189 = vsel %vm1563, 1, 0
          %v2190 = vsel %vm1564, 1, 0
          %v2191 = vsel %vm1565, 1, 0
          %v2192 = vsel %vm1566, 1, 0
          %v2193 = vsel %vm1567, 1, 0
          %v2194 = vsel %vm1568, 1, 0
          %v2195 = vsel %vm1569, 1, 0
          %v2196 = vsel %vm1570, 1, 0
          %v2197 = vsel %vm1571, 1, 0
          %v2198 = vsel %vm1572, 1, 0
          %v2199 = vsel %vm1573, 1, 0
          %v2200 = vsel %vm1574, 1, 0
          %v2201 = vsel %vm1575, 1, 0
          %v2202 = vsel %vm1576, 1, 0
          %v2203 = vsel %vm1577, 1, 0
          %v2204 = vsel %vm1578, 1, 0
          %v2205 = vsel %vm1579, 1, 0
          %v2206 = vsel %vm1580, 1, 0
          %v2207 = vsel %vm1581, 1, 0
          %v2208 = vsel %vm1582, 1, 0
          %v2209 = vsel %vm1583, 1, 0
          %v2210 = vsel %vm1584, 1, 0
          %v2211 = vsel %vm1585, 1, 0
          %v2212 = vsel %vm1586, 1, 0
          %v2213 = vsel %vm1587, 1, 0
          %v2214 = vsel %vm1588, 1, 0
          %v2215 = vsel %vm1589, 1, 0
          %v2216 = vsel %vm1590, 1, 0
          %v2217 = vsel %vm1591, 1, 0
          %v2218 = vsel %vm1592, 1, 0
          %v2219 = vsel %vm1593, 1, 0
          %v2220 = vsel %vm1594, 1, 0
          %v2221 = vsel %vm1595, 1, 0
          %v2222 = vsel %vm1596, 1, 0
          %v2223 = vsel %vm1597, 1, 0
          %v2224 = vsel %vm1598, 1, 0
          %v2225 = vsel %vm1599, 1, 0
          %v2226 = vsel %vm1600, 1, 0
          %v2227 = vsel %vm1601, 1, 0
          %v2228 = vsel %vm1602, 1, 0
          %v2229 = vsel %vm1603, 1, 0
          %v2230 = vsel %vm1604, 1, 0
          %v2231 = vsel %vm1605, 1, 0
          %v2232 = vsel %vm1606, 1, 0
          %v2233 = vsel %vm1607, 1, 0
          %v2234 = vsel %vm1608, 1, 0
          %v2235 = vsel %vm1609, 1, 0
          %v2236 = vsel %vm1610, 1, 0
          %v2237 = vsel %vm1611, 1, 0
          %v2238 = vsel %vm1612, 1, 0
          %v2239 = vsel %vm1613, 1, 0
          %v2240 = vsel %vm1614, 1, 0
          %v2241 = vsel %vm1615, 1, 0
          %v2242 = vsel %vm1616, 1, 0
          %v2243 = vsel %vm1617, 1, 0
          %v2244 = vsel %vm1618, 1, 0
          %v2245 = vsel %vm1619, 1, 0
          %v2246 = vsel %vm1620, 1, 0
          %v2247 = vsel %vm1621, 1, 0
          %v2248 = vsel %vm1622, 1, 0
          %v2249 = vsel %vm1623, 1, 0
          %v2250 = vsel %vm1624, 1, 0
          %v2251 = vsel %vm1625, 1, 0
          %v2252 = vsel %vm1626, 1, 0
          %v2253 = vsel %vm1627, 1, 0
          %v2254 = vsel %vm1628, 1, 0
          %v2255 = vsel %vm1629, 1, 0
          %v2256 = vsel %vm1630, 1, 0
          %v2257 = vsel %vm1631, 1, 0
          %v2258 = vsel %vm1632, 1, 0
          %v2259 = vsel %vm1633, 1, 0
          %v2260 = vsel %vm1634, 1, 0
          %v2261 = vsel %vm1635, 1, 0
          %v2262 = vsel %vm1636, 1, 0
          %v2263 = vsel %vm1637, 1, 0
          %v2264 = vsel %vm1638, 1, 0
          %v2265 = vsel %vm1639, 1, 0
          %v2266 = vsel %vm1640, 1, 0
          %v2267 = vsel %vm1641, 1, 0
          %v2268 = vsel %vm1642, 1, 0
          %v2269 = vsel %vm1643, 1, 0
          %v2270 = vsel %vm1644, 1, 0
          %v2271 = vsel %vm1645, 1, 0
          %v2272 = vsel %vm1646, 1, 0
          %v2273 = vsel %vm1647, 1, 0
          %v2274 = vsel %vm1648, 1, 0
          %v2275 = vsel %vm1649, 1, 0
          %v2276 = vsel %vm1650, 1, 0
          %v2277 = vsel %vm1651, 1, 0
          %v2278 = vsel %vm1652, 1, 0
          %v2279 = vsel %vm1653, 1, 0
          %v2280 = vsel %vm1654, 1, 0
          %v2281 = vsel %vm1655, 1, 0
          %v2282 = vsel %vm1656, 1, 0
          %v2283 = vsel %vm1657, 1, 0
          %v2284 = vsel %vm1658, 1, 0
          %v2285 = vsel %vm1659, 1, 0
          %v2286 = vsel %vm1660, 1, 0
          %v2287 = vsel %vm1661, 1, 0
          %v2288 = vsel %vm1662, 1, 0
          %v2289 = vsel %vm1663, 1, 0
          %v2290 = vsel %vm1664, 1, 0
          %v2291 = vsel %vm1665, 1, 0
          %v2292 = vsel %vm1666, 1, 0
          %v2293 = vsel %vm1667, 1, 0
          %v2294 = vsel %vm1668, 1, 0
          %v2295 = vsel %vm1669, 1, 0
          %v2296 = vsel %vm1670, 1, 0
          %v2297 = vsel %vm1671, 1, 0
          %v2298 = vsel %vm1672, 1, 0
          %v2299 = vsel %vm1673, 1, 0
          %v2300 = vsel %vm1674, 1, 0
          %v2301 = vsel %vm1675, 1, 0
          %v2302 = vsel %vm1676, 1, 0
          %v2303 = vsel %vm1677, 1, 0
          %v2304 = vsel %vm1678, 1, 0
          %v2305 = vsel %vm1679, 1, 0
          %v2306 = vsel %vm1680, 1, 0
          %v2307 = vsel %vm1681, 1, 0
          %v2308 = vsel %vm1682, 1, 0
          %v2309 = vsel %vm1683, 1, 0
          %v2310 = vsel %vm1684, 1, 0
          %v2311 = vsel %vm1685, 1, 0
          %v2312 = vsel %vm1686, 1, 0
          %v2313 = vsel %vm1687, 1, 0
          %v2314 = vsel %vm1688, 1, 0
          %v2315 = vsel %vm1689, 1, 0
          %v2316 = vsel %vm1690, 1, 0
          %v2317 = vsel %vm1691, 1, 0
          %v2318 = vsel %vm1692, 1, 0
          %v2319 = vsel %vm1693, 1, 0
          %v2320 = vsel %vm1694, 1, 0
          %v2321 = vsel %vm1695, 1, 0
          %v2322 = vsel %vm1696, 1, 0
          %v2323 = vsel %vm1697, 1, 0
          %v2324 = vsel %vm1698, 1, 0
          %v2325 = vsel %vm1699, 1, 0
          %v2326 = vsel %vm1700, 1, 0
          %v2327 = vsel %vm1701, 1, 0
          %v2328 = vsel %vm1702, 1, 0
          %v2329 = vsel %vm1703, 1, 0
          %v2330 = vsel %vm1704, 1, 0
          %v2331 = vsel %vm1705, 1, 0
          %v2332 = vsel %vm1706, 1, 0
          %v2333 = vsel %vm1707, 1, 0
          %v2334 = vsel %vm1708, 1, 0
          %v2335 = vsel %vm1709, 1, 0
          %v2336 = vsel %vm1710, 1, 0
          %v2337 = vsel %vm1711, 1, 0
          %v2338 = vsel %vm1712, 1, 0
          %v2339 = vsel %vm1713, 1, 0
          %v2340 = vsel %vm1714, 1, 0
          %v2341 = vsel %vm1715, 1, 0
          %v2342 = vsel %vm1716, 1, 0
          %v2343 = vsel %vm1717, 1, 0
          %v2344 = vsel %vm1718, 1, 0
          %v2345 = vsel %vm1719, 1, 0
          %v2346 = vsel %vm1720, 1, 0
          %v2347 = vsel %vm1721, 1, 0
          %v2348 = vsel %vm1722, 1, 0
          %v2349 = vsel %vm1723, 1, 0
          %v2350 = vsel %vm1724, 1, 0
          %v2351 = vsel %vm1725, 1, 0
          %v2352 = vsel %vm1726, 1, 0
          %v2353 = vsel %vm1727, 1, 0
          %v2354 = vsel %vm1728, 1, 0
          %v2355 = vsel %vm1729, 1, 0
          %v2356 = vsel %vm1730, 1, 0
          %v2357 = vsel %vm1731, 1, 0
          %v2358 = vsel %vm1732, 1, 0
          %vm2359 = vcmp.eq.s32.totalorder %v2046, 1
          %vm2360 = vcmp.eq.s32.totalorder %v2047, 1
          %vm2361 = vcmp.eq.s32.totalorder %v2048, 1
          %vm2362 = vcmp.eq.s32.totalorder %v2049, 1
          %vm2363 = vcmp.eq.s32.totalorder %v2050, 1
          %vm2364 = vcmp.eq.s32.totalorder %v2051, 1
          %vm2365 = vcmp.eq.s32.totalorder %v2052, 1
          %vm2366 = vcmp.eq.s32.totalorder %v2053, 1
          %vm2367 = vcmp.eq.s32.totalorder %v2054, 1
          %vm2368 = vcmp.eq.s32.totalorder %v2055, 1
          %vm2369 = vcmp.eq.s32.totalorder %v2056, 1
          %vm2370 = vcmp.eq.s32.totalorder %v2057, 1
          %vm2371 = vcmp.eq.s32.totalorder %v2058, 1
          %vm2372 = vcmp.eq.s32.totalorder %v2059, 1
          %vm2373 = vcmp.eq.s32.totalorder %v2060, 1
          %vm2374 = vcmp.eq.s32.totalorder %v2061, 1
          %vm2375 = vcmp.eq.s32.totalorder %v2062, 1
          %vm2376 = vcmp.eq.s32.totalorder %v2063, 1
          %vm2377 = vcmp.eq.s32.totalorder %v2064, 1
          %vm2378 = vcmp.eq.s32.totalorder %v2065, 1
          %vm2379 = vcmp.eq.s32.totalorder %v2066, 1
          %vm2380 = vcmp.eq.s32.totalorder %v2067, 1
          %vm2381 = vcmp.eq.s32.totalorder %v2068, 1
          %vm2382 = vcmp.eq.s32.totalorder %v2069, 1
          %vm2383 = vcmp.eq.s32.totalorder %v2070, 1
          %vm2384 = vcmp.eq.s32.totalorder %v2071, 1
          %vm2385 = vcmp.eq.s32.totalorder %v2072, 1
          %vm2386 = vcmp.eq.s32.totalorder %v2073, 1
          %vm2387 = vcmp.eq.s32.totalorder %v2074, 1
          %vm2388 = vcmp.eq.s32.totalorder %v2075, 1
          %vm2389 = vcmp.eq.s32.totalorder %v2076, 1
          %vm2390 = vcmp.eq.s32.totalorder %v2077, 1
          %vm2391 = vcmp.eq.s32.totalorder %v2078, 1
          %vm2392 = vcmp.eq.s32.totalorder %v2079, 1
          %vm2393 = vcmp.eq.s32.totalorder %v2080, 1
          %vm2394 = vcmp.eq.s32.totalorder %v2081, 1
          %vm2395 = vcmp.eq.s32.totalorder %v2082, 1
          %vm2396 = vcmp.eq.s32.totalorder %v2083, 1
          %vm2397 = vcmp.eq.s32.totalorder %v2084, 1
          %vm2398 = vcmp.eq.s32.totalorder %v2085, 1
          %vm2399 = vcmp.eq.s32.totalorder %v2086, 1
          %vm2400 = vcmp.eq.s32.totalorder %v2087, 1
          %vm2401 = vcmp.eq.s32.totalorder %v2088, 1
          %vm2402 = vcmp.eq.s32.totalorder %v2089, 1
          %vm2403 = vcmp.eq.s32.totalorder %v2090, 1
          %vm2404 = vcmp.eq.s32.totalorder %v2091, 1
          %vm2405 = vcmp.eq.s32.totalorder %v2092, 1
          %vm2406 = vcmp.eq.s32.totalorder %v2093, 1
          %vm2407 = vcmp.eq.s32.totalorder %v2094, 1
          %vm2408 = vcmp.eq.s32.totalorder %v2095, 1
          %vm2409 = vcmp.eq.s32.totalorder %v2096, 1
          %vm2410 = vcmp.eq.s32.totalorder %v2097, 1
          %vm2411 = vcmp.eq.s32.totalorder %v2098, 1
          %vm2412 = vcmp.eq.s32.totalorder %v2099, 1
          %vm2413 = vcmp.eq.s32.totalorder %v2100, 1
          %vm2414 = vcmp.eq.s32.totalorder %v2101, 1
          %vm2415 = vcmp.eq.s32.totalorder %v2102, 1
          %vm2416 = vcmp.eq.s32.totalorder %v2103, 1
          %vm2417 = vcmp.eq.s32.totalorder %v2104, 1
          %vm2418 = vcmp.eq.s32.totalorder %v2105, 1
          %vm2419 = vcmp.eq.s32.totalorder %v2106, 1
          %vm2420 = vcmp.eq.s32.totalorder %v2107, 1
          %vm2421 = vcmp.eq.s32.totalorder %v2108, 1
          %vm2422 = vcmp.eq.s32.totalorder %v2109, 1
          %vm2423 = vcmp.eq.s32.totalorder %v2110, 1
          %vm2424 = vcmp.eq.s32.totalorder %v2111, 1
          %vm2425 = vcmp.eq.s32.totalorder %v2112, 1
          %vm2426 = vcmp.eq.s32.totalorder %v2113, 1
          %vm2427 = vcmp.eq.s32.totalorder %v2114, 1
          %vm2428 = vcmp.eq.s32.totalorder %v2115, 1
          %vm2429 = vcmp.eq.s32.totalorder %v2116, 1
          %vm2430 = vcmp.eq.s32.totalorder %v2117, 1
          %vm2431 = vcmp.eq.s32.totalorder %v2118, 1
          %vm2432 = vcmp.eq.s32.totalorder %v2119, 1
          %vm2433 = vcmp.eq.s32.totalorder %v2120, 1
          %vm2434 = vcmp.eq.s32.totalorder %v2121, 1
          %vm2435 = vcmp.eq.s32.totalorder %v2122, 1
          %vm2436 = vcmp.eq.s32.totalorder %v2123, 1
          %vm2437 = vcmp.eq.s32.totalorder %v2124, 1
          %vm2438 = vcmp.eq.s32.totalorder %v2125, 1
          %vm2439 = vcmp.eq.s32.totalorder %v2126, 1
          %vm2440 = vcmp.eq.s32.totalorder %v2127, 1
          %vm2441 = vcmp.eq.s32.totalorder %v2128, 1
          %vm2442 = vcmp.eq.s32.totalorder %v2129, 1
          %vm2443 = vcmp.eq.s32.totalorder %v2130, 1
          %vm2444 = vcmp.eq.s32.totalorder %v2131, 1
          %vm2445 = vcmp.eq.s32.totalorder %v2132, 1
          %vm2446 = vcmp.eq.s32.totalorder %v2133, 1
          %vm2447 = vcmp.eq.s32.totalorder %v2134, 1
          %vm2448 = vcmp.eq.s32.totalorder %v2135, 1
          %vm2449 = vcmp.eq.s32.totalorder %v2136, 1
          %vm2450 = vcmp.eq.s32.totalorder %v2137, 1
          %vm2451 = vcmp.eq.s32.totalorder %v2138, 1
          %vm2452 = vcmp.eq.s32.totalorder %v2139, 1
          %vm2453 = vcmp.eq.s32.totalorder %v2140, 1
          %vm2454 = vcmp.eq.s32.totalorder %v2141, 1
          %vm2455 = vcmp.eq.s32.totalorder %v2142, 1
          %vm2456 = vcmp.eq.s32.totalorder %v2143, 1
          %vm2457 = vcmp.eq.s32.totalorder %v2144, 1
          %vm2458 = vcmp.eq.s32.totalorder %v2145, 1
          %vm2459 = vcmp.eq.s32.totalorder %v2146, 1
          %vm2460 = vcmp.eq.s32.totalorder %v2147, 1
          %vm2461 = vcmp.eq.s32.totalorder %v2148, 1
          %vm2462 = vcmp.eq.s32.totalorder %v2149, 1
          %vm2463 = vcmp.eq.s32.totalorder %v2150, 1
          %vm2464 = vcmp.eq.s32.totalorder %v2151, 1
          %vm2465 = vcmp.eq.s32.totalorder %v2152, 1
          %vm2466 = vcmp.eq.s32.totalorder %v2153, 1
          %vm2467 = vcmp.eq.s32.totalorder %v2154, 1
          %vm2468 = vcmp.eq.s32.totalorder %v2155, 1
          %vm2469 = vcmp.eq.s32.totalorder %v2156, 1
          %vm2470 = vcmp.eq.s32.totalorder %v2157, 1
          %vm2471 = vcmp.eq.s32.totalorder %v2158, 1
          %vm2472 = vcmp.eq.s32.totalorder %v2159, 1
          %vm2473 = vcmp.eq.s32.totalorder %v2160, 1
          %vm2474 = vcmp.eq.s32.totalorder %v2161, 1
          %vm2475 = vcmp.eq.s32.totalorder %v2162, 1
          %vm2476 = vcmp.eq.s32.totalorder %v2163, 1
          %vm2477 = vcmp.eq.s32.totalorder %v2164, 1
          %vm2478 = vcmp.eq.s32.totalorder %v2165, 1
          %vm2479 = vcmp.eq.s32.totalorder %v2166, 1
          %vm2480 = vcmp.eq.s32.totalorder %v2167, 1
          %vm2481 = vcmp.eq.s32.totalorder %v2168, 1
          %vm2482 = vcmp.eq.s32.totalorder %v2169, 1
          %vm2483 = vcmp.eq.s32.totalorder %v2170, 1
          %vm2484 = vcmp.eq.s32.totalorder %v2171, 1
          %vm2485 = vcmp.eq.s32.totalorder %v2172, 1
          %vm2486 = vcmp.eq.s32.totalorder %v2173, 1
          %vm2487 = vcmp.eq.s32.totalorder %v2174, 1
          %vm2488 = vcmp.eq.s32.totalorder %v2175, 1
          %vm2489 = vcmp.eq.s32.totalorder %v2176, 1
          %vm2490 = vcmp.eq.s32.totalorder %v2177, 1
          %vm2491 = vcmp.eq.s32.totalorder %v2178, 1
          %vm2492 = vcmp.eq.s32.totalorder %v2179, 1
          %vm2493 = vcmp.eq.s32.totalorder %v2180, 1
          %vm2494 = vcmp.eq.s32.totalorder %v2181, 1
          %vm2495 = vcmp.eq.s32.totalorder %v2182, 1
          %vm2496 = vcmp.eq.s32.totalorder %v2183, 1
          %vm2497 = vcmp.eq.s32.totalorder %v2184, 1
          %vm2498 = vcmp.eq.s32.totalorder %v2185, 1
          %vm2499 = vcmp.eq.s32.totalorder %v2186, 1
          %vm2500 = vcmp.eq.s32.totalorder %v2187, 1
          %vm2501 = vcmp.eq.s32.totalorder %v2188, 1
          %vm2502 = vcmp.eq.s32.totalorder %v2189, 1
          %vm2503 = vcmp.eq.s32.totalorder %v2190, 1
          %vm2504 = vcmp.eq.s32.totalorder %v2191, 1
          %vm2505 = vcmp.eq.s32.totalorder %v2192, 1
          %vm2506 = vcmp.eq.s32.totalorder %v2193, 1
          %vm2507 = vcmp.eq.s32.totalorder %v2194, 1
          %vm2508 = vcmp.eq.s32.totalorder %v2195, 1
          %vm2509 = vcmp.eq.s32.totalorder %v2196, 1
          %vm2510 = vcmp.eq.s32.totalorder %v2197, 1
          %vm2511 = vcmp.eq.s32.totalorder %v2198, 1
          %vm2512 = vcmp.eq.s32.totalorder %v2199, 1
          %vm2513 = vcmp.eq.s32.totalorder %v2200, 1
          %vm2514 = vcmp.eq.s32.totalorder %v2201, 1
          %vm2515 = vcmp.eq.s32.totalorder %v2202, 1
          %vm2516 = vcmp.eq.s32.totalorder %v2203, 1
          %vm2517 = vcmp.eq.s32.totalorder %v2204, 1
          %vm2518 = vcmp.eq.s32.totalorder %v2205, 1
          %vm2519 = vcmp.eq.s32.totalorder %v2206, 1
          %vm2520 = vcmp.eq.s32.totalorder %v2207, 1
          %vm2521 = vcmp.eq.s32.totalorder %v2208, 1
          %vm2522 = vcmp.eq.s32.totalorder %v2209, 1
          %vm2523 = vcmp.eq.s32.totalorder %v2210, 1
          %vm2524 = vcmp.eq.s32.totalorder %v2211, 1
          %vm2525 = vcmp.eq.s32.totalorder %v2212, 1
          %vm2526 = vcmp.eq.s32.totalorder %v2213, 1
          %vm2527 = vcmp.eq.s32.totalorder %v2214, 1
          %vm2528 = vcmp.eq.s32.totalorder %v2215, 1
          %vm2529 = vcmp.eq.s32.totalorder %v2216, 1
          %vm2530 = vcmp.eq.s32.totalorder %v2217, 1
          %vm2531 = vcmp.eq.s32.totalorder %v2218, 1
          %vm2532 = vcmp.eq.s32.totalorder %v2219, 1
          %vm2533 = vcmp.eq.s32.totalorder %v2220, 1
          %vm2534 = vcmp.eq.s32.totalorder %v2221, 1
          %vm2535 = vcmp.eq.s32.totalorder %v2222, 1
          %vm2536 = vcmp.eq.s32.totalorder %v2223, 1
          %vm2537 = vcmp.eq.s32.totalorder %v2224, 1
          %vm2538 = vcmp.eq.s32.totalorder %v2225, 1
          %vm2539 = vcmp.eq.s32.totalorder %v2226, 1
          %vm2540 = vcmp.eq.s32.totalorder %v2227, 1
          %vm2541 = vcmp.eq.s32.totalorder %v2228, 1
          %vm2542 = vcmp.eq.s32.totalorder %v2229, 1
          %vm2543 = vcmp.eq.s32.totalorder %v2230, 1
          %vm2544 = vcmp.eq.s32.totalorder %v2231, 1
          %vm2545 = vcmp.eq.s32.totalorder %v2232, 1
          %vm2546 = vcmp.eq.s32.totalorder %v2233, 1
          %vm2547 = vcmp.eq.s32.totalorder %v2234, 1
          %vm2548 = vcmp.eq.s32.totalorder %v2235, 1
          %vm2549 = vcmp.eq.s32.totalorder %v2236, 1
          %vm2550 = vcmp.eq.s32.totalorder %v2237, 1
          %vm2551 = vcmp.eq.s32.totalorder %v2238, 1
          %vm2552 = vcmp.eq.s32.totalorder %v2239, 1
          %vm2553 = vcmp.eq.s32.totalorder %v2240, 1
          %vm2554 = vcmp.eq.s32.totalorder %v2241, 1
          %vm2555 = vcmp.eq.s32.totalorder %v2242, 1
          %vm2556 = vcmp.eq.s32.totalorder %v2243, 1
          %vm2557 = vcmp.eq.s32.totalorder %v2244, 1
          %vm2558 = vcmp.eq.s32.totalorder %v2245, 1
          %vm2559 = vcmp.eq.s32.totalorder %v2246, 1
          %vm2560 = vcmp.eq.s32.totalorder %v2247, 1
          %vm2561 = vcmp.eq.s32.totalorder %v2248, 1
          %vm2562 = vcmp.eq.s32.totalorder %v2249, 1
          %vm2563 = vcmp.eq.s32.totalorder %v2250, 1
          %vm2564 = vcmp.eq.s32.totalorder %v2251, 1
          %vm2565 = vcmp.eq.s32.totalorder %v2252, 1
          %vm2566 = vcmp.eq.s32.totalorder %v2253, 1
          %vm2567 = vcmp.eq.s32.totalorder %v2254, 1
          %vm2568 = vcmp.eq.s32.totalorder %v2255, 1
          %vm2569 = vcmp.eq.s32.totalorder %v2256, 1
          %vm2570 = vcmp.eq.s32.totalorder %v2257, 1
          %vm2571 = vcmp.eq.s32.totalorder %v2258, 1
          %vm2572 = vcmp.eq.s32.totalorder %v2259, 1
          %vm2573 = vcmp.eq.s32.totalorder %v2260, 1
          %vm2574 = vcmp.eq.s32.totalorder %v2261, 1
          %vm2575 = vcmp.eq.s32.totalorder %v2262, 1
          %vm2576 = vcmp.eq.s32.totalorder %v2263, 1
          %vm2577 = vcmp.eq.s32.totalorder %v2264, 1
          %vm2578 = vcmp.eq.s32.totalorder %v2265, 1
          %vm2579 = vcmp.eq.s32.totalorder %v2266, 1
          %vm2580 = vcmp.eq.s32.totalorder %v2267, 1
          %vm2581 = vcmp.eq.s32.totalorder %v2268, 1
          %vm2582 = vcmp.eq.s32.totalorder %v2269, 1
          %vm2583 = vcmp.eq.s32.totalorder %v2270, 1
          %vm2584 = vcmp.eq.s32.totalorder %v2271, 1
          %vm2585 = vcmp.eq.s32.totalorder %v2272, 1
          %vm2586 = vcmp.eq.s32.totalorder %v2273, 1
          %vm2587 = vcmp.eq.s32.totalorder %v2274, 1
          %vm2588 = vcmp.eq.s32.totalorder %v2275, 1
          %vm2589 = vcmp.eq.s32.totalorder %v2276, 1
          %vm2590 = vcmp.eq.s32.totalorder %v2277, 1
          %vm2591 = vcmp.eq.s32.totalorder %v2278, 1
          %vm2592 = vcmp.eq.s32.totalorder %v2279, 1
          %vm2593 = vcmp.eq.s32.totalorder %v2280, 1
          %vm2594 = vcmp.eq.s32.totalorder %v2281, 1
          %vm2595 = vcmp.eq.s32.totalorder %v2282, 1
          %vm2596 = vcmp.eq.s32.totalorder %v2283, 1
          %vm2597 = vcmp.eq.s32.totalorder %v2284, 1
          %vm2598 = vcmp.eq.s32.totalorder %v2285, 1
          %vm2599 = vcmp.eq.s32.totalorder %v2286, 1
          %vm2600 = vcmp.eq.s32.totalorder %v2287, 1
          %vm2601 = vcmp.eq.s32.totalorder %v2288, 1
          %vm2602 = vcmp.eq.s32.totalorder %v2289, 1
          %vm2603 = vcmp.eq.s32.totalorder %v2290, 1
          %vm2604 = vcmp.eq.s32.totalorder %v2291, 1
          %vm2605 = vcmp.eq.s32.totalorder %v2292, 1
          %vm2606 = vcmp.eq.s32.totalorder %v2293, 1
          %vm2607 = vcmp.eq.s32.totalorder %v2294, 1
          %vm2608 = vcmp.eq.s32.totalorder %v2295, 1
          %vm2609 = vcmp.eq.s32.totalorder %v2296, 1
          %vm2610 = vcmp.eq.s32.totalorder %v2297, 1
          %vm2611 = vcmp.eq.s32.totalorder %v2298, 1
          %vm2612 = vcmp.eq.s32.totalorder %v2299, 1
          %vm2613 = vcmp.eq.s32.totalorder %v2300, 1
          %vm2614 = vcmp.eq.s32.totalorder %v2301, 1
          %vm2615 = vcmp.eq.s32.totalorder %v2302, 1
          %vm2616 = vcmp.eq.s32.totalorder %v2303, 1
          %vm2617 = vcmp.eq.s32.totalorder %v2304, 1
          %vm2618 = vcmp.eq.s32.totalorder %v2305, 1
          %vm2619 = vcmp.eq.s32.totalorder %v2306, 1
          %vm2620 = vcmp.eq.s32.totalorder %v2307, 1
          %vm2621 = vcmp.eq.s32.totalorder %v2308, 1
          %vm2622 = vcmp.eq.s32.totalorder %v2309, 1
          %vm2623 = vcmp.eq.s32.totalorder %v2310, 1
          %vm2624 = vcmp.eq.s32.totalorder %v2311, 1
          %vm2625 = vcmp.eq.s32.totalorder %v2312, 1
          %vm2626 = vcmp.eq.s32.totalorder %v2313, 1
          %vm2627 = vcmp.eq.s32.totalorder %v2314, 1
          %vm2628 = vcmp.eq.s32.totalorder %v2315, 1
          %vm2629 = vcmp.eq.s32.totalorder %v2316, 1
          %vm2630 = vcmp.eq.s32.totalorder %v2317, 1
          %vm2631 = vcmp.eq.s32.totalorder %v2318, 1
          %vm2632 = vcmp.eq.s32.totalorder %v2319, 1
          %vm2633 = vcmp.eq.s32.totalorder %v2320, 1
          %vm2634 = vcmp.eq.s32.totalorder %v2321, 1
          %vm2635 = vcmp.eq.s32.totalorder %v2322, 1
          %vm2636 = vcmp.eq.s32.totalorder %v2323, 1
          %vm2637 = vcmp.eq.s32.totalorder %v2324, 1
          %vm2638 = vcmp.eq.s32.totalorder %v2325, 1
          %vm2639 = vcmp.eq.s32.totalorder %v2326, 1
          %vm2640 = vcmp.eq.s32.totalorder %v2327, 1
          %vm2641 = vcmp.eq.s32.totalorder %v2328, 1
          %vm2642 = vcmp.eq.s32.totalorder %v2329, 1
          %vm2643 = vcmp.eq.s32.totalorder %v2330, 1
          %vm2644 = vcmp.eq.s32.totalorder %v2331, 1
          %vm2645 = vcmp.eq.s32.totalorder %v2332, 1
          %vm2646 = vcmp.eq.s32.totalorder %v2333, 1
          %vm2647 = vcmp.eq.s32.totalorder %v2334, 1
          %vm2648 = vcmp.eq.s32.totalorder %v2335, 1
          %vm2649 = vcmp.eq.s32.totalorder %v2336, 1
          %vm2650 = vcmp.eq.s32.totalorder %v2337, 1
          %vm2651 = vcmp.eq.s32.totalorder %v2338, 1
          %vm2652 = vcmp.eq.s32.totalorder %v2339, 1
          %vm2653 = vcmp.eq.s32.totalorder %v2340, 1
          %vm2654 = vcmp.eq.s32.totalorder %v2341, 1
          %vm2655 = vcmp.eq.s32.totalorder %v2342, 1
          %vm2656 = vcmp.eq.s32.totalorder %v2343, 1
          %vm2657 = vcmp.eq.s32.totalorder %v2344, 1
          %vm2658 = vcmp.eq.s32.totalorder %v2345, 1
          %vm2659 = vcmp.eq.s32.totalorder %v2346, 1
          %vm2660 = vcmp.eq.s32.totalorder %v2347, 1
          %vm2661 = vcmp.eq.s32.totalorder %v2348, 1
          %vm2662 = vcmp.eq.s32.totalorder %v2349, 1
          %vm2663 = vcmp.eq.s32.totalorder %v2350, 1
          %vm2664 = vcmp.eq.s32.totalorder %v2351, 1
          %vm2665 = vcmp.eq.s32.totalorder %v2352, 1
          %vm2666 = vcmp.eq.s32.totalorder %v2353, 1
          %vm2667 = vcmp.eq.s32.totalorder %v2354, 1
          %vm2668 = vcmp.eq.s32.totalorder %v2355, 1
          %vm2669 = vcmp.eq.s32.totalorder %v2356, 1
          %vm2670 = vcmp.eq.s32.totalorder %v2357, 1
          %vm2671 = vcmp.eq.s32.totalorder %v2358, 1
          %v2672 = vsel %vm2359, %v1733, 0.0
          %v2673 = vsel %vm2360, %v1734, 0.0
          %v2674 = vsel %vm2361, %v1735, 0.0
          %v2675 = vsel %vm2362, %v1736, 0.0
          %v2676 = vsel %vm2363, %v1737, 0.0
          %v2677 = vsel %vm2364, %v1738, 0.0
          %v2678 = vsel %vm2365, %v1739, 0.0
          %v2679 = vsel %vm2366, %v1740, 0.0
          %v2680 = vsel %vm2367, %v1741, 0.0
          %v2681 = vsel %vm2368, %v1742, 0.0
          %v2682 = vsel %vm2369, %v1743, 0.0
          %v2683 = vsel %vm2370, %v1744, 0.0
          %v2684 = vsel %vm2371, %v1745, 0.0
          %v2685 = vsel %vm2372, %v1746, 0.0
          %v2686 = vsel %vm2373, %v1747, 0.0
          %v2687 = vsel %vm2374, %v1748, 0.0
          %v2688 = vsel %vm2375, %v1749, 0.0
          %v2689 = vsel %vm2376, %v1750, 0.0
          %v2690 = vsel %vm2377, %v1751, 0.0
          %v2691 = vsel %vm2378, %v1752, 0.0
          %v2692 = vsel %vm2379, %v1753, 0.0
          %v2693 = vsel %vm2380, %v1754, 0.0
          %v2694 = vsel %vm2381, %v1755, 0.0
          %v2695 = vsel %vm2382, %v1756, 0.0
          %v2696 = vsel %vm2383, %v1757, 0.0
          %v2697 = vsel %vm2384, %v1758, 0.0
          %v2698 = vsel %vm2385, %v1759, 0.0
          %v2699 = vsel %vm2386, %v1760, 0.0
          %v2700 = vsel %vm2387, %v1761, 0.0
          %v2701 = vsel %vm2388, %v1762, 0.0
          %v2702 = vsel %vm2389, %v1763, 0.0
          %v2703 = vsel %vm2390, %v1764, 0.0
          %v2704 = vsel %vm2391, %v1765, 0.0
          %v2705 = vsel %vm2392, %v1766, 0.0
          %v2706 = vsel %vm2393, %v1767, 0.0
          %v2707 = vsel %vm2394, %v1768, 0.0
          %v2708 = vsel %vm2395, %v1769, 0.0
          %v2709 = vsel %vm2396, %v1770, 0.0
          %v2710 = vsel %vm2397, %v1771, 0.0
          %v2711 = vsel %vm2398, %v1772, 0.0
          %v2712 = vsel %vm2399, %v1773, 0.0
          %v2713 = vsel %vm2400, %v1774, 0.0
          %v2714 = vsel %vm2401, %v1775, 0.0
          %v2715 = vsel %vm2402, %v1776, 0.0
          %v2716 = vsel %vm2403, %v1777, 0.0
          %v2717 = vsel %vm2404, %v1778, 0.0
          %v2718 = vsel %vm2405, %v1779, 0.0
          %v2719 = vsel %vm2406, %v1780, 0.0
          %v2720 = vsel %vm2407, %v1781, 0.0
          %v2721 = vsel %vm2408, %v1782, 0.0
          %v2722 = vsel %vm2409, %v1783, 0.0
          %v2723 = vsel %vm2410, %v1784, 0.0
          %v2724 = vsel %vm2411, %v1785, 0.0
          %v2725 = vsel %vm2412, %v1786, 0.0
          %v2726 = vsel %vm2413, %v1787, 0.0
          %v2727 = vsel %vm2414, %v1788, 0.0
          %v2728 = vsel %vm2415, %v1789, 0.0
          %v2729 = vsel %vm2416, %v1790, 0.0
          %v2730 = vsel %vm2417, %v1791, 0.0
          %v2731 = vsel %vm2418, %v1792, 0.0
          %v2732 = vsel %vm2419, %v1793, 0.0
          %v2733 = vsel %vm2420, %v1794, 0.0
          %v2734 = vsel %vm2421, %v1795, 0.0
          %v2735 = vsel %vm2422, %v1796, 0.0
          %v2736 = vsel %vm2423, %v1797, 0.0
          %v2737 = vsel %vm2424, %v1798, 0.0
          %v2738 = vsel %vm2425, %v1799, 0.0
          %v2739 = vsel %vm2426, %v1800, 0.0
          %v2740 = vsel %vm2427, %v1801, 0.0
          %v2741 = vsel %vm2428, %v1802, 0.0
          %v2742 = vsel %vm2429, %v1803, 0.0
          %v2743 = vsel %vm2430, %v1804, 0.0
          %v2744 = vsel %vm2431, %v1805, 0.0
          %v2745 = vsel %vm2432, %v1806, 0.0
          %v2746 = vsel %vm2433, %v1807, 0.0
          %v2747 = vsel %vm2434, %v1808, 0.0
          %v2748 = vsel %vm2435, %v1809, 0.0
          %v2749 = vsel %vm2436, %v1810, 0.0
          %v2750 = vsel %vm2437, %v1811, 0.0
          %v2751 = vsel %vm2438, %v1812, 0.0
          %v2752 = vsel %vm2439, %v1813, 0.0
          %v2753 = vsel %vm2440, %v1814, 0.0
          %v2754 = vsel %vm2441, %v1815, 0.0
          %v2755 = vsel %vm2442, %v1816, 0.0
          %v2756 = vsel %vm2443, %v1817, 0.0
          %v2757 = vsel %vm2444, %v1818, 0.0
          %v2758 = vsel %vm2445, %v1819, 0.0
          %v2759 = vsel %vm2446, %v1820, 0.0
          %v2760 = vsel %vm2447, %v1821, 0.0
          %v2761 = vsel %vm2448, %v1822, 0.0
          %v2762 = vsel %vm2449, %v1823, 0.0
          %v2763 = vsel %vm2450, %v1824, 0.0
          %v2764 = vsel %vm2451, %v1825, 0.0
          %v2765 = vsel %vm2452, %v1826, 0.0
          %v2766 = vsel %vm2453, %v1827, 0.0
          %v2767 = vsel %vm2454, %v1828, 0.0
          %v2768 = vsel %vm2455, %v1829, 0.0
          %v2769 = vsel %vm2456, %v1830, 0.0
          %v2770 = vsel %vm2457, %v1831, 0.0
          %v2771 = vsel %vm2458, %v1832, 0.0
          %v2772 = vsel %vm2459, %v1833, 0.0
          %v2773 = vsel %vm2460, %v1834, 0.0
          %v2774 = vsel %vm2461, %v1835, 0.0
          %v2775 = vsel %vm2462, %v1836, 0.0
          %v2776 = vsel %vm2463, %v1837, 0.0
          %v2777 = vsel %vm2464, %v1838, 0.0
          %v2778 = vsel %vm2465, %v1839, 0.0
          %v2779 = vsel %vm2466, %v1840, 0.0
          %v2780 = vsel %vm2467, %v1841, 0.0
          %v2781 = vsel %vm2468, %v1842, 0.0
          %v2782 = vsel %vm2469, %v1843, 0.0
          %v2783 = vsel %vm2470, %v1844, 0.0
          %v2784 = vsel %vm2471, %v1845, 0.0
          %v2785 = vsel %vm2472, %v1846, 0.0
          %v2786 = vsel %vm2473, %v1847, 0.0
          %v2787 = vsel %vm2474, %v1848, 0.0
          %v2788 = vsel %vm2475, %v1849, 0.0
          %v2789 = vsel %vm2476, %v1850, 0.0
          %v2790 = vsel %vm2477, %v1851, 0.0
          %v2791 = vsel %vm2478, %v1852, 0.0
          %v2792 = vsel %vm2479, %v1853, 0.0
          %v2793 = vsel %vm2480, %v1854, 0.0
          %v2794 = vsel %vm2481, %v1855, 0.0
          %v2795 = vsel %vm2482, %v1856, 0.0
          %v2796 = vsel %vm2483, %v1857, 0.0
          %v2797 = vsel %vm2484, %v1858, 0.0
          %v2798 = vsel %vm2485, %v1859, 0.0
          %v2799 = vsel %vm2486, %v1860, 0.0
          %v2800 = vsel %vm2487, %v1861, 0.0
          %v2801 = vsel %vm2488, %v1862, 0.0
          %v2802 = vsel %vm2489, %v1863, 0.0
          %v2803 = vsel %vm2490, %v1864, 0.0
          %v2804 = vsel %vm2491, %v1865, 0.0
          %v2805 = vsel %vm2492, %v1866, 0.0
          %v2806 = vsel %vm2493, %v1867, 0.0
          %v2807 = vsel %vm2494, %v1868, 0.0
          %v2808 = vsel %vm2495, %v1869, 0.0
          %v2809 = vsel %vm2496, %v1870, 0.0
          %v2810 = vsel %vm2497, %v1871, 0.0
          %v2811 = vsel %vm2498, %v1872, 0.0
          %v2812 = vsel %vm2499, %v1873, 0.0
          %v2813 = vsel %vm2500, %v1874, 0.0
          %v2814 = vsel %vm2501, %v1875, 0.0
          %v2815 = vsel %vm2502, %v1876, 0.0
          %v2816 = vsel %vm2503, %v1877, 0.0
          %v2817 = vsel %vm2504, %v1878, 0.0
          %v2818 = vsel %vm2505, %v1879, 0.0
          %v2819 = vsel %vm2506, %v1880, 0.0
          %v2820 = vsel %vm2507, %v1881, 0.0
          %v2821 = vsel %vm2508, %v1882, 0.0
          %v2822 = vsel %vm2509, %v1883, 0.0
          %v2823 = vsel %vm2510, %v1884, 0.0
          %v2824 = vsel %vm2511, %v1885, 0.0
          %v2825 = vsel %vm2512, %v1886, 0.0
          %v2826 = vsel %vm2513, %v1887, 0.0
          %v2827 = vsel %vm2514, %v1888, 0.0
          %v2828 = vsel %vm2515, %v1889, 0.0
          %v2829 = vsel %vm2516, %v1890, 0.0
          %v2830 = vsel %vm2517, %v1891, 0.0
          %v2831 = vsel %vm2518, %v1892, 0.0
          %v2832 = vsel %vm2519, %v1893, 0.0
          %v2833 = vsel %vm2520, %v1894, 0.0
          %v2834 = vsel %vm2521, %v1895, 0.0
          %v2835 = vsel %vm2522, %v1896, 0.0
          %v2836 = vsel %vm2523, %v1897, 0.0
          %v2837 = vsel %vm2524, %v1898, 0.0
          %v2838 = vsel %vm2525, %v1899, 0.0
          %v2839 = vsel %vm2526, %v1900, 0.0
          %v2840 = vsel %vm2527, %v1901, 0.0
          %v2841 = vsel %vm2528, %v1902, 0.0
          %v2842 = vsel %vm2529, %v1903, 0.0
          %v2843 = vsel %vm2530, %v1904, 0.0
          %v2844 = vsel %vm2531, %v1905, 0.0
          %v2845 = vsel %vm2532, %v1906, 0.0
          %v2846 = vsel %vm2533, %v1907, 0.0
          %v2847 = vsel %vm2534, %v1908, 0.0
          %v2848 = vsel %vm2535, %v1909, 0.0
          %v2849 = vsel %vm2536, %v1910, 0.0
          %v2850 = vsel %vm2537, %v1911, 0.0
          %v2851 = vsel %vm2538, %v1912, 0.0
          %v2852 = vsel %vm2539, %v1913, 0.0
          %v2853 = vsel %vm2540, %v1914, 0.0
          %v2854 = vsel %vm2541, %v1915, 0.0
          %v2855 = vsel %vm2542, %v1916, 0.0
          %v2856 = vsel %vm2543, %v1917, 0.0
          %v2857 = vsel %vm2544, %v1918, 0.0
          %v2858 = vsel %vm2545, %v1919, 0.0
          %v2859 = vsel %vm2546, %v1920, 0.0
          %v2860 = vsel %vm2547, %v1921, 0.0
          %v2861 = vsel %vm2548, %v1922, 0.0
          %v2862 = vsel %vm2549, %v1923, 0.0
          %v2863 = vsel %vm2550, %v1924, 0.0
          %v2864 = vsel %vm2551, %v1925, 0.0
          %v2865 = vsel %vm2552, %v1926, 0.0
          %v2866 = vsel %vm2553, %v1927, 0.0
          %v2867 = vsel %vm2554, %v1928, 0.0
          %v2868 = vsel %vm2555, %v1929, 0.0
          %v2869 = vsel %vm2556, %v1930, 0.0
          %v2870 = vsel %vm2557, %v1931, 0.0
          %v2871 = vsel %vm2558, %v1932, 0.0
          %v2872 = vsel %vm2559, %v1933, 0.0
          %v2873 = vsel %vm2560, %v1934, 0.0
          %v2874 = vsel %vm2561, %v1935, 0.0
          %v2875 = vsel %vm2562, %v1936, 0.0
          %v2876 = vsel %vm2563, %v1937, 0.0
          %v2877 = vsel %vm2564, %v1938, 0.0
          %v2878 = vsel %vm2565, %v1939, 0.0
          %v2879 = vsel %vm2566, %v1940, 0.0
          %v2880 = vsel %vm2567, %v1941, 0.0
          %v2881 = vsel %vm2568, %v1942, 0.0
          %v2882 = vsel %vm2569, %v1943, 0.0
          %v2883 = vsel %vm2570, %v1944, 0.0
          %v2884 = vsel %vm2571, %v1945, 0.0
          %v2885 = vsel %vm2572, %v1946, 0.0
          %v2886 = vsel %vm2573, %v1947, 0.0
          %v2887 = vsel %vm2574, %v1948, 0.0
          %v2888 = vsel %vm2575, %v1949, 0.0
          %v2889 = vsel %vm2576, %v1950, 0.0
          %v2890 = vsel %vm2577, %v1951, 0.0
          %v2891 = vsel %vm2578, %v1952, 0.0
          %v2892 = vsel %vm2579, %v1953, 0.0
          %v2893 = vsel %vm2580, %v1954, 0.0
          %v2894 = vsel %vm2581, %v1955, 0.0
          %v2895 = vsel %vm2582, %v1956, 0.0
          %v2896 = vsel %vm2583, %v1957, 0.0
          %v2897 = vsel %vm2584, %v1958, 0.0
          %v2898 = vsel %vm2585, %v1959, 0.0
          %v2899 = vsel %vm2586, %v1960, 0.0
          %v2900 = vsel %vm2587, %v1961, 0.0
          %v2901 = vsel %vm2588, %v1962, 0.0
          %v2902 = vsel %vm2589, %v1963, 0.0
          %v2903 = vsel %vm2590, %v1964, 0.0
          %v2904 = vsel %vm2591, %v1965, 0.0
          %v2905 = vsel %vm2592, %v1966, 0.0
          %v2906 = vsel %vm2593, %v1967, 0.0
          %v2907 = vsel %vm2594, %v1968, 0.0
          %v2908 = vsel %vm2595, %v1969, 0.0
          %v2909 = vsel %vm2596, %v1970, 0.0
          %v2910 = vsel %vm2597, %v1971, 0.0
          %v2911 = vsel %vm2598, %v1972, 0.0
          %v2912 = vsel %vm2599, %v1973, 0.0
          %v2913 = vsel %vm2600, %v1974, 0.0
          %v2914 = vsel %vm2601, %v1975, 0.0
          %v2915 = vsel %vm2602, %v1976, 0.0
          %v2916 = vsel %vm2603, %v1977, 0.0
          %v2917 = vsel %vm2604, %v1978, 0.0
          %v2918 = vsel %vm2605, %v1979, 0.0
          %v2919 = vsel %vm2606, %v1980, 0.0
          %v2920 = vsel %vm2607, %v1981, 0.0
          %v2921 = vsel %vm2608, %v1982, 0.0
          %v2922 = vsel %vm2609, %v1983, 0.0
          %v2923 = vsel %vm2610, %v1984, 0.0
          %v2924 = vsel %vm2611, %v1985, 0.0
          %v2925 = vsel %vm2612, %v1986, 0.0
          %v2926 = vsel %vm2613, %v1987, 0.0
          %v2927 = vsel %vm2614, %v1988, 0.0
          %v2928 = vsel %vm2615, %v1989, 0.0
          %v2929 = vsel %vm2616, %v1990, 0.0
          %v2930 = vsel %vm2617, %v1991, 0.0
          %v2931 = vsel %vm2618, %v1992, 0.0
          %v2932 = vsel %vm2619, %v1993, 0.0
          %v2933 = vsel %vm2620, %v1994, 0.0
          %v2934 = vsel %vm2621, %v1995, 0.0
          %v2935 = vsel %vm2622, %v1996, 0.0
          %v2936 = vsel %vm2623, %v1997, 0.0
          %v2937 = vsel %vm2624, %v1998, 0.0
          %v2938 = vsel %vm2625, %v1999, 0.0
          %v2939 = vsel %vm2626, %v2000, 0.0
          %v2940 = vsel %vm2627, %v2001, 0.0
          %v2941 = vsel %vm2628, %v2002, 0.0
          %v2942 = vsel %vm2629, %v2003, 0.0
          %v2943 = vsel %vm2630, %v2004, 0.0
          %v2944 = vsel %vm2631, %v2005, 0.0
          %v2945 = vsel %vm2632, %v2006, 0.0
          %v2946 = vsel %vm2633, %v2007, 0.0
          %v2947 = vsel %vm2634, %v2008, 0.0
          %v2948 = vsel %vm2635, %v2009, 0.0
          %v2949 = vsel %vm2636, %v2010, 0.0
          %v2950 = vsel %vm2637, %v2011, 0.0
          %v2951 = vsel %vm2638, %v2012, 0.0
          %v2952 = vsel %vm2639, %v2013, 0.0
          %v2953 = vsel %vm2640, %v2014, 0.0
          %v2954 = vsel %vm2641, %v2015, 0.0
          %v2955 = vsel %vm2642, %v2016, 0.0
          %v2956 = vsel %vm2643, %v2017, 0.0
          %v2957 = vsel %vm2644, %v2018, 0.0
          %v2958 = vsel %vm2645, %v2019, 0.0
          %v2959 = vsel %vm2646, %v2020, 0.0
          %v2960 = vsel %vm2647, %v2021, 0.0
          %v2961 = vsel %vm2648, %v2022, 0.0
          %v2962 = vsel %vm2649, %v2023, 0.0
          %v2963 = vsel %vm2650, %v2024, 0.0
          %v2964 = vsel %vm2651, %v2025, 0.0
          %v2965 = vsel %vm2652, %v2026, 0.0
          %v2966 = vsel %vm2653, %v2027, 0.0
          %v2967 = vsel %vm2654, %v2028, 0.0
          %v2968 = vsel %vm2655, %v2029, 0.0
          %v2969 = vsel %vm2656, %v2030, 0.0
          %v2970 = vsel %vm2657, %v2031, 0.0
          %v2971 = vsel %vm2658, %v2032, 0.0
          %v2972 = vsel %vm2659, %v2033, 0.0
          %v2973 = vsel %vm2660, %v2034, 0.0
          %v2974 = vsel %vm2661, %v2035, 0.0
          %v2975 = vsel %vm2662, %v2036, 0.0
          %v2976 = vsel %vm2663, %v2037, 0.0
          %v2977 = vsel %vm2664, %v2038, 0.0
          %v2978 = vsel %vm2665, %v2039, 0.0
          %v2979 = vsel %vm2666, %v2040, 0.0
          %v2980 = vsel %vm2667, %v2041, 0.0
          %v2981 = vsel %vm2668, %v2042, 0.0
          %v2982 = vsel %vm2669, %v2043, 0.0
          %v2983 = vsel %vm2670, %v2044, 0.0
          %v2984 = vsel %vm2671, %v2045, 0.0
          %v2985 = vld [vmem:[#allocation2] sm:$0xff]
          %v2986 = vadd.f32 %v2672, %v2673
          %v2987 = vadd.f32 %v2986, %v2674
          %v2988 = vadd.f32 %v2987, %v2675
          %v2989 = vadd.f32 %v2988, %v2676
          %v2990 = vadd.f32 %v2989, %v2677
          %v2991 = vadd.f32 %v2990, %v2678
          %v2992 = vadd.f32 %v2991, %v2679
          %v2993 = vadd.f32 %v2992, %v2680
          %v2994 = vadd.f32 %v2993, %v2681
          %v2995 = vadd.f32 %v2994, %v2682
          %v2996 = vadd.f32 %v2995, %v2683
          %v2997 = vadd.f32 %v2996, %v2684
          %v2998 = vadd.f32 %v2997, %v2685
          %v2999 = vadd.f32 %v2998, %v2686
          %v3000 = vadd.f32 %v2999, %v2687
          %v3001 = vadd.f32 %v3000, %v2688
          %v3002 = vadd.f32 %v3001, %v2689
          %v3003 = vadd.f32 %v3002, %v2690
          %v3004 = vadd.f32 %v3003, %v2691
          %v3005 = vadd.f32 %v3004, %v2692
          %v3006 = vadd.f32 %v3005, %v2693
          %v3007 = vadd.f32 %v3006, %v2694
          %v3008 = vadd.f32 %v3007, %v2695
          %v3009 = vadd.f32 %v3008, %v2696
          %v3010 = vadd.f32 %v3009, %v2697
          %v3011 = vadd.f32 %v3010, %v2698
          %v3012 = vadd.f32 %v3011, %v2699
          %v3013 = vadd.f32 %v3012, %v2700
          %v3014 = vadd.f32 %v3013, %v2701
          %v3015 = vadd.f32 %v3014, %v2702
          %v3016 = vadd.f32 %v3015, %v2703
          %v3017 = vadd.f32 %v3016, %v2704
          %v3018 = vadd.f32 %v3017, %v2705
          %v3019 = vadd.f32 %v3018, %v2706
          %v3020 = vadd.f32 %v3019, %v2707
          %v3021 = vadd.f32 %v3020, %v2708
          %v3022 = vadd.f32 %v3021, %v2709
          %v3023 = vadd.f32 %v3022, %v2710
          %v3024 = vadd.f32 %v3023, %v2711
          %v3025 = vadd.f32 %v3024, %v2712
          %v3026 = vadd.f32 %v3025, %v2713
          %v3027 = vadd.f32 %v3026, %v2714
          %v3028 = vadd.f32 %v3027, %v2715
          %v3029 = vadd.f32 %v3028, %v2716
          %v3030 = vadd.f32 %v3029, %v2717
          %v3031 = vadd.f32 %v3030, %v2718
          %v3032 = vadd.f32 %v3031, %v2719
          %v3033 = vadd.f32 %v3032, %v2720
          %v3034 = vadd.f32 %v3033, %v2721
          %v3035 = vadd.f32 %v3034, %v2722
          %v3036 = vadd.f32 %v3035, %v2723
          %v3037 = vadd.f32 %v3036, %v2724
          %v3038 = vadd.f32 %v3037, %v2725
          %v3039 = vadd.f32 %v3038, %v2726
          %v3040 = vadd.f32 %v3039, %v2727
          %v3041 = vadd.f32 %v3040, %v2728
          %v3042 = vadd.f32 %v3041, %v2729
          %v3043 = vadd.f32 %v3042, %v2730
          %v3044 = vadd.f32 %v3043, %v2731
          %v3045 = vadd.f32 %v3044, %v2732
          %v3046 = vadd.f32 %v3045, %v2733
          %v3047 = vadd.f32 %v3046, %v2734
          %v3048 = vadd.f32 %v3047, %v2735
          %v3049 = vadd.f32 %v3048, %v2736
          %v3050 = vadd.f32 %v3049, %v2737
          %v3051 = vadd.f32 %v3050, %v2738
          %v3052 = vadd.f32 %v3051, %v2739
          %v3053 = vadd.f32 %v3052, %v2740
          %v3054 = vadd.f32 %v3053, %v2741
          %v3055 = vadd.f32 %v3054, %v2742
          %v3056 = vadd.f32 %v3055, %v2743
          %v3057 = vadd.f32 %v3056, %v2744
          %v3058 = vadd.f32 %v3057, %v2745
          %v3059 = vadd.f32 %v3058, %v2746
          %v3060 = vadd.f32 %v3059, %v2747
          %v3061 = vadd.f32 %v3060, %v2748
          %v3062 = vadd.f32 %v3061, %v2749
          %v3063 = vadd.f32 %v3062, %v2750
          %v3064 = vadd.f32 %v3063, %v2751
          %v3065 = vadd.f32 %v3064, %v2752
          %v3066 = vadd.f32 %v3065, %v2753
          %v3067 = vadd.f32 %v3066, %v2754
          %v3068 = vadd.f32 %v3067, %v2755
          %v3069 = vadd.f32 %v3068, %v2756
          %v3070 = vadd.f32 %v3069, %v2757
          %v3071 = vadd.f32 %v3070, %v2758
          %v3072 = vadd.f32 %v3071, %v2759
          %v3073 = vadd.f32 %v3072, %v2760
          %v3074 = vadd.f32 %v3073, %v2761
          %v3075 = vadd.f32 %v3074, %v2762
          %v3076 = vadd.f32 %v3075, %v2763
          %v3077 = vadd.f32 %v3076, %v2764
          %v3078 = vadd.f32 %v3077, %v2765
          %v3079 = vadd.f32 %v3078, %v2766
          %v3080 = vadd.f32 %v3079, %v2767
          %v3081 = vadd.f32 %v3080, %v2768
          %v3082 = vadd.f32 %v3081, %v2769
          %v3083 = vadd.f32 %v3082, %v2770
          %v3084 = vadd.f32 %v3083, %v2771
          %v3085 = vadd.f32 %v3084, %v2772
          %v3086 = vadd.f32 %v3085, %v2773
          %v3087 = vadd.f32 %v3086, %v2774
          %v3088 = vadd.f32 %v3087, %v2775
          %v3089 = vadd.f32 %v3088, %v2776
          %v3090 = vadd.f32 %v3089, %v2777
          %v3091 = vadd.f32 %v3090, %v2778
          %v3092 = vadd.f32 %v3091, %v2779
          %v3093 = vadd.f32 %v3092, %v2780
          %v3094 = vadd.f32 %v3093, %v2781
          %v3095 = vadd.f32 %v3094, %v2782
          %v3096 = vadd.f32 %v3095, %v2783
          %v3097 = vadd.f32 %v3096, %v2784
          %v3098 = vadd.f32 %v3097, %v2785
          %v3099 = vadd.f32 %v3098, %v2786
          %v3100 = vadd.f32 %v3099, %v2787
          %v3101 = vadd.f32 %v3100, %v2788
          %v3102 = vadd.f32 %v3101, %v2789
          %v3103 = vadd.f32 %v3102, %v2790
          %v3104 = vadd.f32 %v3103, %v2791
          %v3105 = vadd.f32 %v3104, %v2792
          %v3106 = vadd.f32 %v3105, %v2793
          %v3107 = vadd.f32 %v3106, %v2794
          %v3108 = vadd.f32 %v3107, %v2795
          %v3109 = vadd.f32 %v3108, %v2796
          %v3110 = vadd.f32 %v3109, %v2797
          %v3111 = vadd.f32 %v3110, %v2798
          %v3112 = vadd.f32 %v3111, %v2799
          %v3113 = vadd.f32 %v3112, %v2800
          %v3114 = vadd.f32 %v3113, %v2801
          %v3115 = vadd.f32 %v3114, %v2802
          %v3116 = vadd.f32 %v3115, %v2803
          %v3117 = vadd.f32 %v3116, %v2804
          %v3118 = vadd.f32 %v3117, %v2805
          %v3119 = vadd.f32 %v3118, %v2806
          %v3120 = vadd.f32 %v3119, %v2807
          %v3121 = vadd.f32 %v3120, %v2808
          %v3122 = vadd.f32 %v3121, %v2809
          %v3123 = vadd.f32 %v3122, %v2810
          %v3124 = vadd.f32 %v3123, %v2811
          %v3125 = vadd.f32 %v3124, %v2812
          %v3126 = vadd.f32 %v3125, %v2813
          %v3127 = vadd.f32 %v3126, %v2814
          %v3128 = vadd.f32 %v3127, %v2815
          %v3129 = vadd.f32 %v3128, %v2816
          %v3130 = vadd.f32 %v3129, %v2817
          %v3131 = vadd.f32 %v3130, %v2818
          %v3132 = vadd.f32 %v3131, %v2819
          %v3133 = vadd.f32 %v3132, %v2820
          %v3134 = vadd.f32 %v3133, %v2821
          %v3135 = vadd.f32 %v3134, %v2822
          %v3136 = vadd.f32 %v3135, %v2823
          %v3137 = vadd.f32 %v3136, %v2824
          %v3138 = vadd.f32 %v3137, %v2825
          %v3139 = vadd.f32 %v3138, %v2826
          %v3140 = vadd.f32 %v3139, %v2827
          %v3141 = vadd.f32 %v3140, %v2828
          %v3142 = vadd.f32 %v3141, %v2829
          %v3143 = vadd.f32 %v3142, %v2830
          %v3144 = vadd.f32 %v3143, %v2831
          %v3145 = vadd.f32 %v3144, %v2832
          %v3146 = vadd.f32 %v3145, %v2833
          %v3147 = vadd.f32 %v3146, %v2834
          %v3148 = vadd.f32 %v3147, %v2835
          %v3149 = vadd.f32 %v3148, %v2836
          %v3150 = vadd.f32 %v3149, %v2837
          %v3151 = vadd.f32 %v3150, %v2838
          %v3152 = vadd.f32 %v3151, %v2839
          %v3153 = vadd.f32 %v3152, %v2840
          %v3154 = vadd.f32 %v3153, %v2841
          %v3155 = vadd.f32 %v3154, %v2842
          %v3156 = vadd.f32 %v3155, %v2843
          %v3157 = vadd.f32 %v3156, %v2844
          %v3158 = vadd.f32 %v3157, %v2845
          %v3159 = vadd.f32 %v3158, %v2846
          %v3160 = vadd.f32 %v3159, %v2847
          %v3161 = vadd.f32 %v3160, %v2848
          %v3162 = vadd.f32 %v3161, %v2849
          %v3163 = vadd.f32 %v3162, %v2850
          %v3164 = vadd.f32 %v3163, %v2851
          %v3165 = vadd.f32 %v3164, %v2852
          %v3166 = vadd.f32 %v3165, %v2853
          %v3167 = vadd.f32 %v3166, %v2854
          %v3168 = vadd.f32 %v3167, %v2855
          %v3169 = vadd.f32 %v3168, %v2856
          %v3170 = vadd.f32 %v3169, %v2857
          %v3171 = vadd.f32 %v3170, %v2858
          %v3172 = vadd.f32 %v3171, %v2859
          %v3173 = vadd.f32 %v3172, %v2860
          %v3174 = vadd.f32 %v3173, %v2861
          %v3175 = vadd.f32 %v3174, %v2862
          %v3176 = vadd.f32 %v3175, %v2863
          %v3177 = vadd.f32 %v3176, %v2864
          %v3178 = vadd.f32 %v3177, %v2865
          %v3179 = vadd.f32 %v3178, %v2866
          %v3180 = vadd.f32 %v3179, %v2867
          %v3181 = vadd.f32 %v3180, %v2868
          %v3182 = vadd.f32 %v3181, %v2869
          %v3183 = vadd.f32 %v3182, %v2870
          %v3184 = vadd.f32 %v3183, %v2871
          %v3185 = vadd.f32 %v3184, %v2872
          %v3186 = vadd.f32 %v3185, %v2873
          %v3187 = vadd.f32 %v3186, %v2874
          %v3188 = vadd.f32 %v3187, %v2875
          %v3189 = vadd.f32 %v3188, %v2876
          %v3190 = vadd.f32 %v3189, %v2877
          %v3191 = vadd.f32 %v3190, %v2878
          %v3192 = vadd.f32 %v3191, %v2879
          %v3193 = vadd.f32 %v3192, %v2880
          %v3194 = vadd.f32 %v3193, %v2881
          %v3195 = vadd.f32 %v3194, %v2882
          %v3196 = vadd.f32 %v3195, %v2883
          %v3197 = vadd.f32 %v3196, %v2884
          %v3198 = vadd.f32 %v3197, %v2885
          %v3199 = vadd.f32 %v3198, %v2886
          %v3200 = vadd.f32 %v3199, %v2887
          %v3201 = vadd.f32 %v3200, %v2888
          %v3202 = vadd.f32 %v3201, %v2889
          %v3203 = vadd.f32 %v3202, %v2890
          %v3204 = vadd.f32 %v3203, %v2891
          %v3205 = vadd.f32 %v3204, %v2892
          %v3206 = vadd.f32 %v3205, %v2893
          %v3207 = vadd.f32 %v3206, %v2894
          %v3208 = vadd.f32 %v3207, %v2895
          %v3209 = vadd.f32 %v3208, %v2896
          %v3210 = vadd.f32 %v3209, %v2897
          %v3211 = vadd.f32 %v3210, %v2898
          %v3212 = vadd.f32 %v3211, %v2899
          %v3213 = vadd.f32 %v3212, %v2900
          %v3214 = vadd.f32 %v3213, %v2901
          %v3215 = vadd.f32 %v3214, %v2902
          %v3216 = vadd.f32 %v3215, %v2903
          %v3217 = vadd.f32 %v3216, %v2904
          %v3218 = vadd.f32 %v3217, %v2905
          %v3219 = vadd.f32 %v3218, %v2906
          %v3220 = vadd.f32 %v3219, %v2907
          %v3221 = vadd.f32 %v3220, %v2908
          %v3222 = vadd.f32 %v3221, %v2909
          %v3223 = vadd.f32 %v3222, %v2910
          %v3224 = vadd.f32 %v3223, %v2911
          %v3225 = vadd.f32 %v3224, %v2912
          %v3226 = vadd.f32 %v3225, %v2913
          %v3227 = vadd.f32 %v3226, %v2914
          %v3228 = vadd.f32 %v3227, %v2915
          %v3229 = vadd.f32 %v3228, %v2916
          %v3230 = vadd.f32 %v3229, %v2917
          %v3231 = vadd.f32 %v3230, %v2918
          %v3232 = vadd.f32 %v3231, %v2919
          %v3233 = vadd.f32 %v3232, %v2920
          %v3234 = vadd.f32 %v3233, %v2921
          %v3235 = vadd.f32 %v3234, %v2922
          %v3236 = vadd.f32 %v3235, %v2923
          %v3237 = vadd.f32 %v3236, %v2924
          %v3238 = vadd.f32 %v3237, %v2925
          %v3239 = vadd.f32 %v3238, %v2926
          %v3240 = vadd.f32 %v3239, %v2927
          %v3241 = vadd.f32 %v3240, %v2928
          %v3242 = vadd.f32 %v3241, %v2929
          %v3243 = vadd.f32 %v3242, %v2930
          %v3244 = vadd.f32 %v3243, %v2931
          %v3245 = vadd.f32 %v3244, %v2932
          %v3246 = vadd.f32 %v3245, %v2933
          %v3247 = vadd.f32 %v3246, %v2934
          %v3248 = vadd.f32 %v3247, %v2935
          %v3249 = vadd.f32 %v3248, %v2936
          %v3250 = vadd.f32 %v3249, %v2937
          %v3251 = vadd.f32 %v3250, %v2938
          %v3252 = vadd.f32 %v3251, %v2939
          %v3253 = vadd.f32 %v3252, %v2940
          %v3254 = vadd.f32 %v3253, %v2941
          %v3255 = vadd.f32 %v3254, %v2942
          %v3256 = vadd.f32 %v3255, %v2943
          %v3257 = vadd.f32 %v3256, %v2944
          %v3258 = vadd.f32 %v3257, %v2945
          %v3259 = vadd.f32 %v3258, %v2946
          %v3260 = vadd.f32 %v3259, %v2947
          %v3261 = vadd.f32 %v3260, %v2948
          %v3262 = vadd.f32 %v3261, %v2949
          %v3263 = vadd.f32 %v3262, %v2950
          %v3264 = vadd.f32 %v3263, %v2951
          %v3265 = vadd.f32 %v3264, %v2952
          %v3266 = vadd.f32 %v3265, %v2953
          %v3267 = vadd.f32 %v3266, %v2954
          %v3268 = vadd.f32 %v3267, %v2955
          %v3269 = vadd.f32 %v3268, %v2956
          %v3270 = vadd.f32 %v3269, %v2957
          %v3271 = vadd.f32 %v3270, %v2958
          %v3272 = vadd.f32 %v3271, %v2959
          %v3273 = vadd.f32 %v3272, %v2960
          %v3274 = vadd.f32 %v3273, %v2961
          %v3275 = vadd.f32 %v3274, %v2962
          %v3276 = vadd.f32 %v3275, %v2963
          %v3277 = vadd.f32 %v3276, %v2964
          %v3278 = vadd.f32 %v3277, %v2965
          %v3279 = vadd.f32 %v3278, %v2966
          %v3280 = vadd.f32 %v3279, %v2967
          %v3281 = vadd.f32 %v3280, %v2968
          %v3282 = vadd.f32 %v3281, %v2969
          %v3283 = vadd.f32 %v3282, %v2970
          %v3284 = vadd.f32 %v3283, %v2971
          %v3285 = vadd.f32 %v3284, %v2972
          %v3286 = vadd.f32 %v3285, %v2973
          %v3287 = vadd.f32 %v3286, %v2974
          %v3288 = vadd.f32 %v3287, %v2975
          %v3289 = vadd.f32 %v3288, %v2976
          %v3290 = vadd.f32 %v3289, %v2977
          %v3291 = vadd.f32 %v3290, %v2978
          %v3292 = vadd.f32 %v3291, %v2979
          %v3293 = vadd.f32 %v3292, %v2980
          %v3294 = vadd.f32 %v3293, %v2981
          %v3295 = vadd.f32 %v3294, %v2982
          %v3296 = vadd.f32 %v3295, %v2983
          %v3297 = vadd.f32 %v3296, %v2984
          %v3298 = vadd.f32 %v2985, %v3297
          %3299 = vst [vmem:[#allocation2] sm:$0xff] %v3298
          %v3300 = vld [vmem:[#allocation2] sm:$0xff]
          %v3301 = vrot.slane %v3300, 4
          %v3302 = vadd.f32 %v3300, %v3301
          %v3303 = vrot.slane %v3302, 2
          %v3304 = vadd.f32 %v3302, %v3303
          %v3305 = vrot.slane %v3304, 1
          %v3306 = vadd.f32 %v3304, %v3305
          %v3307 = vmul.f32 %v3306, 0.0004
          %3308 = vst [vmem:[%s149] sm:$0x1] %v3307
        $region40: #{tpu_custom_call.1} parent=23 // pred_fallthru
          _
        %s3309 = sand.u32 %s66, 1
        %s3310 = scalar_lea.sflag [#allocation5], %s3309
        %s3311 = sand.u32 %s66, 1
        %s3312 = scalar_lea.vmem [#allocation6], %s3311
        // Predicated region
        $region41: #{tpu_custom_call.1} parent=23 // pred_check
          %p3313 = pneg %p76
        $region42: #{tpu_custom_call.1} parent=23 // pred_check_branch
          %3315 = sbr.rel (%p3313) target = $region44
        $region43: #{tpu_custom_call.1} parent=23 // pred_region
          %s3317 = ssub.s32 16, 16
          %3318 = vsyncadd %s3310, %s3317
          %s3319 = smul.addr %s22, 16
          %s3320 = scalar_lea.hbm %s1, %s3319
          %s3322 = sshll.u32 %s3312, 4
          %s3323 = int_to_ptr.vmem [resolvable:$true] %s3322
          %3325 = dma.vmem_to_hbm [thread:$0]  %s3323, 16, %s3320, %s3310
        $region44: #{tpu_custom_call.1} parent=23 // pred_fallthru
          _
      $region24: #{tpu_custom_call.1} parent=5 // pred_fallthru
        _
      %p3326 = scmp.le.s32.totalorder 2, %s13
      // Predicated region
      $region45: #{tpu_custom_call.1} parent=5 // pred_check
        %p3327 = pneg %p3326
      $region46: #{tpu_custom_call.1} parent=5 // pred_check_branch
        %3329 = sbr.rel (%p3327) target = $region48
      $region47: #{tpu_custom_call.1} parent=5 // pred_region
        %s3330 = ssub.s32 %s13, 2
        // Predicated region
        $region49: #{tpu_custom_call.1} parent=47 // pred_check
          %p3331 = pneg %p82
        $region50: #{tpu_custom_call.1} parent=47 // pred_check_branch
          %3333 = sbr.rel (%p3331) target = $region52
        $region51: #{tpu_custom_call.1} parent=47 // pred_region
          %s3334 = sand.u32 %s67, 1
          %s3335 = scalar_lea.sflag [#allocation5], %s3334
          %s3336 = sand.u32 %s67, 1
          %s3337 = scalar_lea.vmem [#allocation6], %s3336
          %3338 = dma.done %s3335, 16
        $region52: #{tpu_custom_call.1} parent=47 // pred_fallthru
          _
      $region48: #{tpu_custom_call.1} parent=5 // pred_fallthru
        _
    $region6: #{tpu_custom_call.1} parent=1 // loop_footer
      %s17 = sadd.s32 1, %s13
    $region7: #{tpu_custom_call.1} parent=1 // loop_footer_branch
      %12 = sbr.rel target = $region3
    $region8: #{tpu_custom_call.1} parent=1 // loop_exit
      _
    %3339 = vsyncpa [#allocation4], 1
    %s3340 = scalar_lea.sflag [#allocation4], 1
    %3341 = vsyncpa %s3340, 1
    %3342 = vsyncpa [#allocation5], 1
    %s3343 = scalar_lea.sflag [#allocation5], 1
    %3344 = vsyncpa %s3343, 1

</llo_original>
